<compile_context>
chip_gen: v6e
topology: v6e:2x2x1
jax: 0.10.0
libtpu: 0.0.40
codegen_flags: <defaults>
</compile_context>

<pallas_src>
import functools

import jax
import jax.numpy as jnp
from jax.experimental import pallas as pl
from jax.experimental.pallas import tpu as pltpu

EPS = 1e-5


# ----------------------- pltpu.roll convention probe -------------------------

def _pltpu_roll_is_jnp_roll():
    """True iff pltpu.roll(x, s, 1) == jnp.roll(x, s, axis=1) on this backend."""
    try:
        def k(x_ref, o_ref):
            o_ref[...] = pltpu.roll(x_ref[...], 497, 1)   # crosses vreg boundaries

        x = jnp.arange(8 * 512, dtype=jnp.float32).reshape(8, 512)
        y = pl.pallas_call(k, out_shape=jax.ShapeDtypeStruct((8, 512), jnp.float32))(x)
        return bool(jnp.array_equal(y, jnp.roll(x, 497, axis=1)))
    except Exception:
        return False


_USE_PLTPU_ROLL = _pltpu_roll_is_jnp_roll()


def _make_shift(n, use_roll):
    """Returns shift(z, d) with shift(z, d)[:, i] == z[:, (i + d) % n]  (left rot)."""
    if use_roll:
        def shift(z, d):
            d = d % n
            if d == 0:
                return z
            return pltpu.roll(z, n - d, 1)     # == jnp.roll(z, -d, axis=1)
    else:
        def shift(z, d):                       # fallback: known-good slice+concat
            d = d % n
            if d == 0:
                return z
            return jnp.concatenate([z[:, d:], z[:, :d]], axis=1)
    return shift


def _sliding_max(x, k, step, shift):
    """out[:, i] = max_{t in [0,k)} x[:, (i + t*step) % n], log-depth doubling."""
    res, w = x, 1
    while w < k:
        s = min(w, k - w)
        res = jnp.maximum(res, shift(res, s * step))
        w += s
    return res


# ------------------------------ Pallas kernel --------------------------------

def _fused_encoder_kernel(x_ref, masks_ref, mean_ref, w1_ref, w2_ref, vecs_ref,
                          comb1_ref, ws2b_ref, wf1_ref, wf2_ref, pw_ref, pb_ref,
                          o_ref, taps_ref, *, Bl, H, W, s_r, n_layers, use_roll):
    C = x_ref.shape[0]
    HW = H * W
    BHW = Bl * HW
    kh, kw = H // s_r, W // s_r
    offsets = [(dy, dx) for dy in (-1, 0, 1) for dx in (-1, 0, 1)]
    shift = _make_shift(BHW, use_roll)

    # Hoisted boundary masks, broadcast once to full channel height (JAX does not
    # CSE broadcast_in_dim; doing this inside conv3x3 re-emits it 9*2*n_layers x).
    masks = masks_ref[...]                                        # (9, BHW)
    mfull = []
    for k, (dy, dx) in enumerate(offsets):
        if (dy, dx) == (0, 0):
            mfull.append(None)                                    # center tap: in-bounds
        else:
            mfull.append(jnp.broadcast_to(masks[k:k + 1, :], (C, BHW)))

    mean_sel = mean_ref[...]                                      # (Bl*s_r^2, Bl)
    x0 = x_ref[...]                                               # (C, BHW)
    cur = x0

    def conv3x3(z, w_cat, b_col):
        # 3x3 conv (zero padding) as ONE K=9*C MXU matmul; the 9 taps are built
        # in-kernel from lane rotations + boundary masks (masks zero the lanes
        # that wrapped across row ends / batch slabs == zero padding).
        for k, (dy, dx) in enumerate(offsets):
            t = shift(z, dy * W + dx)
            if mfull[k] is not None:
                t = t * mfull[k]
            taps_ref[k * C:(k + 1) * C, :] = t
        return jnp.dot(w_cat, taps_ref[...], preferred_element_type=jnp.float32) + b_col

    for l in range(n_layers):
        xin = cur
        v = vecs_ref[l]                                   # (C, 4): [s1, t1, b1f, b2f]
        s1, t1 = v[:, 0:1], v[:, 1:2]
        b1, b2 = v[:, 2:3], v[:, 3:4]

        z = cur * s1 + t1                                 # bn1 (inference affine)
        a = jnp.maximum(conv3x3(z, w1_ref[l], b1), 0.0)   # conv1 + bn2 (folded) + relu
        u = conv3x3(a, w2_ref[l], b2)                     # conv2 + bn3 (folded)

        # ---- SCELayer, batched over the Bl lane slabs ----
        # Log-depth sliding-window maxima: the true (kh x kw) window maxima land
        # on the window-start lanes; every other lane holds harmless filler that
        # is zeroed by the (sel @ ws1)-folded selector rows of comb1.
        wm = _sliding_max(u, kw, 1, shift)
        hm = _sliding_max(wm, kh, W, shift)

        h1 = jnp.maximum(jnp.dot(hm, comb1_ref[l],
                                 preferred_element_type=jnp.float32), 0.0)   # (C, Bl*8)
        s2 = jax.nn.sigmoid(jnp.dot(h1, ws2b_ref[l],
                                    preferred_element_type=jnp.float32))     # (C, Bl*s_r^2)
        y = jnp.dot(s2, mean_sel, preferred_element_type=jnp.float32)        # (C, Bl)
        h2 = jnp.maximum(jnp.dot(wf1_ref[l], y,
                                 preferred_element_type=jnp.float32), 0.0)   # (C//4, Bl)
        yo = jax.nn.sigmoid(jnp.dot(wf2_ref[l], h2,
                                    preferred_element_type=jnp.float32))     # (C, Bl)

        # Block tail: se = u * yo ; out = xin + se * tanh(se)
        # Applied per 256-lane batch slab (lane-aligned slices), no (C, BHW)
        # broadcast of yo is materialized.
        if Bl == 1:
            se = u * yo
            cur = xin + se * jnp.tanh(se)
        else:
            parts = []
            for b in range(Bl):
                sl = slice(b * HW, (b + 1) * HW)
                se_b = u[:, sl] * yo[:, b:b + 1]
                parts.append(xin[:, sl] + se_b * jnp.tanh(se_b))
            cur = jnp.concatenate(parts, axis=1)

    # pred_conv (1x1 conv == channel matmul) + encoder residual
    o_ref[...] = x0 + jnp.dot(pw_ref[...], cur,
                              preferred_element_type=jnp.float32) + pb_ref[...]


# ------------------------------ host wrappers ---------------------------------

def _bn_scale_shift(p):
    scale = p["gamma"] / jnp.sqrt(p["var"] + EPS)
    shift = p["beta"] - p["mean"] * scale
    return scale, shift


def _build_constants(Bl, H, W, s_r):
    HW = H * W
    kh, kw = H // s_r, W // s_r
    hh = jnp.arange(H)[:, None]
    ww = jnp.arange(W)[None, :]
    rows = []
    for dy in (-1, 0, 1):
        for dx in (-1, 0, 1):
            m = ((hh + dy >= 0) & (hh + dy < H) & (ww + dx >= 0) & (ww + dx < W))
            rows.append(jnp.tile(m.reshape(1, HW).astype(jnp.float32), (1, Bl)))
    masks = jnp.concatenate(rows, axis=0)                           # (9, Bl*HW)

    h_idx = jnp.arange(HW) // W
    w_idx = jnp.arange(HW) % W
    th = jnp.arange(s_r * s_r) // s_r
    tw = jnp.arange(s_r * s_r) % s_r
    sel = ((h_idx[:, None] == th[None, :] * kh) &
           (w_idx[:, None] == tw[None, :] * kw)).astype(jnp.float32)   # (HW, s_r^2)

    # mean over the s_r^2 pooled values, block-diagonal over the Bl batch slabs
    mean_sel = jnp.kron(jnp.eye(Bl, dtype=jnp.float32),
                        jnp.full((s_r * s_r, 1), 1.0 / (s_r * s_r), jnp.float32))
    return masks, sel, mean_sel


def _prep_layer(blk, C, sel, Bl):
    s1, t1 = _bn_scale_shift(blk["bn1"])
    s2, t2 = _bn_scale_shift(blk["bn2"])
    s3, t3 = _bn_scale_shift(blk["bn3"])
    # (O, I, 3, 3) -> (O, ky, kx, I) -> (O, 9*I); tap order matches the kernel.
    w1cat = jnp.transpose(blk["conv1_w"], (0, 2, 3, 1)).reshape(C, 9 * C)
    w2cat = jnp.transpose(blk["conv2_w"], (0, 2, 3, 1)).reshape(C, 9 * C)
    w1f = s2[:, None] * w1cat                       # fold bn2 (output-side, exact)
    w2f = s3[:, None] * w2cat                       # fold bn3 (output-side, exact)
    b1f = s2 * blk["conv1_b"] + t2
    b2f = s3 * blk["conv2_b"] + t3
    vecs = jnp.stack([s1, t1, b1f, b2f], axis=1)    # (C, 4)

    eye = jnp.eye(Bl, dtype=jnp.float32)
    # Adaptive-max-pool gather folded into the first spatial-MLP weight and made
    # block-diagonal over the Bl batch slabs sharing the lane axis.
    comb1 = jnp.kron(eye, sel @ blk["ws1"])         # (Bl*HW, Bl*s_hidden)
    ws2b = jnp.kron(eye, blk["ws2"])                # (Bl*s_hidden, Bl*s_r^2)
    return w1f, w2f, vecs, comb1, ws2b


def _default_num_slabs(batch):
    # v7x has 2 TensorCores per chip -> shard the batch across them with a parallel
    # grid axis.  On 1-TC chips (v5e/v6e) a multi-step grid only lengthens the
    # serial dependency chain, so keep a single fused grid step.
    try:
        kind = jax.devices()[0].device_kind.lower()
    except Exception:
        return 1
    n_tc = 2 if ("v7" in kind or "7x" in kind) else 1
    return n_tc if (n_tc > 1 and batch % n_tc == 0) else 1


def sce_encoder_forward(x, params, *, s_r, num_slabs=None):
    B, C, H, W = x.shape
    HW = H * W
    L = len(params["blocks"])
    if num_slabs is None:
        num_slabs = _default_num_slabs(B)
    Bl = B // num_slabs                                  # batches per grid step

    x2 = jnp.transpose(x, (1, 0, 2, 3)).reshape(C, B * HW)   # (C, B*HW), batch in lanes
    masks, sel, mean_sel = _build_constants(Bl, H, W, s_r)

    w1s, w2s, vecss, comb1s, ws2bs, wf1s, wf2s = [], [], [], [], [], [], []
    for blk in params["blocks"]:
        w1f, w2f, vecs, comb1, ws2b = _prep_layer(blk, C, sel, Bl)
        w1s.append(w1f); w2s.append(w2f); vecss.append(vecs)
        comb1s.append(comb1); ws2bs.append(ws2b)
        wf1s.append(blk["wf1"]); wf2s.append(blk["wf2"])
    w1s, w2s, vecss = jnp.stack(w1s), jnp.stack(w2s), jnp.stack(vecss)
    comb1s, ws2bs = jnp.stack(comb1s), jnp.stack(ws2bs)
    wf1s, wf2s = jnp.stack(wf1s), jnp.stack(wf2s)
    pw = params["pred_w"].reshape(C, C)
    pb = params["pred_b"].reshape(C, 1)

    args = (x2, masks, mean_sel, w1s, w2s, vecss, comb1s, ws2bs, wf1s, wf2s, pw, pb)

    def _full(a):
        nd = a.ndim
        return pl.BlockSpec(a.shape, lambda i, _n=nd: (0,) * _n)

    in_specs = [pl.BlockSpec((C, Bl * HW), lambda i: (0, i))]   # per-slab activation
    in_specs += [_full(a) for a in args[1:]]                    # weights/constants

    kern = functools.partial(_fused_encoder_kernel, Bl=Bl, H=H, W=W, s_r=s_r,
                             n_layers=L, use_roll=_USE_PLTPU_ROLL)
    out2 = pl.pallas_call(
        kern,
        out_shape=jax.ShapeDtypeStruct((C, B * HW), jnp.float32),
        grid=(num_slabs,),
        in_specs=in_specs,
        out_specs=pl.BlockSpec((C, Bl * HW), lambda i: (0, i)),
        scratch_shapes=[pltpu.VMEM((9 * C, Bl * HW), jnp.float32)],
        compiler_params=pltpu.CompilerParams(
            dimension_semantics=("parallel",) if num_slabs > 1 else ("arbitrary",)),
    )(*args)
    return jnp.transpose(out2.reshape(C, B, H, W), (1, 0, 2, 3))


# ------------------------- pure-JAX reference (check) -------------------------

def reference_forward(x, params, *, s_r):
    def bn(z, p):
        g = p["gamma"][None, :, None, None]
        b = p["beta"][None, :, None, None]
        m = p["mean"][None, :, None, None]
        v = p["var"][None, :, None, None]
        return (z - m) / jnp.sqrt(v + EPS) * g + b

    def conv(z, w, b, pad):
        y = jax.lax.conv_general_dilated(z, w, (1, 1), ((pad, pad), (pad, pad)),
                                         dimension_numbers=("NCHW", "OIHW", "NCHW"))
        return y + b[None, :, None, None]

    out = x
    for blk in params["blocks"]:
        xin = out
        z = bn(xin, blk["bn1"])
        z = conv(z, blk["conv1_w"], blk["conv1_b"], 1)
        z = jnp.maximum(bn(z, blk["bn2"]), 0.0)
        z = conv(z, blk["conv2_w"], blk["conv2_b"], 1)
        u = bn(z, blk["bn3"])
        B, C, H, W = u.shape
        kh, kw = H // s_r, W // s_r
        mp = u.reshape(B, C, s_r, kh, s_r, kw).max(axis=(3, 5))
        s = mp.reshape(B, C, s_r * s_r)
        h1 = jnp.maximum(s @ blk["ws1"], 0.0)
        s2 = jax.nn.sigmoid(h1 @ blk["ws2"])
        y = s2.mean(axis=-1)
        h2 = jnp.maximum(y @ blk["wf1"].T, 0.0)
        yo = jax.nn.sigmoid(h2 @ blk["wf2"].T)
        se = u * yo[:, :, None, None]
        o = se * jnp.tanh(se)
        out = xin + o
    pred = conv(out, params["pred_w"], params["pred_b"], 0)
    return x + pred


# -------------------------------- parameters -----------------------------------

def init_params(key, C, s_r, n_layers, c_reduction=4, s_hidden=8):
    def bn_params(k):
        ks = jax.random.split(k, 4)
        return {"gamma": 1.0 + 0.1 * jax.random.normal(ks[0], (C,), jnp.float32),
                "beta": 0.1 * jax.random.normal(ks[1], (C,), jnp.float32),
                "mean": 0.1 * jax.random.normal(ks[2], (C,), jnp.float32),
                "var": 0.5 + jax.random.uniform(ks[3], (C,), dtype=jnp.float32)}

    blocks = []
    for li in range(n_layers):
        k = jax.random.fold_in(key, li)
        ks = jax.random.split(k, 11)
        blocks.append({
            "bn1": bn_params(ks[0]),
            "conv1_w": 0.15 * jax.random.normal(ks[1], (C, C, 3, 3), jnp.float32),
            "conv1_b": 0.05 * jax.random.normal(ks[2], (C,), jnp.float32),
            "bn2": bn_params(ks[3]),
            "conv2_w": 0.15 * jax.random.normal(ks[4], (C, C, 3, 3), jnp.float32),
            "conv2_b": 0.05 * jax.random.normal(ks[5], (C,), jnp.float32),
            "bn3": bn_params(ks[6]),
            # spatial MLP, stored transposed relative to nn.Linear.weight
            "ws1": 0.3 * jax.random.normal(ks[7], (s_r * s_r, s_hidden), jnp.float32),
            "ws2": 0.3 * jax.random.normal(ks[8], (s_hidden, s_r * s_r), jnp.float32),
            # channel MLP, nn.Linear orientation (out_features, in_features)
            "wf1": 0.3 * jax.random.normal(ks[9], (C // c_reduction, C), jnp.float32),
            "wf2": 0.3 * jax.random.normal(ks[10], (C, C // c_reduction), jnp.float32),
        })
    kp = jax.random.fold_in(key, 10_000)
    kps = jax.random.split(kp, 2)
    return {"blocks": blocks,
            "pred_w": 0.15 * jax.random.normal(kps[0], (C, C, 1, 1), jnp.float32),
            "pred_b": 0.05 * jax.random.normal(kps[1], (C,), jnp.float32)}


# ----------------------------------- main ---------------------------------------

if __name__ == "__main__":
    B, C, H, W = 2, 8, 16, 16        # n_filters = 8
    S_R, N_LAYERS = 4, 2             # s_r = 4, n_layers = 2, s_flag = True

    key = jax.random.PRNGKey(0)
    kx, kp = jax.random.split(key)
    x = jax.random.normal(kx, (B, C, H, W), jnp.float32)
    params = init_params(kp, C, S_R, N_LAYERS)

    fwd = jax.jit(functools.partial(sce_encoder_forward, s_r=S_R))
    out = jax.block_until_ready(fwd(x, params))

    ref = reference_forward(x, params, s_r=S_R)
    if not bool(jnp.allclose(out, ref, atol=1e-3, rtol=1e-3)):
        raise AssertionError("Pallas SCEEncoder output mismatch vs JAX reference")

    print("KERNEL_OK")
</pallas_src>

<mosaic_0001>
module attributes {stable_mosaic.version = 11 : i64} {
  func.func @k(%arg0: memref<8x512xf32, #tpu.memory_space<vmem>>, %arg1: memref<8x512xf32, #tpu.memory_space<vmem>>) attributes {dimension_semantics = [], scalar_prefetch = 0 : i64, scratch_operands = 0 : i64, tpu.core_type = #tpu.core_type<tc>} {
    %c0 = arith.constant 0 : index
    %c0_0 = arith.constant 0 : index
    %0 = vector.load %arg0[%c0, %c0_0] : memref<8x512xf32, #tpu.memory_space<vmem>>, vector<8x512xf32>
    %c497_i32 = arith.constant 497 : i32
    %1 = tpu.dynamic_rotate %0 by %c497_i32 dim 1 : vector<8x512xf32>, i32 -> vector<8x512xf32>
    %c0_1 = arith.constant 0 : index
    %c0_2 = arith.constant 0 : index
    %2 = vector.load %arg1[%c0_1, %c0_2] : memref<8x512xf32, #tpu.memory_space<vmem>>, vector<8x512xf32>
    tpu.vector_store %arg1[%c0_1, %c0_2], %1 {strides = array<i32>} : memref<8x512xf32, #tpu.memory_space<vmem>>, vector<8x512xf32>,
    return
  }
}

module attributes {stable_mosaic.version = 11 : i64} {
  func.func @_fused_encoder_kernel(%arg0: i32, %arg1: memref<8x512xf32, #tpu.memory_space<vmem>>, %arg2: memref<9x512xf32, #tpu.memory_space<vmem>>, %arg3: memref<32x2xf32, #tpu.memory_space<vmem>>, %arg4: memref<2x8x72xf32, #tpu.memory_space<vmem>>, %arg5: memref<2x8x72xf32, #tpu.memory_space<vmem>>, %arg6: memref<2x8x4xf32, #tpu.memory_space<vmem>>, %arg7: memref<2x512x16xf32, #tpu.memory_space<vmem>>, %arg8: memref<2x16x32xf32, #tpu.memory_space<vmem>>, %arg9: memref<2x2x8xf32, #tpu.memory_space<vmem>>, %arg10: memref<2x8x2xf32, #tpu.memory_space<vmem>>, %arg11: memref<8x8xf32, #tpu.memory_space<vmem>>, %arg12: memref<8x1xf32, #tpu.memory_space<vmem>>, %arg13: memref<8x512xf32, #tpu.memory_space<vmem>>, %arg14: memref<72x512xf32, #tpu.memory_space<vmem>>) attributes {dimension_semantics = [#tpu.dimension_semantics<arbitrary>], iteration_bounds = array<i64: 1>, scalar_prefetch = 0 : i64, scratch_operands = 1 : i64, tpu.core_type = #tpu.core_type<tc>, window_params = [{transform_indices = @transform_0, window_bounds = array<i64: 8, 512>}, {pipeline_mode = #tpu.pipeline_mode<synchronous>, transform_indices = @transform_1, window_bounds = array<i64: 9, 512>}, {pipeline_mode = #tpu.pipeline_mode<synchronous>, transform_indices = @transform_2, window_bounds = array<i64: 32, 2>}, {pipeline_mode = #tpu.pipeline_mode<synchronous>, transform_indices = @transform_3, window_bounds = array<i64: 2, 8, 72>}, {pipeline_mode = #tpu.pipeline_mode<synchronous>, transform_indices = @transform_4, window_bounds = array<i64: 2, 8, 72>}, {pipeline_mode = #tpu.pipeline_mode<synchronous>, transform_indices = @transform_5, window_bounds = array<i64: 2, 8, 4>}, {pipeline_mode = #tpu.pipeline_mode<synchronous>, transform_indices = @transform_6, window_bounds = array<i64: 2, 512, 16>}, {pipeline_mode = #tpu.pipeline_mode<synchronous>, transform_indices = @transform_7, window_bounds = array<i64: 2, 16, 32>}, {pipeline_mode = #tpu.pipeline_mode<synchronous>, transform_indices = @transform_8, window_bounds = array<i64: 2, 2, 8>}, {pipeline_mode = #tpu.pipeline_mode<synchronous>, transform_indices = @transform_9, window_bounds = array<i64: 2, 8, 2>}, {pipeline_mode = #tpu.pipeline_mode<synchronous>, transform_indices = @transform_10, window_bounds = array<i64: 8, 8>}, {pipeline_mode = #tpu.pipeline_mode<synchronous>, transform_indices = @transform_11, window_bounds = array<i64: 8, 1>}, {transform_indices = @transform_12, window_bounds = array<i64: 8, 512>}]} {
    %c0 = arith.constant 0 : index
    %c0_0 = arith.constant 0 : index
    %0 = vector.load %arg2[%c0, %c0_0] : memref<9x512xf32, #tpu.memory_space<vmem>>, vector<9x512xf32>
    %1 = vector.extract_strided_slice %0 {offsets = [0, 0], sizes = [1, 512], strides = [1, 1]} : vector<9x512xf32> to vector<1x512xf32>
    %2 = vector.shape_cast %1 : vector<1x512xf32> to vector<1x512xf32>
    %3 = vector.broadcast %2 : vector<1x512xf32> to vector<8x512xf32>
    %4 = vector.extract_strided_slice %0 {offsets = [1, 0], sizes = [1, 512], strides = [1, 1]} : vector<9x512xf32> to vector<1x512xf32>
    %5 = vector.shape_cast %4 : vector<1x512xf32> to vector<1x512xf32>
    %6 = vector.broadcast %5 : vector<1x512xf32> to vector<8x512xf32>
    %7 = vector.extract_strided_slice %0 {offsets = [2, 0], sizes = [1, 512], strides = [1, 1]} : vector<9x512xf32> to vector<1x512xf32>
    %8 = vector.shape_cast %7 : vector<1x512xf32> to vector<1x512xf32>
    %9 = vector.broadcast %8 : vector<1x512xf32> to vector<8x512xf32>
    %10 = vector.extract_strided_slice %0 {offsets = [3, 0], sizes = [1, 512], strides = [1, 1]} : vector<9x512xf32> to vector<1x512xf32>
    %11 = vector.shape_cast %10 : vector<1x512xf32> to vector<1x512xf32>
    %12 = vector.broadcast %11 : vector<1x512xf32> to vector<8x512xf32>
    %13 = vector.extract_strided_slice %0 {offsets = [5, 0], sizes = [1, 512], strides = [1, 1]} : vector<9x512xf32> to vector<1x512xf32>
    %14 = vector.shape_cast %13 : vector<1x512xf32> to vector<1x512xf32>
    %15 = vector.broadcast %14 : vector<1x512xf32> to vector<8x512xf32>
    %16 = vector.extract_strided_slice %0 {offsets = [6, 0], sizes = [1, 512], strides = [1, 1]} : vector<9x512xf32> to vector<1x512xf32>
    %17 = vector.shape_cast %16 : vector<1x512xf32> to vector<1x512xf32>
    %18 = vector.broadcast %17 : vector<1x512xf32> to vector<8x512xf32>
    %19 = vector.extract_strided_slice %0 {offsets = [7, 0], sizes = [1, 512], strides = [1, 1]} : vector<9x512xf32> to vector<1x512xf32>
    %20 = vector.shape_cast %19 : vector<1x512xf32> to vector<1x512xf32>
    %21 = vector.broadcast %20 : vector<1x512xf32> to vector<8x512xf32>
    %22 = vector.extract_strided_slice %0 {offsets = [8, 0], sizes = [1, 512], strides = [1, 1]} : vector<9x512xf32> to vector<1x512xf32>
    %23 = vector.shape_cast %22 : vector<1x512xf32> to vector<1x512xf32>
    %24 = vector.broadcast %23 : vector<1x512xf32> to vector<8x512xf32>
    %c0_1 = arith.constant 0 : index
    %c0_2 = arith.constant 0 : index
    %25 = vector.load %arg3[%c0_1, %c0_2] : memref<32x2xf32, #tpu.memory_space<vmem>>, vector<32x2xf32>
    %c0_3 = arith.constant 0 : index
    %c0_4 = arith.constant 0 : index
    %26 = vector.load %arg1[%c0_3, %c0_4] : memref<8x512xf32, #tpu.memory_space<vmem>>, vector<8x512xf32>
    %c0_5 = arith.constant 0 : index
    %c0_6 = arith.constant 0 : index
    %c0_7 = arith.constant 0 : index
    %27 = vector.load %arg6[%c0_5, %c0_6, %c0_7] : memref<2x8x4xf32, #tpu.memory_space<vmem>>, vector<1x8x4xf32>
    %28 = vector.shape_cast %27 : vector<1x8x4xf32> to vector<8x4xf32>
    %29 = vector.extract_strided_slice %28 {offsets = [0, 0], sizes = [8, 1], strides = [1, 1]} : vector<8x4xf32> to vector<8x1xf32>
    %30 = vector.extract_strided_slice %28 {offsets = [0, 1], sizes = [8, 1], strides = [1, 1]} : vector<8x4xf32> to vector<8x1xf32>
    %31 = vector.extract_strided_slice %28 {offsets = [0, 2], sizes = [8, 1], strides = [1, 1]} : vector<8x4xf32> to vector<8x1xf32>
    %32 = vector.extract_strided_slice %28 {offsets = [0, 3], sizes = [8, 1], strides = [1, 1]} : vector<8x4xf32> to vector<8x1xf32>
    %33 = vector.broadcast %29 : vector<8x1xf32> to vector<8x512xf32>
    %34 = arith.mulf %26, %33 : vector<8x512xf32>
    %35 = vector.broadcast %30 : vector<8x1xf32> to vector<8x512xf32>
    %36 = arith.addf %34, %35 : vector<8x512xf32>
    %c0_8 = arith.constant 0 : index
    %c0_9 = arith.constant 0 : index
    %c0_10 = arith.constant 0 : index
    %37 = vector.load %arg4[%c0_8, %c0_9, %c0_10] : memref<2x8x72xf32, #tpu.memory_space<vmem>>, vector<1x8x72xf32>
    %38 = vector.shape_cast %37 : vector<1x8x72xf32> to vector<8x72xf32>
    %39 = vector.extract_strided_slice %36 {offsets = [0, 495], sizes = [8, 17], strides = [1, 1]} : vector<8x512xf32> to vector<8x17xf32>
    %40 = vector.extract_strided_slice %36 {offsets = [0, 0], sizes = [8, 495], strides = [1, 1]} : vector<8x512xf32> to vector<8x495xf32>
    %41 = tpu.concatenate %39, %40 in 1 : vector<8x17xf32>, vector<8x495xf32> -> vector<8x512xf32>
    %42 = arith.mulf %41, %3 : vector<8x512xf32>
    %c0_11 = arith.constant 0 : index
    %c0_12 = arith.constant 0 : index
    %43 = vector.load %arg14[%c0_11, %c0_12] : memref<72x512xf32, #tpu.memory_space<vmem>>, vector<8x512xf32>
    tpu.vector_store %arg14[%c0_11, %c0_12], %42 {strides = array<i32>} : memref<72x512xf32, #tpu.memory_space<vmem>>, vector<8x512xf32>,
    %44 = vector.extract_strided_slice %36 {offsets = [0, 496], sizes = [8, 16], strides = [1, 1]} : vector<8x512xf32> to vector<8x16xf32>
    %45 = vector.extract_strided_slice %36 {offsets = [0, 0], sizes = [8, 496], strides = [1, 1]} : vector<8x512xf32> to vector<8x496xf32>
    %46 = tpu.concatenate %44, %45 in 1 : vector<8x16xf32>, vector<8x496xf32> -> vector<8x512xf32>
    %47 = arith.mulf %46, %6 : vector<8x512xf32>
    %c8 = arith.constant 8 : index
    %c0_13 = arith.constant 0 : index
    %48 = vector.load %arg14[%c8, %c0_13] : memref<72x512xf32, #tpu.memory_space<vmem>>, vector<8x512xf32>
    tpu.vector_store %arg14[%c8, %c0_13], %47 {strides = array<i32>} : memref<72x512xf32, #tpu.memory_space<vmem>>, vector<8x512xf32>,
    %49 = vector.extract_strided_slice %36 {offsets = [0, 497], sizes = [8, 15], strides = [1, 1]} : vector<8x512xf32> to vector<8x15xf32>
    %50 = vector.extract_strided_slice %36 {offsets = [0, 0], sizes = [8, 497], strides = [1, 1]} : vector<8x512xf32> to vector<8x497xf32>
    %51 = tpu.concatenate %49, %50 in 1 : vector<8x15xf32>, vector<8x497xf32> -> vector<8x512xf32>
    %52 = arith.mulf %51, %9 : vector<8x512xf32>
    %c16 = arith.constant 16 : index
    %c0_14 = arith.constant 0 : index
    %53 = vector.load %arg14[%c16, %c0_14] : memref<72x512xf32, #tpu.memory_space<vmem>>, vector<8x512xf32>
    tpu.vector_store %arg14[%c16, %c0_14], %52 {strides = array<i32>} : memref<72x512xf32, #tpu.memory_space<vmem>>, vector<8x512xf32>,
    %54 = vector.extract_strided_slice %36 {offsets = [0, 511], sizes = [8, 1], strides = [1, 1]} : vector<8x512xf32> to vector<8x1xf32>
    %55 = vector.extract_strided_slice %36 {offsets = [0, 0], sizes = [8, 511], strides = [1, 1]} : vector<8x512xf32> to vector<8x511xf32>
    %56 = tpu.concatenate %54, %55 in 1 : vector<8x1xf32>, vector<8x511xf32> -> vector<8x512xf32>
    %57 = arith.mulf %56, %12 : vector<8x512xf32>
    %c24 = arith.constant 24 : index
    %c0_15 = arith.constant 0 : index
    %58 = vector.load %arg14[%c24, %c0_15] : memref<72x512xf32, #tpu.memory_space<vmem>>, vector<8x512xf32>
    tpu.vector_store %arg14[%c24, %c0_15], %57 {strides = array<i32>} : memref<72x512xf32, #tpu.memory_space<vmem>>, vector<8x512xf32>,
    %c32 = arith.constant 32 : index
    %c0_16 = arith.constant 0 : index
    %59 = vector.load %arg14[%c32, %c0_16] : memref<72x512xf32, #tpu.memory_space<vmem>>, vector<8x512xf32>
    tpu.vector_store %arg14[%c32, %c0_16], %36 {strides = array<i32>} : memref<72x512xf32, #tpu.memory_space<vmem>>, vector<8x512xf32>,
    %60 = vector.extract_strided_slice %36 {offsets = [0, 1], sizes = [8, 511], strides = [1, 1]} : vector<8x512xf32> to vector<8x511xf32>
    %61 = vector.extract_strided_slice %36 {offsets = [0, 0], sizes = [8, 1], strides = [1, 1]} : vector<8x512xf32> to vector<8x1xf32>
    %62 = tpu.concatenate %60, %61 in 1 : vector<8x511xf32>, vector<8x1xf32> -> vector<8x512xf32>
    %63 = arith.mulf %62, %15 : vector<8x512xf32>
    %c40 = arith.constant 40 : index
    %c0_17 = arith.constant 0 : index
    %64 = vector.load %arg14[%c40, %c0_17] : memref<72x512xf32, #tpu.memory_space<vmem>>, vector<8x512xf32>
    tpu.vector_store %arg14[%c40, %c0_17], %63 {strides = array<i32>} : memref<72x512xf32, #tpu.memory_space<vmem>>, vector<8x512xf32>,
    %65 = vector.extract_strided_slice %36 {offsets = [0, 15], sizes = [8, 497], strides = [1, 1]} : vector<8x512xf32> to vector<8x497xf32>
    %66 = vector.extract_strided_slice %36 {offsets = [0, 0], sizes = [8, 15], strides = [1, 1]} : vector<8x512xf32> to vector<8x15xf32>
    %67 = tpu.concatenate %65, %66 in 1 : vector<8x497xf32>, vector<8x15xf32> -> vector<8x512xf32>
    %68 = arith.mulf %67, %18 : vector<8x512xf32>
    %c48 = arith.constant 48 : index
    %c0_18 = arith.constant 0 : index
    %69 = vector.load %arg14[%c48, %c0_18] : memref<72x512xf32, #tpu.memory_space<vmem>>, vector<8x512xf32>
    tpu.vector_store %arg14[%c48, %c0_18], %68 {strides = array<i32>} : memref<72x512xf32, #tpu.memory_space<vmem>>, vector<8x512xf32>,
    %70 = vector.extract_strided_slice %36 {offsets = [0, 16], sizes = [8, 496], strides = [1, 1]} : vector<8x512xf32> to vector<8x496xf32>
    %71 = vector.extract_strided_slice %36 {offsets = [0, 0], sizes = [8, 16], strides = [1, 1]} : vector<8x512xf32> to vector<8x16xf32>
    %72 = tpu.concatenate %70, %71 in 1 : vector<8x496xf32>, vector<8x16xf32> -> vector<8x512xf32>
    %73 = arith.mulf %72, %21 : vector<8x512xf32>
    %c56 = arith.constant 56 : index
    %c0_19 = arith.constant 0 : index
    %74 = vector.load %arg14[%c56, %c0_19] : memref<72x512xf32, #tpu.memory_space<vmem>>, vector<8x512xf32>
    tpu.vector_store %arg14[%c56, %c0_19], %73 {strides = array<i32>} : memref<72x512xf32, #tpu.memory_space<vmem>>, vector<8x512xf32>,
    %75 = vector.extract_strided_slice %36 {offsets = [0, 17], sizes = [8, 495], strides = [1, 1]} : vector<8x512xf32> to vector<8x495xf32>
    %76 = vector.extract_strided_slice %36 {offsets = [0, 0], sizes = [8, 17], strides = [1, 1]} : vector<8x512xf32> to vector<8x17xf32>
    %77 = tpu.concatenate %75, %76 in 1 : vector<8x495xf32>, vector<8x17xf32> -> vector<8x512xf32>
    %78 = arith.mulf %77, %24 : vector<8x512xf32>
    %c64 = arith.constant 64 : index
    %c0_20 = arith.constant 0 : index
    %79 = vector.load %arg14[%c64, %c0_20] : memref<72x512xf32, #tpu.memory_space<vmem>>, vector<8x512xf32>
    tpu.vector_store %arg14[%c64, %c0_20], %78 {strides = array<i32>} : memref<72x512xf32, #tpu.memory_space<vmem>>, vector<8x512xf32>,
    %c0_21 = arith.constant 0 : index
    %c0_22 = arith.constant 0 : index
    %80 = vector.load %arg14[%c0_21, %c0_22] : memref<72x512xf32, #tpu.memory_space<vmem>>, vector<72x512xf32>
    %cst = arith.constant dense<0.000000e+00> : vector<8x512xf32>
    %81 = tpu.matmul %38, %80, %cst {dimension_numbers = #tpu.dot_dimension_numbers<[1], [0], [0], [1], [0, 0, 1, 1], [], []>} : vector<8x72xf32>, vector<72x512xf32>, vector<8x512xf32> -> vector<8x512xf32>
    %82 = vector.broadcast %31 : vector<8x1xf32> to vector<8x512xf32>
    %83 = arith.addf %81, %82 : vector<8x512xf32>
    %cst_23 = arith.constant 0.000000e+00 : f32
    %84 = vector.broadcast %cst_23 : f32 to vector<8x512xf32>
    %85 = arith.maximumf %83, %84 : vector<8x512xf32>
    %c0_24 = arith.constant 0 : index
    %c0_25 = arith.constant 0 : index
    %c0_26 = arith.constant 0 : index
    %86 = vector.load %arg5[%c0_24, %c0_25, %c0_26] : memref<2x8x72xf32, #tpu.memory_space<vmem>>, vector<1x8x72xf32>
    %87 = vector.shape_cast %86 : vector<1x8x72xf32> to vector<8x72xf32>
    %88 = vector.extract_strided_slice %85 {offsets = [0, 495], sizes = [8, 17], strides = [1, 1]} : vector<8x512xf32> to vector<8x17xf32>
    %89 = vector.extract_strided_slice %85 {offsets = [0, 0], sizes = [8, 495], strides = [1, 1]} : vector<8x512xf32> to vector<8x495xf32>
    %90 = tpu.concatenate %88, %89 in 1 : vector<8x17xf32>, vector<8x495xf32> -> vector<8x512xf32>
    %91 = arith.mulf %90, %3 : vector<8x512xf32>
    %c0_27 = arith.constant 0 : index
    %c0_28 = arith.constant 0 : index
    %92 = vector.load %arg14[%c0_27, %c0_28] : memref<72x512xf32, #tpu.memory_space<vmem>>, vector<8x512xf32>
    tpu.vector_store %arg14[%c0_27, %c0_28], %91 {strides = array<i32>} : memref<72x512xf32, #tpu.memory_space<vmem>>, vector<8x512xf32>,
    %93 = vector.extract_strided_slice %85 {offsets = [0, 496], sizes = [8, 16], strides = [1, 1]} : vector<8x512xf32> to vector<8x16xf32>
    %94 = vector.extract_strided_slice %85 {offsets = [0, 0], sizes = [8, 496], strides = [1, 1]} : vector<8x512xf32> to vector<8x496xf32>
    %95 = tpu.concatenate %93, %94 in 1 : vector<8x16xf32>, vector<8x496xf32> -> vector<8x512xf32>
    %96 = arith.mulf %95, %6 : vector<8x512xf32>
    %c8_29 = arith.constant 8 : index
    %c0_30 = arith.constant 0 : index
    %97 = vector.load %arg14[%c8_29, %c0_30] : memref<72x512xf32, #tpu.memory_space<vmem>>, vector<8x512xf32>
    tpu.vector_store %arg14[%c8_29, %c0_30], %96 {strides = array<i32>} : memref<72x512xf32, #tpu.memory_space<vmem>>, vector<8x512xf32>,
    %98 = vector.extract_strided_slice %85 {offsets = [0, 497], sizes = [8, 15], strides = [1, 1]} : vector<8x512xf32> to vector<8x15xf32>
    %99 = vector.extract_strided_slice %85 {offsets = [0, 0], sizes = [8, 497], strides = [1, 1]} : vector<8x512xf32> to vector<8x497xf32>
    %100 = tpu.concatenate %98, %99 in 1 : vector<8x15xf32>, vector<8x497xf32> -> vector<8x512xf32>
    %101 = arith.mulf %100, %9 : vector<8x512xf32>
    %c16_31 = arith.constant 16 : index
    %c0_32 = arith.constant 0 : index
    %102 = vector.load %arg14[%c16_31, %c0_32] : memref<72x512xf32, #tpu.memory_space<vmem>>, vector<8x512xf32>
    tpu.vector_store %arg14[%c16_31, %c0_32], %101 {strides = array<i32>} : memref<72x512xf32, #tpu.memory_space<vmem>>, vector<8x512xf32>,
    %103 = vector.extract_strided_slice %85 {offsets = [0, 511], sizes = [8, 1], strides = [1, 1]} : vector<8x512xf32> to vector<8x1xf32>
    %104 = vector.extract_strided_slice %85 {offsets = [0, 0], sizes = [8, 511], strides = [1, 1]} : vector<8x512xf32> to vector<8x511xf32>
    %105 = tpu.concatenate %103, %104 in 1 : vector<8x1xf32>, vector<8x511xf32> -> vector<8x512xf32>
    %106 = arith.mulf %105, %12 : vector<8x512xf32>
    %c24_33 = arith.constant 24 : index
    %c0_34 = arith.constant 0 : index
    %107 = vector.load %arg14[%c24_33, %c0_34] : memref<72x512xf32, #tpu.memory_space<vmem>>, vector<8x512xf32>
    tpu.vector_store %arg14[%c24_33, %c0_34], %106 {strides = array<i32>} : memref<72x512xf32, #tpu.memory_space<vmem>>, vector<8x512xf32>,
    %c32_35 = arith.constant 32 : index
    %c0_36 = arith.constant 0 : index
    %108 = vector.load %arg14[%c32_35, %c0_36] : memref<72x512xf32, #tpu.memory_space<vmem>>, vector<8x512xf32>
    tpu.vector_store %arg14[%c32_35, %c0_36], %85 {strides = array<i32>} : memref<72x512xf32, #tpu.memory_space<vmem>>, vector<8x512xf32>,
    %109 = vector.extract_strided_slice %85 {offsets = [0, 1], sizes = [8, 511], strides = [1, 1]} : vector<8x512xf32> to vector<8x511xf32>
    %110 = vector.extract_strided_slice %85 {offsets = [0, 0], sizes = [8, 1], strides = [1, 1]} : vector<8x512xf32> to vector<8x1xf32>
    %111 = tpu.concatenate %109, %110 in 1 : vector<8x511xf32>, vector<8x1xf32> -> vector<8x512xf32>
    %112 = arith.mulf %111, %15 : vector<8x512xf32>
    %c40_37 = arith.constant 40 : index
    %c0_38 = arith.constant 0 : index
    %113 = vector.load %arg14[%c40_37, %c0_38] : memref<72x512xf32, #tpu.memory_space<vmem>>, vector<8x512xf32>
    tpu.vector_store %arg14[%c40_37, %c0_38], %112 {strides = array<i32>} : memref<72x512xf32, #tpu.memory_space<vmem>>, vector<8x512xf32>,
    %114 = vector.extract_strided_slice %85 {offsets = [0, 15], sizes = [8, 497], strides = [1, 1]} : vector<8x512xf32> to vector<8x497xf32>
    %115 = vector.extract_strided_slice %85 {offsets = [0, 0], sizes = [8, 15], strides = [1, 1]} : vector<8x512xf32> to vector<8x15xf32>
    %116 = tpu.concatenate %114, %115 in 1 : vector<8x497xf32>, vector<8x15xf32> -> vector<8x512xf32>
    %117 = arith.mulf %116, %18 : vector<8x512xf32>
    %c48_39 = arith.constant 48 : index
    %c0_40 = arith.constant 0 : index
    %118 = vector.load %arg14[%c48_39, %c0_40] : memref<72x512xf32, #tpu.memory_space<vmem>>, vector<8x512xf32>
    tpu.vector_store %arg14[%c48_39, %c0_40], %117 {strides = array<i32>} : memref<72x512xf32, #tpu.memory_space<vmem>>, vector<8x512xf32>,
    %119 = vector.extract_strided_slice %85 {offsets = [0, 16], sizes = [8, 496], strides = [1, 1]} : vector<8x512xf32> to vector<8x496xf32>
    %120 = vector.extract_strided_slice %85 {offsets = [0, 0], sizes = [8, 16], strides = [1, 1]} : vector<8x512xf32> to vector<8x16xf32>
    %121 = tpu.concatenate %119, %120 in 1 : vector<8x496xf32>, vector<8x16xf32> -> vector<8x512xf32>
    %122 = arith.mulf %121, %21 : vector<8x512xf32>
    %c56_41 = arith.constant 56 : index
    %c0_42 = arith.constant 0 : index
    %123 = vector.load %arg14[%c56_41, %c0_42] : memref<72x512xf32, #tpu.memory_space<vmem>>, vector<8x512xf32>
    tpu.vector_store %arg14[%c56_41, %c0_42], %122 {strides = array<i32>} : memref<72x512xf32, #tpu.memory_space<vmem>>, vector<8x512xf32>,
    %124 = vector.extract_strided_slice %85 {offsets = [0, 17], sizes = [8, 495], strides = [1, 1]} : vector<8x512xf32> to vector<8x495xf32>
    %125 = vector.extract_strided_slice %85 {offsets = [0, 0], sizes = [8, 17], strides = [1, 1]} : vector<8x512xf32> to vector<8x17xf32>
    %126 = tpu.concatenate %124, %125 in 1 : vector<8x495xf32>, vector<8x17xf32> -> vector<8x512xf32>
    %127 = arith.mulf %126, %24 : vector<8x512xf32>
    %c64_43 = arith.constant 64 : index
    %c0_44 = arith.constant 0 : index
    %128 = vector.load %arg14[%c64_43, %c0_44] : memref<72x512xf32, #tpu.memory_space<vmem>>, vector<8x512xf32>
    tpu.vector_store %arg14[%c64_43, %c0_44], %127 {strides = array<i32>} : memref<72x512xf32, #tpu.memory_space<vmem>>, vector<8x512xf32>,
    %c0_45 = arith.constant 0 : index
    %c0_46 = arith.constant 0 : index
    %129 = vector.load %arg14[%c0_45, %c0_46] : memref<72x512xf32, #tpu.memory_space<vmem>>, vector<72x512xf32>
    %cst_47 = arith.constant dense<0.000000e+00> : vector<8x512xf32>
    %130 = tpu.matmul %87, %129, %cst_47 {dimension_numbers = #tpu.dot_dimension_numbers<[1], [0], [0], [1], [0, 0, 1, 1], [], []>} : vector<8x72xf32>, vector<72x512xf32>, vector<8x512xf32> -> vector<8x512xf32>
    %131 = vector.broadcast %32 : vector<8x1xf32> to vector<8x512xf32>
    %132 = arith.addf %130, %131 : vector<8x512xf32>
    %133 = vector.extract_strided_slice %132 {offsets = [0, 1], sizes = [8, 511], strides = [1, 1]} : vector<8x512xf32> to vector<8x511xf32>
    %134 = vector.extract_strided_slice %132 {offsets = [0, 0], sizes = [8, 1], strides = [1, 1]} : vector<8x512xf32> to vector<8x1xf32>
    %135 = tpu.concatenate %133, %134 in 1 : vector<8x511xf32>, vector<8x1xf32> -> vector<8x512xf32>
    %136 = arith.maximumf %132, %135 : vector<8x512xf32>
    %137 = vector.extract_strided_slice %136 {offsets = [0, 2], sizes = [8, 510], strides = [1, 1]} : vector<8x512xf32> to vector<8x510xf32>
    %138 = vector.extract_strided_slice %136 {offsets = [0, 0], sizes = [8, 2], strides = [1, 1]} : vector<8x512xf32> to vector<8x2xf32>
    %139 = tpu.concatenate %137, %138 in 1 : vector<8x510xf32>, vector<8x2xf32> -> vector<8x512xf32>
    %140 = arith.maximumf %136, %139 : vector<8x512xf32>
    %141 = vector.extract_strided_slice %140 {offsets = [0, 16], sizes = [8, 496], strides = [1, 1]} : vector<8x512xf32> to vector<8x496xf32>
    %142 = vector.extract_strided_slice %140 {offsets = [0, 0], sizes = [8, 16], strides = [1, 1]} : vector<8x512xf32> to vector<8x16xf32>
    %143 = tpu.concatenate %141, %142 in 1 : vector<8x496xf32>, vector<8x16xf32> -> vector<8x512xf32>
    %144 = arith.maximumf %140, %143 : vector<8x512xf32>
    %145 = vector.extract_strided_slice %144 {offsets = [0, 32], sizes = [8, 480], strides = [1, 1]} : vector<8x512xf32> to vector<8x480xf32>
    %146 = vector.extract_strided_slice %144 {offsets = [0, 0], sizes = [8, 32], strides = [1, 1]} : vector<8x512xf32> to vector<8x32xf32>
    %147 = tpu.concatenate %145, %146 in 1 : vector<8x480xf32>, vector<8x32xf32> -> vector<8x512xf32>
    %148 = arith.maximumf %144, %147 : vector<8x512xf32>
    %c0_48 = arith.constant 0 : index
    %c0_49 = arith.constant 0 : index
    %c0_50 = arith.constant 0 : index
    %149 = vector.load %arg7[%c0_48, %c0_49, %c0_50] : memref<2x512x16xf32, #tpu.memory_space<vmem>>, vector<1x512x16xf32>
    %150 = vector.shape_cast %149 : vector<1x512x16xf32> to vector<512x16xf32>
    %cst_51 = arith.constant dense<0.000000e+00> : vector<8x16xf32>
    %151 = tpu.matmul %148, %150, %cst_51 {dimension_numbers = #tpu.dot_dimension_numbers<[1], [0], [0], [1], [0, 0, 1, 1], [], []>} : vector<8x512xf32>, vector<512x16xf32>, vector<8x16xf32> -> vector<8x16xf32>
    %cst_52 = arith.constant 0.000000e+00 : f32
    %152 = vector.broadcast %cst_52 : f32 to vector<8x16xf32>
    %153 = arith.maximumf %151, %152 : vector<8x16xf32>
    %c0_53 = arith.constant 0 : index
    %c0_54 = arith.constant 0 : index
    %c0_55 = arith.constant 0 : index
    %154 = vector.load %arg8[%c0_53, %c0_54, %c0_55] : memref<2x16x32xf32, #tpu.memory_space<vmem>>, vector<1x16x32xf32>
    %155 = vector.shape_cast %154 : vector<1x16x32xf32> to vector<16x32xf32>
    %cst_56 = arith.constant dense<0.000000e+00> : vector<8x32xf32>
    %156 = tpu.matmul %153, %155, %cst_56 {dimension_numbers = #tpu.dot_dimension_numbers<[1], [0], [0], [1], [0, 0, 1, 1], [], []>} : vector<8x16xf32>, vector<16x32xf32>, vector<8x32xf32> -> vector<8x32xf32>
    %157 = arith.negf %156 : vector<8x32xf32>
    %158 = math.exp %157 : vector<8x32xf32>
    %cst_57 = arith.constant 1.000000e+00 : f32
    %159 = vector.broadcast %cst_57 : f32 to vector<8x32xf32>
    %160 = arith.addf %159, %158 : vector<8x32xf32>
    %161 = arith.divf %159, %160 : vector<8x32xf32>
    %cst_58 = arith.constant dense<0.000000e+00> : vector<8x2xf32>
    %162 = tpu.matmul %161, %25, %cst_58 {dimension_numbers = #tpu.dot_dimension_numbers<[1], [0], [0], [1], [0, 0, 1, 1], [], []>} : vector<8x32xf32>, vector<32x2xf32>, vector<8x2xf32> -> vector<8x2xf32>
    %c0_59 = arith.constant 0 : index
    %c0_60 = arith.constant 0 : index
    %c0_61 = arith.constant 0 : index
    %163 = vector.load %arg9[%c0_59, %c0_60, %c0_61] : memref<2x2x8xf32, #tpu.memory_space<vmem>>, vector<1x2x8xf32>
    %164 = vector.shape_cast %163 : vector<1x2x8xf32> to vector<2x8xf32>
    %cst_62 = arith.constant dense<0.000000e+00> : vector<2x2xf32>
    %165 = tpu.matmul %164, %162, %cst_62 {dimension_numbers = #tpu.dot_dimension_numbers<[1], [0], [0], [1], [0, 0, 1, 1], [], []>} : vector<2x8xf32>, vector<8x2xf32>, vector<2x2xf32> -> vector<2x2xf32>
    %cst_63 = arith.constant 0.000000e+00 : f32
    %166 = vector.broadcast %cst_63 : f32 to vector<2x2xf32>
    %167 = arith.maximumf %165, %166 : vector<2x2xf32>
    %c0_64 = arith.constant 0 : index
    %c0_65 = arith.constant 0 : index
    %c0_66 = arith.constant 0 : index
    %168 = vector.load %arg10[%c0_64, %c0_65, %c0_66] : memref<2x8x2xf32, #tpu.memory_space<vmem>>, vector<1x8x2xf32>
    %169 = vector.shape_cast %168 : vector<1x8x2xf32> to vector<8x2xf32>
    %cst_67 = arith.constant dense<0.000000e+00> : vector<8x2xf32>
    %170 = tpu.matmul %169, %167, %cst_67 {dimension_numbers = #tpu.dot_dimension_numbers<[1], [0], [0], [1], [0, 0, 1, 1], [], []>} : vector<8x2xf32>, vector<2x2xf32>, vector<8x2xf32> -> vector<8x2xf32>
    %171 = arith.negf %170 : vector<8x2xf32>
    %172 = math.exp %171 : vector<8x2xf32>
    %cst_68 = arith.constant 1.000000e+00 : f32
    %173 = vector.broadcast %cst_68 : f32 to vector<8x2xf32>
    %174 = arith.addf %173, %172 : vector<8x2xf32>
    %175 = arith.divf %173, %174 : vector<8x2xf32>
    %176 = vector.extract_strided_slice %132 {offsets = [0, 0], sizes = [8, 256], strides = [1, 1]} : vector<8x512xf32> to vector<8x256xf32>
    %177 = vector.extract_strided_slice %175 {offsets = [0, 0], sizes = [8, 1], strides = [1, 1]} : vector<8x2xf32> to vector<8x1xf32>
    %178 = vector.broadcast %177 : vector<8x1xf32> to vector<8x256xf32>
    %179 = arith.mulf %176, %178 : vector<8x256xf32>
    %180 = vector.extract_strided_slice %26 {offsets = [0, 0], sizes = [8, 256], strides = [1, 1]} : vector<8x512xf32> to vector<8x256xf32>
    %181 = math.tanh %179 : vector<8x256xf32>
    %182 = arith.mulf %179, %181 : vector<8x256xf32>
    %183 = arith.addf %180, %182 : vector<8x256xf32>
    %184 = vector.extract_strided_slice %132 {offsets = [0, 256], sizes = [8, 256], strides = [1, 1]} : vector<8x512xf32> to vector<8x256xf32>
    %185 = vector.extract_strided_slice %175 {offsets = [0, 1], sizes = [8, 1], strides = [1, 1]} : vector<8x2xf32> to vector<8x1xf32>
    %186 = vector.broadcast %185 : vector<8x1xf32> to vector<8x256xf32>
    %187 = arith.mulf %184, %186 : vector<8x256xf32>
    %188 = vector.extract_strided_slice %26 {offsets = [0, 256], sizes = [8, 256], strides = [1, 1]} : vector<8x512xf32> to vector<8x256xf32>
    %189 = math.tanh %187 : vector<8x256xf32>
    %190 = arith.mulf %187, %189 : vector<8x256xf32>
    %191 = arith.addf %188, %190 : vector<8x256xf32>
    %192 = tpu.concatenate %183, %191 in 1 : vector<8x256xf32>, vector<8x256xf32> -> vector<8x512xf32>
    %c1 = arith.constant 1 : index
    %c0_69 = arith.constant 0 : index
    %c0_70 = arith.constant 0 : index
    %193 = vector.load %arg6[%c1, %c0_69, %c0_70] : memref<2x8x4xf32, #tpu.memory_space<vmem>>, vector<1x8x4xf32>
    %194 = vector.shape_cast %193 : vector<1x8x4xf32> to vector<8x4xf32>
    %195 = vector.extract_strided_slice %194 {offsets = [0, 0], sizes = [8, 1], strides = [1, 1]} : vector<8x4xf32> to vector<8x1xf32>
    %196 = vector.extract_strided_slice %194 {offsets = [0, 1], sizes = [8, 1], strides = [1, 1]} : vector<8x4xf32> to vector<8x1xf32>
    %197 = vector.extract_strided_slice %194 {offsets = [0, 2], sizes = [8, 1], strides = [1, 1]} : vector<8x4xf32> to vector<8x1xf32>
    %198 = vector.extract_strided_slice %194 {offsets = [0, 3], sizes = [8, 1], strides = [1, 1]} : vector<8x4xf32> to vector<8x1xf32>
    %199 = vector.broadcast %195 : vector<8x1xf32> to vector<8x512xf32>
    %200 = arith.mulf %192, %199 : vector<8x512xf32>
    %201 = vector.broadcast %196 : vector<8x1xf32> to vector<8x512xf32>
    %202 = arith.addf %200, %201 : vector<8x512xf32>
    %c1_71 = arith.constant 1 : index
    %c0_72 = arith.constant 0 : index
    %c0_73 = arith.constant 0 : index
    %203 = vector.load %arg4[%c1_71, %c0_72, %c0_73] : memref<2x8x72xf32, #tpu.memory_space<vmem>>, vector<1x8x72xf32>
    %204 = vector.shape_cast %203 : vector<1x8x72xf32> to vector<8x72xf32>
    %205 = vector.extract_strided_slice %202 {offsets = [0, 495], sizes = [8, 17], strides = [1, 1]} : vector<8x512xf32> to vector<8x17xf32>
    %206 = vector.extract_strided_slice %202 {offsets = [0, 0], sizes = [8, 495], strides = [1, 1]} : vector<8x512xf32> to vector<8x495xf32>
    %207 = tpu.concatenate %205, %206 in 1 : vector<8x17xf32>, vector<8x495xf32> -> vector<8x512xf32>
    %208 = arith.mulf %207, %3 : vector<8x512xf32>
    %c0_74 = arith.constant 0 : index
    %c0_75 = arith.constant 0 : index
    %209 = vector.load %arg14[%c0_74, %c0_75] : memref<72x512xf32, #tpu.memory_space<vmem>>, vector<8x512xf32>
    tpu.vector_store %arg14[%c0_74, %c0_75], %208 {strides = array<i32>} : memref<72x512xf32, #tpu.memory_space<vmem>>, vector<8x512xf32>,
    %210 = vector.extract_strided_slice %202 {offsets = [0, 496], sizes = [8, 16], strides = [1, 1]} : vector<8x512xf32> to vector<8x16xf32>
    %211 = vector.extract_strided_slice %202 {offsets = [0, 0], sizes = [8, 496], strides = [1, 1]} : vector<8x512xf32> to vector<8x496xf32>
    %212 = tpu.concatenate %210, %211 in 1 : vector<8x16xf32>, vector<8x496xf32> -> vector<8x512xf32>
    %213 = arith.mulf %212, %6 : vector<8x512xf32>
    %c8_76 = arith.constant 8 : index
    %c0_77 = arith.constant 0 : index
    %214 = vector.load %arg14[%c8_76, %c0_77] : memref<72x512xf32, #tpu.memory_space<vmem>>, vector<8x512xf32>
    tpu.vector_store %arg14[%c8_76, %c0_77], %213 {strides = array<i32>} : memref<72x512xf32, #tpu.memory_space<vmem>>, vector<8x512xf32>,
    %215 = vector.extract_strided_slice %202 {offsets = [0, 497], sizes = [8, 15], strides = [1, 1]} : vector<8x512xf32> to vector<8x15xf32>
    %216 = vector.extract_strided_slice %202 {offsets = [0, 0], sizes = [8, 497], strides = [1, 1]} : vector<8x512xf32> to vector<8x497xf32>
    %217 = tpu.concatenate %215, %216 in 1 : vector<8x15xf32>, vector<8x497xf32> -> vector<8x512xf32>
    %218 = arith.mulf %217, %9 : vector<8x512xf32>
    %c16_78 = arith.constant 16 : index
    %c0_79 = arith.constant 0 : index
    %219 = vector.load %arg14[%c16_78, %c0_79] : memref<72x512xf32, #tpu.memory_space<vmem>>, vector<8x512xf32>
    tpu.vector_store %arg14[%c16_78, %c0_79], %218 {strides = array<i32>} : memref<72x512xf32, #tpu.memory_space<vmem>>, vector<8x512xf32>,
    %220 = vector.extract_strided_slice %202 {offsets = [0, 511], sizes = [8, 1], strides = [1, 1]} : vector<8x512xf32> to vector<8x1xf32>
    %221 = vector.extract_strided_slice %202 {offsets = [0, 0], sizes = [8, 511], strides = [1, 1]} : vector<8x512xf32> to vector<8x511xf32>
    %222 = tpu.concatenate %220, %221 in 1 : vector<8x1xf32>, vector<8x511xf32> -> vector<8x512xf32>
    %223 = arith.mulf %222, %12 : vector<8x512xf32>
    %c24_80 = arith.constant 24 : index
    %c0_81 = arith.constant 0 : index
    %224 = vector.load %arg14[%c24_80, %c0_81] : memref<72x512xf32, #tpu.memory_space<vmem>>, vector<8x512xf32>
    tpu.vector_store %arg14[%c24_80, %c0_81], %223 {strides = array<i32>} : memref<72x512xf32, #tpu.memory_space<vmem>>, vector<8x512xf32>,
    %c32_82 = arith.constant 32 : index
    %c0_83 = arith.constant 0 : index
    %225 = vector.load %arg14[%c32_82, %c0_83] : memref<72x512xf32, #tpu.memory_space<vmem>>, vector<8x512xf32>
    tpu.vector_store %arg14[%c32_82, %c0_83], %202 {strides = array<i32>} : memref<72x512xf32, #tpu.memory_space<vmem>>, vector<8x512xf32>,
    %226 = vector.extract_strided_slice %202 {offsets = [0, 1], sizes = [8, 511], strides = [1, 1]} : vector<8x512xf32> to vector<8x511xf32>
    %227 = vector.extract_strided_slice %202 {offsets = [0, 0], sizes = [8, 1], strides = [1, 1]} : vector<8x512xf32> to vector<8x1xf32>
    %228 = tpu.concatenate %226, %227 in 1 : vector<8x511xf32>, vector<8x1xf32> -> vector<8x512xf32>
    %229 = arith.mulf %228, %15 : vector<8x512xf32>
    %c40_84 = arith.constant 40 : index
    %c0_85 = arith.constant 0 : index
    %230 = vector.load %arg14[%c40_84, %c0_85] : memref<72x512xf32, #tpu.memory_space<vmem>>, vector<8x512xf32>
    tpu.vector_store %arg14[%c40_84, %c0_85], %229 {strides = array<i32>} : memref<72x512xf32, #tpu.memory_space<vmem>>, vector<8x512xf32>,
    %231 = vector.extract_strided_slice %202 {offsets = [0, 15], sizes = [8, 497], strides = [1, 1]} : vector<8x512xf32> to vector<8x497xf32>
    %232 = vector.extract_strided_slice %202 {offsets = [0, 0], sizes = [8, 15], strides = [1, 1]} : vector<8x512xf32> to vector<8x15xf32>
    %233 = tpu.concatenate %231, %232 in 1 : vector<8x497xf32>, vector<8x15xf32> -> vector<8x512xf32>
    %234 = arith.mulf %233, %18 : vector<8x512xf32>
    %c48_86 = arith.constant 48 : index
    %c0_87 = arith.constant 0 : index
    %235 = vector.load %arg14[%c48_86, %c0_87] : memref<72x512xf32, #tpu.memory_space<vmem>>, vector<8x512xf32>
    tpu.vector_store %arg14[%c48_86, %c0_87], %234 {strides = array<i32>} : memref<72x512xf32, #tpu.memory_space<vmem>>, vector<8x512xf32>,
    %236 = vector.extract_strided_slice %202 {offsets = [0, 16], sizes = [8, 496], strides = [1, 1]} : vector<8x512xf32> to vector<8x496xf32>
    %237 = vector.extract_strided_slice %202 {offsets = [0, 0], sizes = [8, 16], strides = [1, 1]} : vector<8x512xf32> to vector<8x16xf32>
    %238 = tpu.concatenate %236, %237 in 1 : vector<8x496xf32>, vector<8x16xf32> -> vector<8x512xf32>
    %239 = arith.mulf %238, %21 : vector<8x512xf32>
    %c56_88 = arith.constant 56 : index
    %c0_89 = arith.constant 0 : index
    %240 = vector.load %arg14[%c56_88, %c0_89] : memref<72x512xf32, #tpu.memory_space<vmem>>, vector<8x512xf32>
    tpu.vector_store %arg14[%c56_88, %c0_89], %239 {strides = array<i32>} : memref<72x512xf32, #tpu.memory_space<vmem>>, vector<8x512xf32>,
    %241 = vector.extract_strided_slice %202 {offsets = [0, 17], sizes = [8, 495], strides = [1, 1]} : vector<8x512xf32> to vector<8x495xf32>
    %242 = vector.extract_strided_slice %202 {offsets = [0, 0], sizes = [8, 17], strides = [1, 1]} : vector<8x512xf32> to vector<8x17xf32>
    %243 = tpu.concatenate %241, %242 in 1 : vector<8x495xf32>, vector<8x17xf32> -> vector<8x512xf32>
    %244 = arith.mulf %243, %24 : vector<8x512xf32>
    %c64_90 = arith.constant 64 : index
    %c0_91 = arith.constant 0 : index
    %245 = vector.load %arg14[%c64_90, %c0_91] : memref<72x512xf32, #tpu.memory_space<vmem>>, vector<8x512xf32>
    tpu.vector_store %arg14[%c64_90, %c0_91], %244 {strides = array<i32>} : memref<72x512xf32, #tpu.memory_space<vmem>>, vector<8x512xf32>,
    %c0_92 = arith.constant 0 : index
    %c0_93 = arith.constant 0 : index
    %246 = vector.load %arg14[%c0_92, %c0_93] : memref<72x512xf32, #tpu.memory_space<vmem>>, vector<72x512xf32>
    %cst_94 = arith.constant dense<0.000000e+00> : vector<8x512xf32>
    %247 = tpu.matmul %204, %246, %cst_94 {dimension_numbers = #tpu.dot_dimension_numbers<[1], [0], [0], [1], [0, 0, 1, 1], [], []>} : vector<8x72xf32>, vector<72x512xf32>, vector<8x512xf32> -> vector<8x512xf32>
    %248 = vector.broadcast %197 : vector<8x1xf32> to vector<8x512xf32>
    %249 = arith.addf %247, %248 : vector<8x512xf32>
    %cst_95 = arith.constant 0.000000e+00 : f32
    %250 = vector.broadcast %cst_95 : f32 to vector<8x512xf32>
    %251 = arith.maximumf %249, %250 : vector<8x512xf32>
    %c1_96 = arith.constant 1 : index
    %c0_97 = arith.constant 0 : index
    %c0_98 = arith.constant 0 : index
    %252 = vector.load %arg5[%c1_96, %c0_97, %c0_98] : memref<2x8x72xf32, #tpu.memory_space<vmem>>, vector<1x8x72xf32>
    %253 = vector.shape_cast %252 : vector<1x8x72xf32> to vector<8x72xf32>
    %254 = vector.extract_strided_slice %251 {offsets = [0, 495], sizes = [8, 17], strides = [1, 1]} : vector<8x512xf32> to vector<8x17xf32>
    %255 = vector.extract_strided_slice %251 {offsets = [0, 0], sizes = [8, 495], strides = [1, 1]} : vector<8x512xf32> to vector<8x495xf32>
    %256 = tpu.concatenate %254, %255 in 1 : vector<8x17xf32>, vector<8x495xf32> -> vector<8x512xf32>
    %257 = arith.mulf %256, %3 : vector<8x512xf32>
    %c0_99 = arith.constant 0 : index
    %c0_100 = arith.constant 0 : index
    %258 = vector.load %arg14[%c0_99, %c0_100] : memref<72x512xf32, #tpu.memory_space<vmem>>, vector<8x512xf32>
    tpu.vector_store %arg14[%c0_99, %c0_100], %257 {strides = array<i32>} : memref<72x512xf32, #tpu.memory_space<vmem>>, vector<8x512xf32>,
    %259 = vector.extract_strided_slice %251 {offsets = [0, 496], sizes = [8, 16], strides = [1, 1]} : vector<8x512xf32> to vector<8x16xf32>
    %260 = vector.extract_strided_slice %251 {offsets = [0, 0], sizes = [8, 496], strides = [1, 1]} : vector<8x512xf32> to vector<8x496xf32>
    %261 = tpu.concatenate %259, %260 in 1 : vector<8x16xf32>, vector<8x496xf32> -> vector<8x512xf32>
    %262 = arith.mulf %261, %6 : vector<8x512xf32>
    %c8_101 = arith.constant 8 : index
    %c0_102 = arith.constant 0 : index
    %263 = vector.load %arg14[%c8_101, %c0_102] : memref<72x512xf32, #tpu.memory_space<vmem>>, vector<8x512xf32>
    tpu.vector_store %arg14[%c8_101, %c0_102], %262 {strides = array<i32>} : memref<72x512xf32, #tpu.memory_space<vmem>>, vector<8x512xf32>,
    %264 = vector.extract_strided_slice %251 {offsets = [0, 497], sizes = [8, 15], strides = [1, 1]} : vector<8x512xf32> to vector<8x15xf32>
    %265 = vector.extract_strided_slice %251 {offsets = [0, 0], sizes = [8, 497], strides = [1, 1]} : vector<8x512xf32> to vector<8x497xf32>
    %266 = tpu.concatenate %264, %265 in 1 : vector<8x15xf32>, vector<8x497xf32> -> vector<8x512xf32>
    %267 = arith.mulf %266, %9 : vector<8x512xf32>
    %c16_103 = arith.constant 16 : index
    %c0_104 = arith.constant 0 : index
    %268 = vector.load %arg14[%c16_103, %c0_104] : memref<72x512xf32, #tpu.memory_space<vmem>>, vector<8x512xf32>
    tpu.vector_store %arg14[%c16_103, %c0_104], %267 {strides = array<i32>} : memref<72x512xf32, #tpu.memory_space<vmem>>, vector<8x512xf32>,
    %269 = vector.extract_strided_slice %251 {offsets = [0, 511], sizes = [8, 1], strides = [1, 1]} : vector<8x512xf32> to vector<8x1xf32>
    %270 = vector.extract_strided_slice %251 {offsets = [0, 0], sizes = [8, 511], strides = [1, 1]} : vector<8x512xf32> to vector<8x511xf32>
    %271 = tpu.concatenate %269, %270 in 1 : vector<8x1xf32>, vector<8x511xf32> -> vector<8x512xf32>
    %272 = arith.mulf %271, %12 : vector<8x512xf32>
    %c24_105 = arith.constant 24 : index
    %c0_106 = arith.constant 0 : index
    %273 = vector.load %arg14[%c24_105, %c0_106] : memref<72x512xf32, #tpu.memory_space<vmem>>, vector<8x512xf32>
    tpu.vector_store %arg14[%c24_105, %c0_106], %272 {strides = array<i32>} : memref<72x512xf32, #tpu.memory_space<vmem>>, vector<8x512xf32>,
    %c32_107 = arith.constant 32 : index
    %c0_108 = arith.constant 0 : index
    %274 = vector.load %arg14[%c32_107, %c0_108] : memref<72x512xf32, #tpu.memory_space<vmem>>, vector<8x512xf32>
    tpu.vector_store %arg14[%c32_107, %c0_108], %251 {strides = array<i32>} : memref<72x512xf32, #tpu.memory_space<vmem>>, vector<8x512xf32>,
    %275 = vector.extract_strided_slice %251 {offsets = [0, 1], sizes = [8, 511], strides = [1, 1]} : vector<8x512xf32> to vector<8x511xf32>
    %276 = vector.extract_strided_slice %251 {offsets = [0, 0], sizes = [8, 1], strides = [1, 1]} : vector<8x512xf32> to vector<8x1xf32>
    %277 = tpu.concatenate %275, %276 in 1 : vector<8x511xf32>, vector<8x1xf32> -> vector<8x512xf32>
    %278 = arith.mulf %277, %15 : vector<8x512xf32>
    %c40_109 = arith.constant 40 : index
    %c0_110 = arith.constant 0 : index
    %279 = vector.load %arg14[%c40_109, %c0_110] : memref<72x512xf32, #tpu.memory_space<vmem>>, vector<8x512xf32>
    tpu.vector_store %arg14[%c40_109, %c0_110], %278 {strides = array<i32>} : memref<72x512xf32, #tpu.memory_space<vmem>>, vector<8x512xf32>,
    %280 = vector.extract_strided_slice %251 {offsets = [0, 15], sizes = [8, 497], strides = [1, 1]} : vector<8x512xf32> to vector<8x497xf32>
    %281 = vector.extract_strided_slice %251 {offsets = [0, 0], sizes = [8, 15], strides = [1, 1]} : vector<8x512xf32> to vector<8x15xf32>
    %282 = tpu.concatenate %280, %281 in 1 : vector<8x497xf32>, vector<8x15xf32> -> vector<8x512xf32>
    %283 = arith.mulf %282, %18 : vector<8x512xf32>
    %c48_111 = arith.constant 48 : index
    %c0_112 = arith.constant 0 : index
    %284 = vector.load %arg14[%c48_111, %c0_112] : memref<72x512xf32, #tpu.memory_space<vmem>>, vector<8x512xf32>
    tpu.vector_store %arg14[%c48_111, %c0_112], %283 {strides = array<i32>} : memref<72x512xf32, #tpu.memory_space<vmem>>, vector<8x512xf32>,
    %285 = vector.extract_strided_slice %251 {offsets = [0, 16], sizes = [8, 496], strides = [1, 1]} : vector<8x512xf32> to vector<8x496xf32>
    %286 = vector.extract_strided_slice %251 {offsets = [0, 0], sizes = [8, 16], strides = [1, 1]} : vector<8x512xf32> to vector<8x16xf32>
    %287 = tpu.concatenate %285, %286 in 1 : vector<8x496xf32>, vector<8x16xf32> -> vector<8x512xf32>
    %288 = arith.mulf %287, %21 : vector<8x512xf32>
    %c56_113 = arith.constant 56 : index
    %c0_114 = arith.constant 0 : index
    %289 = vector.load %arg14[%c56_113, %c0_114] : memref<72x512xf32, #tpu.memory_space<vmem>>, vector<8x512xf32>
    tpu.vector_store %arg14[%c56_113, %c0_114], %288 {strides = array<i32>} : memref<72x512xf32, #tpu.memory_space<vmem>>, vector<8x512xf32>,
    %290 = vector.extract_strided_slice %251 {offsets = [0, 17], sizes = [8, 495], strides = [1, 1]} : vector<8x512xf32> to vector<8x495xf32>
    %291 = vector.extract_strided_slice %251 {offsets = [0, 0], sizes = [8, 17], strides = [1, 1]} : vector<8x512xf32> to vector<8x17xf32>
    %292 = tpu.concatenate %290, %291 in 1 : vector<8x495xf32>, vector<8x17xf32> -> vector<8x512xf32>
    %293 = arith.mulf %292, %24 : vector<8x512xf32>
    %c64_115 = arith.constant 64 : index
    %c0_116 = arith.constant 0 : index
    %294 = vector.load %arg14[%c64_115, %c0_116] : memref<72x512xf32, #tpu.memory_space<vmem>>, vector<8x512xf32>
    tpu.vector_store %arg14[%c64_115, %c0_116], %293 {strides = array<i32>} : memref<72x512xf32, #tpu.memory_space<vmem>>, vector<8x512xf32>,
    %c0_117 = arith.constant 0 : index
    %c0_118 = arith.constant 0 : index
    %295 = vector.load %arg14[%c0_117, %c0_118] : memref<72x512xf32, #tpu.memory_space<vmem>>, vector<72x512xf32>
    %cst_119 = arith.constant dense<0.000000e+00> : vector<8x512xf32>
    %296 = tpu.matmul %253, %295, %cst_119 {dimension_numbers = #tpu.dot_dimension_numbers<[1], [0], [0], [1], [0, 0, 1, 1], [], []>} : vector<8x72xf32>, vector<72x512xf32>, vector<8x512xf32> -> vector<8x512xf32>
    %297 = vector.broadcast %198 : vector<8x1xf32> to vector<8x512xf32>
    %298 = arith.addf %296, %297 : vector<8x512xf32>
    %299 = vector.extract_strided_slice %298 {offsets = [0, 1], sizes = [8, 511], strides = [1, 1]} : vector<8x512xf32> to vector<8x511xf32>
    %300 = vector.extract_strided_slice %298 {offsets = [0, 0], sizes = [8, 1], strides = [1, 1]} : vector<8x512xf32> to vector<8x1xf32>
    %301 = tpu.concatenate %299, %300 in 1 : vector<8x511xf32>, vector<8x1xf32> -> vector<8x512xf32>
    %302 = arith.maximumf %298, %301 : vector<8x512xf32>
    %303 = vector.extract_strided_slice %302 {offsets = [0, 2], sizes = [8, 510], strides = [1, 1]} : vector<8x512xf32> to vector<8x510xf32>
    %304 = vector.extract_strided_slice %302 {offsets = [0, 0], sizes = [8, 2], strides = [1, 1]} : vector<8x512xf32> to vector<8x2xf32>
    %305 = tpu.concatenate %303, %304 in 1 : vector<8x510xf32>, vector<8x2xf32> -> vector<8x512xf32>
    %306 = arith.maximumf %302, %305 : vector<8x512xf32>
    %307 = vector.extract_strided_slice %306 {offsets = [0, 16], sizes = [8, 496], strides = [1, 1]} : vector<8x512xf32> to vector<8x496xf32>
    %308 = vector.extract_strided_slice %306 {offsets = [0, 0], sizes = [8, 16], strides = [1, 1]} : vector<8x512xf32> to vector<8x16xf32>
    %309 = tpu.concatenate %307, %308 in 1 : vector<8x496xf32>, vector<8x16xf32> -> vector<8x512xf32>
    %310 = arith.maximumf %306, %309 : vector<8x512xf32>
    %311 = vector.extract_strided_slice %310 {offsets = [0, 32], sizes = [8, 480], strides = [1, 1]} : vector<8x512xf32> to vector<8x480xf32>
    %312 = vector.extract_strided_slice %310 {offsets = [0, 0], sizes = [8, 32], strides = [1, 1]} : vector<8x512xf32> to vector<8x32xf32>
    %313 = tpu.concatenate %311, %312 in 1 : vector<8x480xf32>, vector<8x32xf32> -> vector<8x512xf32>
    %314 = arith.maximumf %310, %313 : vector<8x512xf32>
    %c1_120 = arith.constant 1 : index
    %c0_121 = arith.constant 0 : index
    %c0_122 = arith.constant 0 : index
    %315 = vector.load %arg7[%c1_120, %c0_121, %c0_122] : memref<2x512x16xf32, #tpu.memory_space<vmem>>, vector<1x512x16xf32>
    %316 = vector.shape_cast %315 : vector<1x512x16xf32> to vector<512x16xf32>
    %cst_123 = arith.constant dense<0.000000e+00> : vector<8x16xf32>
    %317 = tpu.matmul %314, %316, %cst_123 {dimension_numbers = #tpu.dot_dimension_numbers<[1], [0], [0], [1], [0, 0, 1, 1], [], []>} : vector<8x512xf32>, vector<512x16xf32>, vector<8x16xf32> -> vector<8x16xf32>
    %cst_124 = arith.constant 0.000000e+00 : f32
    %318 = vector.broadcast %cst_124 : f32 to vector<8x16xf32>
    %319 = arith.maximumf %317, %318 : vector<8x16xf32>
    %c1_125 = arith.constant 1 : index
    %c0_126 = arith.constant 0 : index
    %c0_127 = arith.constant 0 : index
    %320 = vector.load %arg8[%c1_125, %c0_126, %c0_127] : memref<2x16x32xf32, #tpu.memory_space<vmem>>, vector<1x16x32xf32>
    %321 = vector.shape_cast %320 : vector<1x16x32xf32> to vector<16x32xf32>
    %cst_128 = arith.constant dense<0.000000e+00> : vector<8x32xf32>
    %322 = tpu.matmul %319, %321, %cst_128 {dimension_numbers = #tpu.dot_dimension_numbers<[1], [0], [0], [1], [0, 0, 1, 1], [], []>} : vector<8x16xf32>, vector<16x32xf32>, vector<8x32xf32> -> vector<8x32xf32>
    %323 = arith.negf %322 : vector<8x32xf32>
    %324 = math.exp %323 : vector<8x32xf32>
    %cst_129 = arith.constant 1.000000e+00 : f32
    %325 = vector.broadcast %cst_129 : f32 to vector<8x32xf32>
    %326 = arith.addf %325, %324 : vector<8x32xf32>
    %327 = arith.divf %325, %326 : vector<8x32xf32>
    %cst_130 = arith.constant dense<0.000000e+00> : vector<8x2xf32>
    %328 = tpu.matmul %327, %25, %cst_130 {dimension_numbers = #tpu.dot_dimension_numbers<[1], [0], [0], [1], [0, 0, 1, 1], [], []>} : vector<8x32xf32>, vector<32x2xf32>, vector<8x2xf32> -> vector<8x2xf32>
    %c1_131 = arith.constant 1 : index
    %c0_132 = arith.constant 0 : index
    %c0_133 = arith.constant 0 : index
    %329 = vector.load %arg9[%c1_131, %c0_132, %c0_133] : memref<2x2x8xf32, #tpu.memory_space<vmem>>, vector<1x2x8xf32>
    %330 = vector.shape_cast %329 : vector<1x2x8xf32> to vector<2x8xf32>
    %cst_134 = arith.constant dense<0.000000e+00> : vector<2x2xf32>
    %331 = tpu.matmul %330, %328, %cst_134 {dimension_numbers = #tpu.dot_dimension_numbers<[1], [0], [0], [1], [0, 0, 1, 1], [], []>} : vector<2x8xf32>, vector<8x2xf32>, vector<2x2xf32> -> vector<2x2xf32>
    %cst_135 = arith.constant 0.000000e+00 : f32
    %332 = vector.broadcast %cst_135 : f32 to vector<2x2xf32>
    %333 = arith.maximumf %331, %332 : vector<2x2xf32>
    %c1_136 = arith.constant 1 : index
    %c0_137 = arith.constant 0 : index
    %c0_138 = arith.constant 0 : index
    %334 = vector.load %arg10[%c1_136, %c0_137, %c0_138] : memref<2x8x2xf32, #tpu.memory_space<vmem>>, vector<1x8x2xf32>
    %335 = vector.shape_cast %334 : vector<1x8x2xf32> to vector<8x2xf32>
    %cst_139 = arith.constant dense<0.000000e+00> : vector<8x2xf32>
    %336 = tpu.matmul %335, %333, %cst_139 {dimension_numbers = #tpu.dot_dimension_numbers<[1], [0], [0], [1], [0, 0, 1, 1], [], []>} : vector<8x2xf32>, vector<2x2xf32>, vector<8x2xf32> -> vector<8x2xf32>
    %337 = arith.negf %336 : vector<8x2xf32>
    %338 = math.exp %337 : vector<8x2xf32>
    %cst_140 = arith.constant 1.000000e+00 : f32
    %339 = vector.broadcast %cst_140 : f32 to vector<8x2xf32>
    %340 = arith.addf %339, %338 : vector<8x2xf32>
    %341 = arith.divf %339, %340 : vector<8x2xf32>
    %342 = vector.extract_strided_slice %298 {offsets = [0, 0], sizes = [8, 256], strides = [1, 1]} : vector<8x512xf32> to vector<8x256xf32>
    %343 = vector.extract_strided_slice %341 {offsets = [0, 0], sizes = [8, 1], strides = [1, 1]} : vector<8x2xf32> to vector<8x1xf32>
    %344 = vector.broadcast %343 : vector<8x1xf32> to vector<8x256xf32>
    %345 = arith.mulf %342, %344 : vector<8x256xf32>
    %346 = vector.extract_strided_slice %192 {offsets = [0, 0], sizes = [8, 256], strides = [1, 1]} : vector<8x512xf32> to vector<8x256xf32>
    %347 = math.tanh %345 : vector<8x256xf32>
    %348 = arith.mulf %345, %347 : vector<8x256xf32>
    %349 = arith.addf %346, %348 : vector<8x256xf32>
    %350 = vector.extract_strided_slice %298 {offsets = [0, 256], sizes = [8, 256], strides = [1, 1]} : vector<8x512xf32> to vector<8x256xf32>
    %351 = vector.extract_strided_slice %341 {offsets = [0, 1], sizes = [8, 1], strides = [1, 1]} : vector<8x2xf32> to vector<8x1xf32>
    %352 = vector.broadcast %351 : vector<8x1xf32> to vector<8x256xf32>
    %353 = arith.mulf %350, %352 : vector<8x256xf32>
    %354 = vector.extract_strided_slice %192 {offsets = [0, 256], sizes = [8, 256], strides = [1, 1]} : vector<8x512xf32> to vector<8x256xf32>
    %355 = math.tanh %353 : vector<8x256xf32>
    %356 = arith.mulf %353, %355 : vector<8x256xf32>
    %357 = arith.addf %354, %356 : vector<8x256xf32>
    %358 = tpu.concatenate %349, %357 in 1 : vector<8x256xf32>, vector<8x256xf32> -> vector<8x512xf32>
    %c0_141 = arith.constant 0 : index
    %c0_142 = arith.constant 0 : index
    %359 = vector.load %arg11[%c0_141, %c0_142] : memref<8x8xf32, #tpu.memory_space<vmem>>, vector<8x8xf32>
    %cst_143 = arith.constant dense<0.000000e+00> : vector<8x512xf32>
    %360 = tpu.matmul %359, %358, %cst_143 {dimension_numbers = #tpu.dot_dimension_numbers<[1], [0], [0], [1], [0, 0, 1, 1], [], []>} : vector<8x8xf32>, vector<8x512xf32>, vector<8x512xf32> -> vector<8x512xf32>
    %361 = arith.addf %26, %360 : vector<8x512xf32>
    %c0_144 = arith.constant 0 : index
    %c0_145 = arith.constant 0 : index
    %362 = vector.load %arg12[%c0_144, %c0_145] : memref<8x1xf32, #tpu.memory_space<vmem>>, vector<8x1xf32>
    %363 = vector.broadcast %362 : vector<8x1xf32> to vector<8x512xf32>
    %364 = arith.addf %361, %363 : vector<8x512xf32>
    %c0_146 = arith.constant 0 : index
    %c0_147 = arith.constant 0 : index
    %365 = vector.load %arg13[%c0_146, %c0_147] : memref<8x512xf32, #tpu.memory_space<vmem>>, vector<8x512xf32>
    tpu.vector_store %arg13[%c0_146, %c0_147], %364 {strides = array<i32>} : memref<8x512xf32, #tpu.memory_space<vmem>>, vector<8x512xf32>,
    return
  }
  func.func @transform_0(%arg0: i32) -> (i32, i32) {
    %c0_i32 = arith.constant 0 : i32
    %c0_i32_0 = arith.constant 0 : i32
    return %c0_i32, %arg0 : i32, i32
  }
  func.func @transform_1(%arg0: i32) -> (i32, i32) {
    %c0_i32 = arith.constant 0 : i32
    %c0_i32_0 = arith.constant 0 : i32
    %c0_i32_1 = arith.constant 0 : i32
    return %c0_i32, %c0_i32_0 : i32, i32
  }
  func.func @transform_2(%arg0: i32) -> (i32, i32) {
    %c0_i32 = arith.constant 0 : i32
    %c0_i32_0 = arith.constant 0 : i32
    %c0_i32_1 = arith.constant 0 : i32
    return %c0_i32, %c0_i32_0 : i32, i32
  }
  func.func @transform_3(%arg0: i32) -> (i32, i32, i32) {
    %c0_i32 = arith.constant 0 : i32
    %c0_i32_0 = arith.constant 0 : i32
    %c0_i32_1 = arith.constant 0 : i32
    %c0_i32_2 = arith.constant 0 : i32
    return %c0_i32, %c0_i32_0, %c0_i32_1 : i32, i32, i32
  }
  func.func @transform_4(%arg0: i32) -> (i32, i32, i32) {
    %c0_i32 = arith.constant 0 : i32
    %c0_i32_0 = arith.constant 0 : i32
    %c0_i32_1 = arith.constant 0 : i32
    %c0_i32_2 = arith.constant 0 : i32
    return %c0_i32, %c0_i32_0, %c0_i32_1 : i32, i32, i32
  }
  func.func @transform_5(%arg0: i32) -> (i32, i32, i32) {
    %c0_i32 = arith.constant 0 : i32
    %c0_i32_0 = arith.constant 0 : i32
    %c0_i32_1 = arith.constant 0 : i32
    %c0_i32_2 = arith.constant 0 : i32
    return %c0_i32, %c0_i32_0, %c0_i32_1 : i32, i32, i32
  }
  func.func @transform_6(%arg0: i32) -> (i32, i32, i32) {
    %c0_i32 = arith.constant 0 : i32
    %c0_i32_0 = arith.constant 0 : i32
    %c0_i32_1 = arith.constant 0 : i32
    %c0_i32_2 = arith.constant 0 : i32
    return %c0_i32, %c0_i32_0, %c0_i32_1 : i32, i32, i32
  }
  func.func @transform_7(%arg0: i32) -> (i32, i32, i32) {
    %c0_i32 = arith.constant 0 : i32
    %c0_i32_0 = arith.constant 0 : i32
    %c0_i32_1 = arith.constant 0 : i32
    %c0_i32_2 = arith.constant 0 : i32
    return %c0_i32, %c0_i32_0, %c0_i32_1 : i32, i32, i32
  }
  func.func @transform_8(%arg0: i32) -> (i32, i32, i32) {
    %c0_i32 = arith.constant 0 : i32
    %c0_i32_0 = arith.constant 0 : i32
    %c0_i32_1 = arith.constant 0 : i32
    %c0_i32_2 = arith.constant 0 : i32
    return %c0_i32, %c0_i32_0, %c0_i32_1 : i32, i32, i32
  }
  func.func @transform_9(%arg0: i32) -> (i32, i32, i32) {
    %c0_i32 = arith.constant 0 : i32
    %c0_i32_0 = arith.constant 0 : i32
    %c0_i32_1 = arith.constant 0 : i32
    %c0_i32_2 = arith.constant 0 : i32
    return %c0_i32, %c0_i32_0, %c0_i32_1 : i32, i32, i32
  }
  func.func @transform_10(%arg0: i32) -> (i32, i32) {
    %c0_i32 = arith.constant 0 : i32
    %c0_i32_0 = arith.constant 0 : i32
    %c0_i32_1 = arith.constant 0 : i32
    return %c0_i32, %c0_i32_0 : i32, i32
  }
  func.func @transform_11(%arg0: i32) -> (i32, i32) {
    %c0_i32 = arith.constant 0 : i32
    %c0_i32_0 = arith.constant 0 : i32
    %c0_i32_1 = arith.constant 0 : i32
    return %c0_i32, %c0_i32_0 : i32, i32
  }
  func.func @transform_12(%arg0: i32) -> (i32, i32) {
    %c0_i32 = arith.constant 0 : i32
    %c0_i32_0 = arith.constant 0 : i32
    return %c0_i32, %arg0 : i32, i32
  }
}

</mosaic_0001>

<llo_original>
// kernel: tpu_custom_call.1
$region0: #{tpu_custom_call.1}
  #allocation0 [shape = 'u32[]', space=smem, size = 0x4, offset = 0x4, fixed_abs, tag = 'smem constant byte address 0x4 - core index']
  #allocation1 [shape = 'u32[144,128]{1,0:T(1,128)}', space=vmem, size = 0x12000, scoped, tag = 'internal scratch']
  %s0 = inlined_call_operand.hbm [shape: f32[8,512], index: 0, kind: input, shape index: {}]
  %s1 = inlined_call_operand.hbm [shape: f32[8,512], index: 1, kind: output, shape index: {}]
  %s2 = sld [smem:[#allocation0]]
  $region18: #{tpu_custom_call.1} parent=0
    _
  %s4 = ssub.s32 1, %s2
  %s5 = scalar_select 0, %s4, %s2
  $region1: #{tpu_custom_call.1} parent=0
    #allocation2 [shape = 'u8[16384]{0}', space=vmem, size = 0x4000, scoped, tag = 'input window, operand 0, single buffered']
    #allocation3 [shape = 's32[1]{0}', space=sflag, size = 0x4, scoped, tag = 'scoped memory for tpu_custom_call.1']
    #allocation4 [shape = 's32[1]{0}', space=sflag, size = 0x4, scoped, tag = 'scoped memory for tpu_custom_call.1']
    #allocation5 [shape = 'u8[16384]{0}', space=vmem, size = 0x4000, scoped, tag = 'output window, operand 0, single buffered']
    %6 = vsyncpa [#allocation3], 0
    %7 = vsyncpa [#allocation4], 0
    // Predicated region
    $region2: #{tpu_custom_call.1} parent=1 // pred_check
      _
    $region3: #{tpu_custom_call.1} parent=1 // pred_check_branch
      %9 = sbr.rel (0) target = $region5
    $region4: #{tpu_custom_call.1} parent=1 // pred_region
      %s11 = ssub.s32 512, 512
      %12 = vsyncadd [#allocation3], %s11
      %s14 = sshll.u32 [#allocation2], 4
      %s15 = int_to_ptr.vmem [resolvable:$true] %s14
      %17 = dma.hbm_to_vmem [thread:$0]  %s0, 512, %s15, [#allocation3]
    $region5: #{tpu_custom_call.1} parent=1 // pred_fallthru
      _
    // Predicated region
    $region6: #{tpu_custom_call.1} parent=1 // pred_check
      _
    $region7: #{tpu_custom_call.1} parent=1 // pred_check_branch
      %19 = sbr.rel (0) target = $region9
    $region8: #{tpu_custom_call.1} parent=1 // pred_region
      %20 = dma.done [#allocation3], 512
    $region9: #{tpu_custom_call.1} parent=1 // pred_fallthru
      _
    %v21 = vld [vmem:[#allocation2] sm:$0xff]
    %v22 = vld [vmem:[#allocation2 + $0x8] sm:$0xff]
    %v23 = vld [vmem:[#allocation2 + $0x10] sm:$0xff]
    %v24 = vld [vmem:[#allocation2 + $0x18] sm:$0xff]
    %25 = vrot.lane.b32.xlu0 %v21, 113
    %v26 = vpop.permute.xlu0 %25
    %27 = vrot.lane.b32.xlu0 %v22, 113
    %v28 = vpop.permute.xlu0 %27
    %29 = vrot.lane.b32.xlu0 %v23, 113
    %v30 = vpop.permute.xlu0 %29
    %31 = vrot.lane.b32.xlu0 %v24, 113
    %v32 = vpop.permute.xlu0 %31
    %v33 = vlaneseq
    %v34 = vand.u32 %v33, 127
    %vm35 = vcmp.lt.s32.totalorder %v34, 113
    %v36 = vsel %vm35, %v30, %v32
    %v37 = vsel %vm35, %v28, %v30
    %v38 = vsel %vm35, %v26, %v28
    %v39 = vsel %vm35, %v32, %v26
    %40 = vst [vmem:[#allocation5] sm:$0xff] %v38
    %41 = vst [vmem:[#allocation5 + $0x8] sm:$0xff] %v37
    %42 = vst [vmem:[#allocation5 + $0x10] sm:$0xff] %v36
    %43 = vst [vmem:[#allocation5 + $0x18] sm:$0xff] %v39
    // Predicated region
    $region10: #{tpu_custom_call.1} parent=1 // pred_check
      _
    $region11: #{tpu_custom_call.1} parent=1 // pred_check_branch
      %45 = sbr.rel (0) target = $region13
    $region12: #{tpu_custom_call.1} parent=1 // pred_region
      %s47 = ssub.s32 512, 512
      %48 = vsyncadd [#allocation4], %s47
      %s50 = sshll.u32 [#allocation5], 4
      %s51 = int_to_ptr.vmem [resolvable:$true] %s50
      %53 = dma.vmem_to_hbm [thread:$0]  %s51, 512, %s1, [#allocation4]
    $region13: #{tpu_custom_call.1} parent=1 // pred_fallthru
      _
    // Predicated region
    $region14: #{tpu_custom_call.1} parent=1 // pred_check
      _
    $region15: #{tpu_custom_call.1} parent=1 // pred_check_branch
      %55 = sbr.rel (0) target = $region17
    $region16: #{tpu_custom_call.1} parent=1 // pred_region
      %56 = dma.done [#allocation4], 512
    $region17: #{tpu_custom_call.1} parent=1 // pred_fallthru
      _
    %57 = vsyncpa [#allocation3], 1
    %58 = vsyncpa [#allocation4], 1

// kernel: sce_encoder_forward.1
$region0: #{sce_encoder_forward.1}
  #allocation0 [shape = 'u32[]', space=smem, size = 0x4, offset = 0x4, fixed_abs, tag = 'smem constant byte address 0x4 - core index']
  #allocation1 [shape = 'u32[144,128]{1,0:T(1,128)}', space=vmem, size = 0x12000, scoped, tag = 'internal scratch']
  #allocation2 [shape = 'f32[72,512]{1,0:T(8,128)}', space=vmem, size = 0x24000, scoped, tag = 'scratch operand']
  %s0 = inlined_call_operand.vmem [shape: f32[8,512], index: 0, kind: input, shape index: {}]
  %s1 = inlined_call_operand.vmem [shape: f32[9,512], index: 1, kind: input, shape index: {}]
  %s2 = inlined_call_operand.vmem [shape: f32[32,2], index: 2, kind: input, shape index: {}]
  %s3 = inlined_call_operand.vmem [shape: f32[2,8,72], index: 3, kind: input, shape index: {}]
  %s4 = inlined_call_operand.vmem [shape: f32[2,8,72], index: 4, kind: input, shape index: {}]
  %s5 = inlined_call_operand.vmem [shape: f32[2,8,4], index: 5, kind: input, shape index: {}]
  %s6 = inlined_call_operand.vmem [shape: f32[2,512,16], index: 6, kind: input, shape index: {}]
  %s7 = inlined_call_operand.vmem [shape: f32[2,16,32], index: 7, kind: input, shape index: {}]
  %s8 = inlined_call_operand.vmem [shape: f32[2,2,8], index: 8, kind: input, shape index: {}]
  %s9 = inlined_call_operand.vmem [shape: f32[2,8,2], index: 9, kind: input, shape index: {}]
  %s10 = inlined_call_operand.vmem [shape: f32[8,8], index: 10, kind: input, shape index: {}]
  %s11 = inlined_call_operand.vmem [shape: f32[8,1], index: 11, kind: input, shape index: {}]
  %s12 = inlined_call_operand.vmem [shape: f32[8,512], index: 12, kind: output, shape index: {}]
  %s13 = sld [smem:[#allocation0]]
  $region58: #{sce_encoder_forward.1} parent=0
    _
  %s15 = ssub.s32 1, %s13
  %s16 = scalar_select 0, %s15, %s13
  // Predicated region
  $region2: #{sce_encoder_forward.1} parent=0 // pred_check
    _
  $region3: #{sce_encoder_forward.1} parent=0 // pred_check_branch
    %18 = sbr.rel (0) target = $region5
  $region4: #{sce_encoder_forward.1} parent=0 // pred_region
    _
  $region5: #{sce_encoder_forward.1} parent=0 // pred_fallthru
    _
  // Predicated region
  $region6: #{sce_encoder_forward.1} parent=0 // pred_check
    _
  $region7: #{sce_encoder_forward.1} parent=0 // pred_check_branch
    %20 = sbr.rel (0) target = $region9
  $region8: #{sce_encoder_forward.1} parent=0 // pred_region
    _
  $region9: #{sce_encoder_forward.1} parent=0 // pred_fallthru
    _
  // Predicated region
  $region10: #{sce_encoder_forward.1} parent=0 // pred_check
    _
  $region11: #{sce_encoder_forward.1} parent=0 // pred_check_branch
    %22 = sbr.rel (0) target = $region13
  $region12: #{sce_encoder_forward.1} parent=0 // pred_region
    _
  $region13: #{sce_encoder_forward.1} parent=0 // pred_fallthru
    _
  // Predicated region
  $region14: #{sce_encoder_forward.1} parent=0 // pred_check
    _
  $region15: #{sce_encoder_forward.1} parent=0 // pred_check_branch
    %24 = sbr.rel (0) target = $region17
  $region16: #{sce_encoder_forward.1} parent=0 // pred_region
    _
  $region17: #{sce_encoder_forward.1} parent=0 // pred_fallthru
    _
  // Predicated region
  $region18: #{sce_encoder_forward.1} parent=0 // pred_check
    _
  $region19: #{sce_encoder_forward.1} parent=0 // pred_check_branch
    %26 = sbr.rel (0) target = $region21
  $region20: #{sce_encoder_forward.1} parent=0 // pred_region
    _
  $region21: #{sce_encoder_forward.1} parent=0 // pred_fallthru
    _
  // Predicated region
  $region22: #{sce_encoder_forward.1} parent=0 // pred_check
    _
  $region23: #{sce_encoder_forward.1} parent=0 // pred_check_branch
    %28 = sbr.rel (0) target = $region25
  $region24: #{sce_encoder_forward.1} parent=0 // pred_region
    _
  $region25: #{sce_encoder_forward.1} parent=0 // pred_fallthru
    _
  // Predicated region
  $region26: #{sce_encoder_forward.1} parent=0 // pred_check
    _
  $region27: #{sce_encoder_forward.1} parent=0 // pred_check_branch
    %30 = sbr.rel (0) target = $region29
  $region28: #{sce_encoder_forward.1} parent=0 // pred_region
    _
  $region29: #{sce_encoder_forward.1} parent=0 // pred_fallthru
    _
  // Predicated region
  $region30: #{sce_encoder_forward.1} parent=0 // pred_check
    _
  $region31: #{sce_encoder_forward.1} parent=0 // pred_check_branch
    %32 = sbr.rel (0) target = $region33
  $region32: #{sce_encoder_forward.1} parent=0 // pred_region
    _
  $region33: #{sce_encoder_forward.1} parent=0 // pred_fallthru
    _
  // Predicated region
  $region34: #{sce_encoder_forward.1} parent=0 // pred_check
    _
  $region35: #{sce_encoder_forward.1} parent=0 // pred_check_branch
    %34 = sbr.rel (0) target = $region37
  $region36: #{sce_encoder_forward.1} parent=0 // pred_region
    _
  $region37: #{sce_encoder_forward.1} parent=0 // pred_fallthru
    _
  // Predicated region
  $region38: #{sce_encoder_forward.1} parent=0 // pred_check
    _
  $region39: #{sce_encoder_forward.1} parent=0 // pred_check_branch
    %36 = sbr.rel (0) target = $region41
  $region40: #{sce_encoder_forward.1} parent=0 // pred_region
    _
  $region41: #{sce_encoder_forward.1} parent=0 // pred_fallthru
    _
  // Predicated region
  $region42: #{sce_encoder_forward.1} parent=0 // pred_check
    _
  $region43: #{sce_encoder_forward.1} parent=0 // pred_check_branch
    %38 = sbr.rel (0) target = $region45
  $region44: #{sce_encoder_forward.1} parent=0 // pred_region
    _
  $region45: #{sce_encoder_forward.1} parent=0 // pred_fallthru
    _
  // Predicated region
  $region46: #{sce_encoder_forward.1} parent=0 // pred_check
    _
  $region47: #{sce_encoder_forward.1} parent=0 // pred_check_branch
    %40 = sbr.rel (0) target = $region49
  $region48: #{sce_encoder_forward.1} parent=0 // pred_region
    _
  $region49: #{sce_encoder_forward.1} parent=0 // pred_fallthru
    _
  %v41 = vld [vmem:[%s1] sm:$0xff]
  %v42 = vld [vmem:[%s1 + $0x8] sm:$0xff]
  %v43 = vld [vmem:[%s1 + $0x10] sm:$0xff]
  %v44 = vld [vmem:[%s1 + $0x18] sm:$0xff]
  %v45 = vld [vmem:[%s1 + $0x20] sm:$0x1]
  %v46 = vld [vmem:[%s1 + $0x28] sm:$0x1]
  %v47 = vld [vmem:[%s1 + $0x30] sm:$0x1]
  %v48 = vld [vmem:[%s1 + $0x38] sm:$0x1]
  %v49 = vlaneseq
  %v50 = vshrl.u32 %v49, 7
  %v51 = vsub.s32 0, %v50
  %v52 = vrot.slane %v41, %v51
  %v53 = vlaneseq
  %v54 = vshrl.u32 %v53, 7
  %v55 = vsub.s32 0, %v54
  %v56 = vrot.slane %v42, %v55
  %v57 = vlaneseq
  %v58 = vshrl.u32 %v57, 7
  %v59 = vsub.s32 0, %v58
  %v60 = vrot.slane %v43, %v59
  %v61 = vlaneseq
  %v62 = vshrl.u32 %v61, 7
  %v63 = vsub.s32 0, %v62
  %v64 = vrot.slane %v44, %v63
  %v65 = vlaneseq
  %v66 = vshrl.u32 %v65, 7
  %v67 = vsub.s32 1, %v66
  %v68 = vrot.slane %v41, %v67
  %v69 = vlaneseq
  %v70 = vshrl.u32 %v69, 7
  %v71 = vsub.s32 1, %v70
  %v72 = vrot.slane %v42, %v71
  %v73 = vlaneseq
  %v74 = vshrl.u32 %v73, 7
  %v75 = vsub.s32 1, %v74
  %v76 = vrot.slane %v43, %v75
  %v77 = vlaneseq
  %v78 = vshrl.u32 %v77, 7
  %v79 = vsub.s32 1, %v78
  %v80 = vrot.slane %v44, %v79
  %v81 = vlaneseq
  %v82 = vshrl.u32 %v81, 7
  %v83 = vsub.s32 2, %v82
  %v84 = vrot.slane %v41, %v83
  %v85 = vlaneseq
  %v86 = vshrl.u32 %v85, 7
  %v87 = vsub.s32 2, %v86
  %v88 = vrot.slane %v42, %v87
  %v89 = vlaneseq
  %v90 = vshrl.u32 %v89, 7
  %v91 = vsub.s32 2, %v90
  %v92 = vrot.slane %v43, %v91
  %v93 = vlaneseq
  %v94 = vshrl.u32 %v93, 7
  %v95 = vsub.s32 2, %v94
  %v96 = vrot.slane %v44, %v95
  %v97 = vlaneseq
  %v98 = vshrl.u32 %v97, 7
  %v99 = vsub.s32 3, %v98
  %v100 = vrot.slane %v41, %v99
  %v101 = vlaneseq
  %v102 = vshrl.u32 %v101, 7
  %v103 = vsub.s32 3, %v102
  %v104 = vrot.slane %v42, %v103
  %v105 = vlaneseq
  %v106 = vshrl.u32 %v105, 7
  %v107 = vsub.s32 3, %v106
  %v108 = vrot.slane %v43, %v107
  %v109 = vlaneseq
  %v110 = vshrl.u32 %v109, 7
  %v111 = vsub.s32 3, %v110
  %v112 = vrot.slane %v44, %v111
  %v113 = vlaneseq
  %v114 = vshrl.u32 %v113, 7
  %v115 = vsub.s32 5, %v114
  %v116 = vrot.slane %v41, %v115
  %v117 = vlaneseq
  %v118 = vshrl.u32 %v117, 7
  %v119 = vsub.s32 5, %v118
  %v120 = vrot.slane %v42, %v119
  %v121 = vlaneseq
  %v122 = vshrl.u32 %v121, 7
  %v123 = vsub.s32 5, %v122
  %v124 = vrot.slane %v43, %v123
  %v125 = vlaneseq
  %v126 = vshrl.u32 %v125, 7
  %v127 = vsub.s32 5, %v126
  %v128 = vrot.slane %v44, %v127
  %v129 = vlaneseq
  %v130 = vshrl.u32 %v129, 7
  %v131 = vsub.s32 6, %v130
  %v132 = vrot.slane %v41, %v131
  %v133 = vlaneseq
  %v134 = vshrl.u32 %v133, 7
  %v135 = vsub.s32 6, %v134
  %v136 = vrot.slane %v42, %v135
  %v137 = vlaneseq
  %v138 = vshrl.u32 %v137, 7
  %v139 = vsub.s32 6, %v138
  %v140 = vrot.slane %v43, %v139
  %v141 = vlaneseq
  %v142 = vshrl.u32 %v141, 7
  %v143 = vsub.s32 6, %v142
  %v144 = vrot.slane %v44, %v143
  %v145 = vlaneseq
  %v146 = vshrl.u32 %v145, 7
  %v147 = vsub.s32 7, %v146
  %v148 = vrot.slane %v41, %v147
  %v149 = vlaneseq
  %v150 = vshrl.u32 %v149, 7
  %v151 = vsub.s32 7, %v150
  %v152 = vrot.slane %v42, %v151
  %v153 = vlaneseq
  %v154 = vshrl.u32 %v153, 7
  %v155 = vsub.s32 7, %v154
  %v156 = vrot.slane %v43, %v155
  %v157 = vlaneseq
  %v158 = vshrl.u32 %v157, 7
  %v159 = vsub.s32 7, %v158
  %v160 = vrot.slane %v44, %v159
  %v161 = vlaneseq
  %v162 = vshrl.u32 %v161, 7
  %v163 = vsub.s32 0, %v162
  %v164 = vrot.slane %v45, %v163
  %v165 = vlaneseq
  %v166 = vshrl.u32 %v165, 7
  %v167 = vsub.s32 0, %v166
  %v168 = vrot.slane %v46, %v167
  %v169 = vlaneseq
  %v170 = vshrl.u32 %v169, 7
  %v171 = vsub.s32 0, %v170
  %v172 = vrot.slane %v47, %v171
  %v173 = vlaneseq
  %v174 = vshrl.u32 %v173, 7
  %v175 = vsub.s32 0, %v174
  %v176 = vrot.slane %v48, %v175
  %v177 = vld [vmem:[%s2] sm:$0xff]
  %v178 = vld [vmem:[%s2 + $0x8] sm:$0xff]
  %v179 = vld [vmem:[%s2 + $0x10] sm:$0xff]
  %v180 = vld [vmem:[%s2 + $0x18] sm:$0xff]
  %v181 = vld [vmem:[%s0] sm:$0xff]
  %v182 = vld [vmem:[%s0 + $0x8] sm:$0xff]
  %v183 = vld [vmem:[%s0 + $0x10] sm:$0xff]
  %v184 = vld [vmem:[%s0 + $0x18] sm:$0xff]
  %v185 = vld [vmem:[%s5] sm:$0xff]
  %187 = vset.pattern.permute.xlu0 0
  %188 = vperm.xlu0 %187, %v185
  %v189 = vpop.permute.xlu0 %188
  %v191 = vmul.f32 %v181, %v189
  %v192 = vmul.f32 %v182, %v189
  %v193 = vmul.f32 %v183, %v189
  %v194 = vmul.f32 %v184, %v189
  %195 = vset.pattern.permute.xlu0 1
  %196 = vperm.xlu0 %195, %v185
  %v197 = vpop.permute.xlu0 %196
  %v199 = vadd.f32 %v191, %v197
  %v200 = vadd.f32 %v192, %v197
  %v201 = vadd.f32 %v193, %v197
  %v202 = vadd.f32 %v194, %v197
  %v203 = vld [vmem:[%s3] sm:$0xff]
  %205 = vrot.lane.b32.xlu0 %v202, 17
  %v206 = vpop.permute.xlu0 %205
  %211 = vrot.lane.b32.xlu0 %v199, 17
  %v212 = vpop.permute.xlu0 %211
  %213 = vrot.lane.b32.xlu0 %v200, 17
  %v214 = vpop.permute.xlu0 %213
  %215 = vrot.lane.b32.xlu0 %v201, 17
  %v216 = vpop.permute.xlu0 %215
  %vm217 = vcmask 138240
  %v218 = vsel %vm217, %v212, %v214
  %v219 = vsel %vm217, %v214, %v216
  %v220 = vsel %vm217, %v216, %v206
  %v225 = vsel %vm217, %v206, %v212
  %v226 = vmul.f32 %v225, %v52
  %v227 = vmul.f32 %v218, %v56
  %v228 = vmul.f32 %v219, %v60
  %v229 = vmul.f32 %v220, %v64
  %230 = vst [vmem:[#allocation2] sm:$0xff] %v226
  %231 = vst [vmem:[#allocation2 + $0x8] sm:$0xff] %v227
  %232 = vst [vmem:[#allocation2 + $0x10] sm:$0xff] %v228
  %233 = vst [vmem:[#allocation2 + $0x18] sm:$0xff] %v229
  %234 = vrot.lane.b32.xlu0 %v202, 16
  %v235 = vpop.permute.xlu0 %234
  %237 = vrot.lane.b32.xlu0 %v199, 16
  %v238 = vpop.permute.xlu0 %237
  %239 = vrot.lane.b32.xlu0 %v200, 16
  %v240 = vpop.permute.xlu0 %239
  %241 = vrot.lane.b32.xlu0 %v201, 16
  %v242 = vpop.permute.xlu0 %241
  %vm243 = vcmask 130048
  %v244 = vsel %vm243, %v238, %v240
  %v245 = vsel %vm243, %v240, %v242
  %v246 = vsel %vm243, %v242, %v235
  %v251 = vsel %vm243, %v235, %v238
  %v252 = vmul.f32 %v251, %v68
  %v253 = vmul.f32 %v244, %v72
  %v254 = vmul.f32 %v245, %v76
  %v255 = vmul.f32 %v246, %v80
  %256 = vst [vmem:[#allocation2 + $0x20] sm:$0xff] %v252
  %257 = vst [vmem:[#allocation2 + $0x28] sm:$0xff] %v253
  %258 = vst [vmem:[#allocation2 + $0x30] sm:$0xff] %v254
  %259 = vst [vmem:[#allocation2 + $0x38] sm:$0xff] %v255
  %260 = vrot.lane.b32.xlu0 %v202, 15
  %v261 = vpop.permute.xlu0 %260
  %263 = vrot.lane.b32.xlu0 %v199, 15
  %v264 = vpop.permute.xlu0 %263
  %265 = vrot.lane.b32.xlu0 %v200, 15
  %v266 = vpop.permute.xlu0 %265
  %267 = vrot.lane.b32.xlu0 %v201, 15
  %v268 = vpop.permute.xlu0 %267
  %vm269 = vcmask 121856
  %v270 = vsel %vm269, %v264, %v266
  %v271 = vsel %vm269, %v266, %v268
  %v272 = vsel %vm269, %v268, %v261
  %v277 = vsel %vm269, %v261, %v264
  %v278 = vmul.f32 %v277, %v84
  %v279 = vmul.f32 %v270, %v88
  %v280 = vmul.f32 %v271, %v92
  %v281 = vmul.f32 %v272, %v96
  %282 = vst [vmem:[#allocation2 + $0x40] sm:$0xff] %v278
  %283 = vst [vmem:[#allocation2 + $0x48] sm:$0xff] %v279
  %284 = vst [vmem:[#allocation2 + $0x50] sm:$0xff] %v280
  %285 = vst [vmem:[#allocation2 + $0x58] sm:$0xff] %v281
  %286 = vrot.lane.b32.xlu0 %v202, 1
  %v287 = vpop.permute.xlu0 %286
  %289 = vrot.lane.b32.xlu0 %v199, 1
  %v290 = vpop.permute.xlu0 %289
  %291 = vrot.lane.b32.xlu0 %v200, 1
  %v292 = vpop.permute.xlu0 %291
  %293 = vrot.lane.b32.xlu0 %v201, 1
  %v294 = vpop.permute.xlu0 %293
  %vm295 = vcmask 7168
  %v296 = vsel %vm295, %v290, %v292
  %v297 = vsel %vm295, %v292, %v294
  %v298 = vsel %vm295, %v294, %v287
  %v303 = vsel %vm295, %v287, %v290
  %v304 = vmul.f32 %v303, %v100
  %v305 = vmul.f32 %v296, %v104
  %v306 = vmul.f32 %v297, %v108
  %v307 = vmul.f32 %v298, %v112
  %308 = vst [vmem:[#allocation2 + $0x60] sm:$0xff] %v304
  %309 = vst [vmem:[#allocation2 + $0x68] sm:$0xff] %v305
  %310 = vst [vmem:[#allocation2 + $0x70] sm:$0xff] %v306
  %311 = vst [vmem:[#allocation2 + $0x78] sm:$0xff] %v307
  %312 = vst [vmem:[#allocation2 + $0x80] sm:$0xff] %v199
  %313 = vst [vmem:[#allocation2 + $0x88] sm:$0xff] %v200
  %314 = vst [vmem:[#allocation2 + $0x90] sm:$0xff] %v201
  %315 = vst [vmem:[#allocation2 + $0x98] sm:$0xff] %v202
  %316 = vrot.lane.b32.xlu0 %v199, 127
  %v317 = vpop.permute.xlu0 %316
  %318 = vrot.lane.b32.xlu0 %v200, 127
  %v319 = vpop.permute.xlu0 %318
  %320 = vrot.lane.b32.xlu0 %v201, 127
  %v321 = vpop.permute.xlu0 %320
  %322 = vrot.lane.b32.xlu0 %v202, 127
  %v323 = vpop.permute.xlu0 %322
  %vm324 = vcmask 1039360
  %v325 = vsel %vm324, %v317, %v319
  %v326 = vsel %vm324, %v319, %v321
  %v327 = vsel %vm324, %v321, %v323
  %v333 = vsel %vm324, %v323, %v317
  %v334 = vmul.f32 %v325, %v116
  %v335 = vmul.f32 %v326, %v120
  %v336 = vmul.f32 %v327, %v124
  %v337 = vmul.f32 %v333, %v128
  %338 = vst [vmem:[#allocation2 + $0xa0] sm:$0xff] %v334
  %339 = vst [vmem:[#allocation2 + $0xa8] sm:$0xff] %v335
  %340 = vst [vmem:[#allocation2 + $0xb0] sm:$0xff] %v336
  %341 = vst [vmem:[#allocation2 + $0xb8] sm:$0xff] %v337
  %342 = vrot.lane.b32.xlu0 %v199, 113
  %v343 = vpop.permute.xlu0 %342
  %344 = vrot.lane.b32.xlu0 %v200, 113
  %v345 = vpop.permute.xlu0 %344
  %346 = vrot.lane.b32.xlu0 %v201, 113
  %v347 = vpop.permute.xlu0 %346
  %348 = vrot.lane.b32.xlu0 %v202, 113
  %v349 = vpop.permute.xlu0 %348
  %vm350 = vcmask 924672
  %v351 = vsel %vm350, %v343, %v345
  %v352 = vsel %vm350, %v345, %v347
  %v353 = vsel %vm350, %v347, %v349
  %v359 = vsel %vm350, %v349, %v343
  %v360 = vmul.f32 %v351, %v132
  %v361 = vmul.f32 %v352, %v136
  %v362 = vmul.f32 %v353, %v140
  %v363 = vmul.f32 %v359, %v144
  %364 = vst [vmem:[#allocation2 + $0xc0] sm:$0xff] %v360
  %365 = vst [vmem:[#allocation2 + $0xc8] sm:$0xff] %v361
  %366 = vst [vmem:[#allocation2 + $0xd0] sm:$0xff] %v362
  %367 = vst [vmem:[#allocation2 + $0xd8] sm:$0xff] %v363
  %368 = vrot.lane.b32.xlu0 %v199, 112
  %v369 = vpop.permute.xlu0 %368
  %370 = vrot.lane.b32.xlu0 %v200, 112
  %v371 = vpop.permute.xlu0 %370
  %372 = vrot.lane.b32.xlu0 %v201, 112
  %v373 = vpop.permute.xlu0 %372
  %374 = vrot.lane.b32.xlu0 %v202, 112
  %v375 = vpop.permute.xlu0 %374
  %vm376 = vcmask 916480
  %v377 = vsel %vm376, %v369, %v371
  %v378 = vsel %vm376, %v371, %v373
  %v379 = vsel %vm376, %v373, %v375
  %v385 = vsel %vm376, %v375, %v369
  %v386 = vmul.f32 %v377, %v148
  %v387 = vmul.f32 %v378, %v152
  %v388 = vmul.f32 %v379, %v156
  %v389 = vmul.f32 %v385, %v160
  %390 = vst [vmem:[#allocation2 + $0xe0] sm:$0xff] %v386
  %391 = vst [vmem:[#allocation2 + $0xe8] sm:$0xff] %v387
  %392 = vst [vmem:[#allocation2 + $0xf0] sm:$0xff] %v388
  %393 = vst [vmem:[#allocation2 + $0xf8] sm:$0xff] %v389
  %394 = vrot.lane.b32.xlu0 %v199, 111
  %v395 = vpop.permute.xlu0 %394
  %396 = vrot.lane.b32.xlu0 %v200, 111
  %v397 = vpop.permute.xlu0 %396
  %398 = vrot.lane.b32.xlu0 %v201, 111
  %v399 = vpop.permute.xlu0 %398
  %400 = vrot.lane.b32.xlu0 %v202, 111
  %v401 = vpop.permute.xlu0 %400
  %vm402 = vcmask 908288
  %v403 = vsel %vm402, %v395, %v397
  %v404 = vsel %vm402, %v397, %v399
  %v405 = vsel %vm402, %v399, %v401
  %v411 = vsel %vm402, %v401, %v395
  %v412 = vmul.f32 %v403, %v164
  %v413 = vmul.f32 %v404, %v168
  %v414 = vmul.f32 %v405, %v172
  %v415 = vmul.f32 %v411, %v176
  %416 = vst [vmem:[#allocation2 + $0x100] sm:$0xff] %v412
  %417 = vst [vmem:[#allocation2 + $0x108] sm:$0xff] %v413
  %418 = vst [vmem:[#allocation2 + $0x110] sm:$0xff] %v414
  %419 = vst [vmem:[#allocation2 + $0x118] sm:$0xff] %v415
  %v420 = vld [vmem:[#allocation2] sm:$0xff]
  %v421 = vld [vmem:[#allocation2 + $0x8] sm:$0xff]
  %v422 = vld [vmem:[#allocation2 + $0x10] sm:$0xff]
  %v423 = vld [vmem:[#allocation2 + $0x18] sm:$0xff]
  %v424 = vld [vmem:[#allocation2 + $0x20] sm:$0xff]
  %v425 = vld [vmem:[#allocation2 + $0x28] sm:$0xff]
  %v426 = vld [vmem:[#allocation2 + $0x30] sm:$0xff]
  %v427 = vld [vmem:[#allocation2 + $0x38] sm:$0xff]
  %v428 = vld [vmem:[#allocation2 + $0x40] sm:$0xff]
  %v429 = vld [vmem:[#allocation2 + $0x48] sm:$0xff]
  %v430 = vld [vmem:[#allocation2 + $0x50] sm:$0xff]
  %v431 = vld [vmem:[#allocation2 + $0x58] sm:$0xff]
  %v432 = vld [vmem:[#allocation2 + $0x60] sm:$0xff]
  %v433 = vld [vmem:[#allocation2 + $0x68] sm:$0xff]
  %v434 = vld [vmem:[#allocation2 + $0x70] sm:$0xff]
  %v435 = vld [vmem:[#allocation2 + $0x78] sm:$0xff]
  %v436 = vld [vmem:[#allocation2 + $0x80] sm:$0xff]
  %v437 = vld [vmem:[#allocation2 + $0x88] sm:$0xff]
  %v438 = vld [vmem:[#allocation2 + $0x90] sm:$0xff]
  %v439 = vld [vmem:[#allocation2 + $0x98] sm:$0xff]
  %v440 = vld [vmem:[#allocation2 + $0xa0] sm:$0xff]
  %v441 = vld [vmem:[#allocation2 + $0xa8] sm:$0xff]
  %v442 = vld [vmem:[#allocation2 + $0xb0] sm:$0xff]
  %v443 = vld [vmem:[#allocation2 + $0xb8] sm:$0xff]
  %v444 = vld [vmem:[#allocation2 + $0xc0] sm:$0xff]
  %v445 = vld [vmem:[#allocation2 + $0xc8] sm:$0xff]
  %v446 = vld [vmem:[#allocation2 + $0xd0] sm:$0xff]
  %v447 = vld [vmem:[#allocation2 + $0xd8] sm:$0xff]
  %v448 = vld [vmem:[#allocation2 + $0xe0] sm:$0xff]
  %v449 = vld [vmem:[#allocation2 + $0xe8] sm:$0xff]
  %v450 = vld [vmem:[#allocation2 + $0xf0] sm:$0xff]
  %v451 = vld [vmem:[#allocation2 + $0xf8] sm:$0xff]
  %v452 = vld [vmem:[#allocation2 + $0x100] sm:$0xff]
  %v453 = vld [vmem:[#allocation2 + $0x108] sm:$0xff]
  %v454 = vld [vmem:[#allocation2 + $0x110] sm:$0xff]
  %v455 = vld [vmem:[#allocation2 + $0x118] sm:$0xff]
  %456 = vset.pattern.permute.xlu0 2
  %457 = vperm.xlu0 %456, %v185
  %v458 = vpop.permute.xlu0 %457
  %vm460 = vcmask 588800
  %v462 = vsel %vm460, %v203, 0
  %464 = vmatprep.subr.mxu0 0.0
  %465 = vmatpush1.msra.mxu0 0.0
  %466 = vmatprep.subr.mxu0 0.0
  %467 = vmatpush1.msra.mxu0 0.0
  %468 = vmatprep.subr.mxu0 0.0
  %469 = vmatpush1.msra.mxu0 0.0
  %470 = vmatprep.subr.mxu0 0.0
  %471 = vmatpush1.msra.mxu0 0.0
  %472 = vmatprep.subr.mxu0 0.0
  %473 = vmatpush1.msra.mxu0 0.0
  %474 = vmatprep.subr.mxu0 0.0
  %475 = vmatpush1.msra.mxu0 0.0
  %476 = vmatprep.subr.mxu0 0.0
  %477 = vmatpush1.msra.mxu0 0.0
  %478 = vmatprep.subr.mxu0 %v453
  %479 = vmatpush1.msra.mxu0 %v452
  %480 = vmatprep.subr.mxu0 %v449
  %481 = vmatpush1.msra.mxu0 %v448
  %482 = vmatprep.subr.mxu0 %v445
  %483 = vmatpush1.msra.mxu0 %v444
  %484 = vmatprep.subr.mxu0 %v441
  %485 = vmatpush1.msra.mxu0 %v440
  %486 = vmatprep.subr.mxu0 %v437
  %487 = vmatpush1.msra.mxu0 %v436
  %488 = vmatprep.subr.mxu0 %v433
  %489 = vmatpush1.msra.mxu0 %v432
  %490 = vmatprep.subr.mxu0 %v429
  %491 = vmatpush1.msra.mxu0 %v428
  %492 = vmatprep.subr.mxu0 %v425
  %493 = vmatpush1.msra.mxu0 %v424
  %494 = vmatprep.subr.mxu0 %v421
  %495 = vmatpush1.msra.mxu0 %v420
  %496 = vmatprep.subr.mxu0 0.0
  %497 = vmatpush2.msra.mxu0 0.0
  %498 = vmatprep.subr.mxu0 0.0
  %499 = vmatpush2.msra.mxu0 0.0
  %500 = vmatprep.subr.mxu0 0.0
  %501 = vmatpush2.msra.mxu0 0.0
  %502 = vmatprep.subr.mxu0 0.0
  %503 = vmatpush2.msra.mxu0 0.0
  %504 = vmatprep.subr.mxu0 0.0
  %505 = vmatpush2.msra.mxu0 0.0
  %506 = vmatprep.subr.mxu0 0.0
  %507 = vmatpush2.msra.mxu0 0.0
  %508 = vmatprep.subr.mxu0 0.0
  %509 = vmatpush2.msra.mxu0 0.0
  %510 = vmatprep.subr.mxu0 0.0
  %511 = vmatpush2.msra.mxu0 0.0
  %512 = vmatprep.subr.mxu0 0.0
  %513 = vmatpush2.msra.mxu0 0.0
  %514 = vmatprep.subr.mxu0 0.0
  %515 = vmatpush2.msra.mxu0 0.0
  %516 = vmatprep.subr.mxu0 0.0
  %517 = vmatpush2.msra.mxu0 0.0
  %518 = vmatprep.subr.mxu0 0.0
  %519 = vmatpush2.msra.mxu0 0.0
  %520 = vmatprep.subr.mxu0 0.0
  %521 = vmatpush2.msra.mxu0 0.0
  %522 = vmatprep.subr.mxu0 0.0
  %523 = vmatpush2.msra.mxu0 0.0
  %524 = vmatprep.subr.mxu0 0.0
  %525 = vmatpush2.msra.mxu0 0.0
  %526 = vmatprep.subr.mxu0 0.0
  %527 = vmatpush2.msra.mxu0 0.0
  %528 = vmatprep.mubr.f32.mxu0 0.0
  %529 = vmatmul.mubr.f32.gmra.mxu0 %v462
  %v530 = vpop.f32.mrf.mxu0
  %v531 = vadd.f32 %v458, %v530
  %v532 = vpop.f32.mrf.mxu0
  %v533 = vadd.f32 %v458, %v532
  %534 = vdwg.mxu0
  %535 = vmatprep.subr.mxu0 0.0
  %536 = vmatpush1.msra.mxu0 0.0
  %537 = vmatprep.subr.mxu0 0.0
  %538 = vmatpush1.msra.mxu0 0.0
  %539 = vmatprep.subr.mxu0 0.0
  %540 = vmatpush1.msra.mxu0 0.0
  %541 = vmatprep.subr.mxu0 0.0
  %542 = vmatpush1.msra.mxu0 0.0
  %543 = vmatprep.subr.mxu0 0.0
  %544 = vmatpush1.msra.mxu0 0.0
  %545 = vmatprep.subr.mxu0 0.0
  %546 = vmatpush1.msra.mxu0 0.0
  %547 = vmatprep.subr.mxu0 0.0
  %548 = vmatpush1.msra.mxu0 0.0
  %549 = vmatprep.subr.mxu0 %v455
  %550 = vmatpush1.msra.mxu0 %v454
  %551 = vmatprep.subr.mxu0 %v451
  %552 = vmatpush1.msra.mxu0 %v450
  %553 = vmatprep.subr.mxu0 %v447
  %554 = vmatpush1.msra.mxu0 %v446
  %555 = vmatprep.subr.mxu0 %v443
  %556 = vmatpush1.msra.mxu0 %v442
  %557 = vmatprep.subr.mxu0 %v439
  %558 = vmatpush1.msra.mxu0 %v438
  %559 = vmatprep.subr.mxu0 %v435
  %560 = vmatpush1.msra.mxu0 %v434
  %561 = vmatprep.subr.mxu0 %v431
  %562 = vmatpush1.msra.mxu0 %v430
  %563 = vmatprep.subr.mxu0 %v427
  %564 = vmatpush1.msra.mxu0 %v426
  %565 = vmatprep.subr.mxu0 %v423
  %566 = vmatpush1.msra.mxu0 %v422
  %567 = vmatprep.subr.mxu0 0.0
  %568 = vmatpush2.msra.mxu0 0.0
  %569 = vmatprep.subr.mxu0 0.0
  %570 = vmatpush2.msra.mxu0 0.0
  %571 = vmatprep.subr.mxu0 0.0
  %572 = vmatpush2.msra.mxu0 0.0
  %573 = vmatprep.subr.mxu0 0.0
  %574 = vmatpush2.msra.mxu0 0.0
  %575 = vmatprep.subr.mxu0 0.0
  %576 = vmatpush2.msra.mxu0 0.0
  %577 = vmatprep.subr.mxu0 0.0
  %578 = vmatpush2.msra.mxu0 0.0
  %579 = vmatprep.subr.mxu0 0.0
  %580 = vmatpush2.msra.mxu0 0.0
  %581 = vmatprep.subr.mxu0 0.0
  %582 = vmatpush2.msra.mxu0 0.0
  %583 = vmatprep.subr.mxu0 0.0
  %584 = vmatpush2.msra.mxu0 0.0
  %585 = vmatprep.subr.mxu0 0.0
  %586 = vmatpush2.msra.mxu0 0.0
  %587 = vmatprep.subr.mxu0 0.0
  %588 = vmatpush2.msra.mxu0 0.0
  %589 = vmatprep.subr.mxu0 0.0
  %590 = vmatpush2.msra.mxu0 0.0
  %591 = vmatprep.subr.mxu0 0.0
  %592 = vmatpush2.msra.mxu0 0.0
  %593 = vmatprep.subr.mxu0 0.0
  %594 = vmatpush2.msra.mxu0 0.0
  %595 = vmatprep.subr.mxu0 0.0
  %596 = vmatpush2.msra.mxu0 0.0
  %597 = vmatprep.subr.mxu0 0.0
  %598 = vmatpush2.msra.mxu0 0.0
  %599 = vmatprep.mubr.f32.mxu0 0.0
  %600 = vmatmul.mubr.f32.gmra.mxu0 %v462
  %v601 = vpop.f32.mrf.mxu0
  %v602 = vadd.f32 %v458, %v601
  %v603 = vpop.f32.mrf.mxu0
  %v604 = vadd.f32 %v458, %v603
  %605 = vdwg.mxu0
  %v606 = vmax.f32 %v531, 0.0
  %v607 = vmax.f32 %v533, 0.0
  %v608 = vmax.f32 %v602, 0.0
  %v609 = vmax.f32 %v604, 0.0
  %v610 = vld [vmem:[%s4] sm:$0xff]
  %612 = vrot.lane.b32.xlu0 %v609, 17
  %v613 = vpop.permute.xlu0 %612
  %618 = vrot.lane.b32.xlu0 %v606, 17
  %v619 = vpop.permute.xlu0 %618
  %620 = vrot.lane.b32.xlu0 %v607, 17
  %v621 = vpop.permute.xlu0 %620
  %622 = vrot.lane.b32.xlu0 %v608, 17
  %v623 = vpop.permute.xlu0 %622
  %v624 = vsel %vm217, %v619, %v621
  %v625 = vsel %vm217, %v621, %v623
  %v626 = vsel %vm217, %v623, %v613
  %v631 = vsel %vm217, %v613, %v619
  %v632 = vmul.f32 %v631, %v52
  %v633 = vmul.f32 %v624, %v56
  %v634 = vmul.f32 %v625, %v60
  %v635 = vmul.f32 %v626, %v64
  %636 = vst [vmem:[#allocation2] sm:$0xff] %v632
  %637 = vst [vmem:[#allocation2 + $0x8] sm:$0xff] %v633
  %638 = vst [vmem:[#allocation2 + $0x10] sm:$0xff] %v634
  %639 = vst [vmem:[#allocation2 + $0x18] sm:$0xff] %v635
  %640 = vrot.lane.b32.xlu0 %v609, 16
  %v641 = vpop.permute.xlu0 %640
  %643 = vrot.lane.b32.xlu0 %v606, 16
  %v644 = vpop.permute.xlu0 %643
  %645 = vrot.lane.b32.xlu0 %v607, 16
  %v646 = vpop.permute.xlu0 %645
  %647 = vrot.lane.b32.xlu0 %v608, 16
  %v648 = vpop.permute.xlu0 %647
  %v649 = vsel %vm243, %v644, %v646
  %v650 = vsel %vm243, %v646, %v648
  %v651 = vsel %vm243, %v648, %v641
  %v656 = vsel %vm243, %v641, %v644
  %v657 = vmul.f32 %v656, %v68
  %v658 = vmul.f32 %v649, %v72
  %v659 = vmul.f32 %v650, %v76
  %v660 = vmul.f32 %v651, %v80
  %661 = vst [vmem:[#allocation2 + $0x20] sm:$0xff] %v657
  %662 = vst [vmem:[#allocation2 + $0x28] sm:$0xff] %v658
  %663 = vst [vmem:[#allocation2 + $0x30] sm:$0xff] %v659
  %664 = vst [vmem:[#allocation2 + $0x38] sm:$0xff] %v660
  %665 = vrot.lane.b32.xlu0 %v609, 15
  %v666 = vpop.permute.xlu0 %665
  %668 = vrot.lane.b32.xlu0 %v606, 15
  %v669 = vpop.permute.xlu0 %668
  %670 = vrot.lane.b32.xlu0 %v607, 15
  %v671 = vpop.permute.xlu0 %670
  %672 = vrot.lane.b32.xlu0 %v608, 15
  %v673 = vpop.permute.xlu0 %672
  %v674 = vsel %vm269, %v669, %v671
  %v675 = vsel %vm269, %v671, %v673
  %v676 = vsel %vm269, %v673, %v666
  %v681 = vsel %vm269, %v666, %v669
  %v682 = vmul.f32 %v681, %v84
  %v683 = vmul.f32 %v674, %v88
  %v684 = vmul.f32 %v675, %v92
  %v685 = vmul.f32 %v676, %v96
  %686 = vst [vmem:[#allocation2 + $0x40] sm:$0xff] %v682
  %687 = vst [vmem:[#allocation2 + $0x48] sm:$0xff] %v683
  %688 = vst [vmem:[#allocation2 + $0x50] sm:$0xff] %v684
  %689 = vst [vmem:[#allocation2 + $0x58] sm:$0xff] %v685
  %690 = vrot.lane.b32.xlu0 %v609, 1
  %v691 = vpop.permute.xlu0 %690
  %693 = vrot.lane.b32.xlu0 %v606, 1
  %v694 = vpop.permute.xlu0 %693
  %695 = vrot.lane.b32.xlu0 %v607, 1
  %v696 = vpop.permute.xlu0 %695
  %697 = vrot.lane.b32.xlu0 %v608, 1
  %v698 = vpop.permute.xlu0 %697
  %v699 = vsel %vm295, %v694, %v696
  %v700 = vsel %vm295, %v696, %v698
  %v701 = vsel %vm295, %v698, %v691
  %v706 = vsel %vm295, %v691, %v694
  %v707 = vmul.f32 %v706, %v100
  %v708 = vmul.f32 %v699, %v104
  %v709 = vmul.f32 %v700, %v108
  %v710 = vmul.f32 %v701, %v112
  %711 = vst [vmem:[#allocation2 + $0x60] sm:$0xff] %v707
  %712 = vst [vmem:[#allocation2 + $0x68] sm:$0xff] %v708
  %713 = vst [vmem:[#allocation2 + $0x70] sm:$0xff] %v709
  %714 = vst [vmem:[#allocation2 + $0x78] sm:$0xff] %v710
  %715 = vst [vmem:[#allocation2 + $0x80] sm:$0xff] %v606
  %716 = vst [vmem:[#allocation2 + $0x88] sm:$0xff] %v607
  %717 = vst [vmem:[#allocation2 + $0x90] sm:$0xff] %v608
  %718 = vst [vmem:[#allocation2 + $0x98] sm:$0xff] %v609
  %719 = vrot.lane.b32.xlu0 %v606, 127
  %v720 = vpop.permute.xlu0 %719
  %721 = vrot.lane.b32.xlu0 %v607, 127
  %v722 = vpop.permute.xlu0 %721
  %723 = vrot.lane.b32.xlu0 %v608, 127
  %v724 = vpop.permute.xlu0 %723
  %725 = vrot.lane.b32.xlu0 %v609, 127
  %v726 = vpop.permute.xlu0 %725
  %v727 = vsel %vm324, %v720, %v722
  %v728 = vsel %vm324, %v722, %v724
  %v729 = vsel %vm324, %v724, %v726
  %v735 = vsel %vm324, %v726, %v720
  %v736 = vmul.f32 %v727, %v116
  %v737 = vmul.f32 %v728, %v120
  %v738 = vmul.f32 %v729, %v124
  %v739 = vmul.f32 %v735, %v128
  %740 = vst [vmem:[#allocation2 + $0xa0] sm:$0xff] %v736
  %741 = vst [vmem:[#allocation2 + $0xa8] sm:$0xff] %v737
  %742 = vst [vmem:[#allocation2 + $0xb0] sm:$0xff] %v738
  %743 = vst [vmem:[#allocation2 + $0xb8] sm:$0xff] %v739
  %744 = vrot.lane.b32.xlu0 %v606, 113
  %v745 = vpop.permute.xlu0 %744
  %746 = vrot.lane.b32.xlu0 %v607, 113
  %v747 = vpop.permute.xlu0 %746
  %748 = vrot.lane.b32.xlu0 %v608, 113
  %v749 = vpop.permute.xlu0 %748
  %750 = vrot.lane.b32.xlu0 %v609, 113
  %v751 = vpop.permute.xlu0 %750
  %v752 = vsel %vm350, %v745, %v747
  %v753 = vsel %vm350, %v747, %v749
  %v754 = vsel %vm350, %v749, %v751
  %v760 = vsel %vm350, %v751, %v745
  %v761 = vmul.f32 %v752, %v132
  %v762 = vmul.f32 %v753, %v136
  %v763 = vmul.f32 %v754, %v140
  %v764 = vmul.f32 %v760, %v144
  %765 = vst [vmem:[#allocation2 + $0xc0] sm:$0xff] %v761
  %766 = vst [vmem:[#allocation2 + $0xc8] sm:$0xff] %v762
  %767 = vst [vmem:[#allocation2 + $0xd0] sm:$0xff] %v763
  %768 = vst [vmem:[#allocation2 + $0xd8] sm:$0xff] %v764
  %769 = vrot.lane.b32.xlu0 %v606, 112
  %v770 = vpop.permute.xlu0 %769
  %771 = vrot.lane.b32.xlu0 %v607, 112
  %v772 = vpop.permute.xlu0 %771
  %773 = vrot.lane.b32.xlu0 %v608, 112
  %v774 = vpop.permute.xlu0 %773
  %775 = vrot.lane.b32.xlu0 %v609, 112
  %v776 = vpop.permute.xlu0 %775
  %v777 = vsel %vm376, %v770, %v772
  %v778 = vsel %vm376, %v772, %v774
  %v779 = vsel %vm376, %v774, %v776
  %v785 = vsel %vm376, %v776, %v770
  %v786 = vmul.f32 %v777, %v148
  %v787 = vmul.f32 %v778, %v152
  %v788 = vmul.f32 %v779, %v156
  %v789 = vmul.f32 %v785, %v160
  %790 = vst [vmem:[#allocation2 + $0xe0] sm:$0xff] %v786
  %791 = vst [vmem:[#allocation2 + $0xe8] sm:$0xff] %v787
  %792 = vst [vmem:[#allocation2 + $0xf0] sm:$0xff] %v788
  %793 = vst [vmem:[#allocation2 + $0xf8] sm:$0xff] %v789
  %794 = vrot.lane.b32.xlu0 %v606, 111
  %v795 = vpop.permute.xlu0 %794
  %796 = vrot.lane.b32.xlu0 %v607, 111
  %v797 = vpop.permute.xlu0 %796
  %798 = vrot.lane.b32.xlu0 %v608, 111
  %v799 = vpop.permute.xlu0 %798
  %800 = vrot.lane.b32.xlu0 %v609, 111
  %v801 = vpop.permute.xlu0 %800
  %v802 = vsel %vm402, %v795, %v797
  %v803 = vsel %vm402, %v797, %v799
  %v804 = vsel %vm402, %v799, %v801
  %v810 = vsel %vm402, %v801, %v795
  %v811 = vmul.f32 %v802, %v164
  %v812 = vmul.f32 %v803, %v168
  %v813 = vmul.f32 %v804, %v172
  %v814 = vmul.f32 %v810, %v176
  %815 = vst [vmem:[#allocation2 + $0x100] sm:$0xff] %v811
  %816 = vst [vmem:[#allocation2 + $0x108] sm:$0xff] %v812
  %817 = vst [vmem:[#allocation2 + $0x110] sm:$0xff] %v813
  %818 = vst [vmem:[#allocation2 + $0x118] sm:$0xff] %v814
  %v819 = vld [vmem:[#allocation2] sm:$0xff]
  %v820 = vld [vmem:[#allocation2 + $0x8] sm:$0xff]
  %v821 = vld [vmem:[#allocation2 + $0x10] sm:$0xff]
  %v822 = vld [vmem:[#allocation2 + $0x18] sm:$0xff]
  %v823 = vld [vmem:[#allocation2 + $0x20] sm:$0xff]
  %v824 = vld [vmem:[#allocation2 + $0x28] sm:$0xff]
  %v825 = vld [vmem:[#allocation2 + $0x30] sm:$0xff]
  %v826 = vld [vmem:[#allocation2 + $0x38] sm:$0xff]
  %v827 = vld [vmem:[#allocation2 + $0x40] sm:$0xff]
  %v828 = vld [vmem:[#allocation2 + $0x48] sm:$0xff]
  %v829 = vld [vmem:[#allocation2 + $0x50] sm:$0xff]
  %v830 = vld [vmem:[#allocation2 + $0x58] sm:$0xff]
  %v831 = vld [vmem:[#allocation2 + $0x60] sm:$0xff]
  %v832 = vld [vmem:[#allocation2 + $0x68] sm:$0xff]
  %v833 = vld [vmem:[#allocation2 + $0x70] sm:$0xff]
  %v834 = vld [vmem:[#allocation2 + $0x78] sm:$0xff]
  %v835 = vld [vmem:[#allocation2 + $0x80] sm:$0xff]
  %v836 = vld [vmem:[#allocation2 + $0x88] sm:$0xff]
  %v837 = vld [vmem:[#allocation2 + $0x90] sm:$0xff]
  %v838 = vld [vmem:[#allocation2 + $0x98] sm:$0xff]
  %v839 = vld [vmem:[#allocation2 + $0xa0] sm:$0xff]
  %v840 = vld [vmem:[#allocation2 + $0xa8] sm:$0xff]
  %v841 = vld [vmem:[#allocation2 + $0xb0] sm:$0xff]
  %v842 = vld [vmem:[#allocation2 + $0xb8] sm:$0xff]
  %v843 = vld [vmem:[#allocation2 + $0xc0] sm:$0xff]
  %v844 = vld [vmem:[#allocation2 + $0xc8] sm:$0xff]
  %v845 = vld [vmem:[#allocation2 + $0xd0] sm:$0xff]
  %v846 = vld [vmem:[#allocation2 + $0xd8] sm:$0xff]
  %v847 = vld [vmem:[#allocation2 + $0xe0] sm:$0xff]
  %v848 = vld [vmem:[#allocation2 + $0xe8] sm:$0xff]
  %v849 = vld [vmem:[#allocation2 + $0xf0] sm:$0xff]
  %v850 = vld [vmem:[#allocation2 + $0xf8] sm:$0xff]
  %v851 = vld [vmem:[#allocation2 + $0x100] sm:$0xff]
  %v852 = vld [vmem:[#allocation2 + $0x108] sm:$0xff]
  %v853 = vld [vmem:[#allocation2 + $0x110] sm:$0xff]
  %v854 = vld [vmem:[#allocation2 + $0x118] sm:$0xff]
  %855 = vset.pattern.permute.xlu0 3
  %856 = vperm.xlu0 %855, %v185
  %v857 = vpop.permute.xlu0 %856
  %v860 = vsel %vm460, %v610, 0
  %862 = vmatprep.subr.mxu0 0.0
  %863 = vmatpush1.msra.mxu0 0.0
  %864 = vmatprep.subr.mxu0 0.0
  %865 = vmatpush1.msra.mxu0 0.0
  %866 = vmatprep.subr.mxu0 0.0
  %867 = vmatpush1.msra.mxu0 0.0
  %868 = vmatprep.subr.mxu0 0.0
  %869 = vmatpush1.msra.mxu0 0.0
  %870 = vmatprep.subr.mxu0 0.0
  %871 = vmatpush1.msra.mxu0 0.0
  %872 = vmatprep.subr.mxu0 0.0
  %873 = vmatpush1.msra.mxu0 0.0
  %874 = vmatprep.subr.mxu0 0.0
  %875 = vmatpush1.msra.mxu0 0.0
  %876 = vmatprep.subr.mxu0 %v852
  %877 = vmatpush1.msra.mxu0 %v851
  %878 = vmatprep.subr.mxu0 %v848
  %879 = vmatpush1.msra.mxu0 %v847
  %880 = vmatprep.subr.mxu0 %v844
  %881 = vmatpush1.msra.mxu0 %v843
  %882 = vmatprep.subr.mxu0 %v840
  %883 = vmatpush1.msra.mxu0 %v839
  %884 = vmatprep.subr.mxu0 %v836
  %885 = vmatpush1.msra.mxu0 %v835
  %886 = vmatprep.subr.mxu0 %v832
  %887 = vmatpush1.msra.mxu0 %v831
  %888 = vmatprep.subr.mxu0 %v828
  %889 = vmatpush1.msra.mxu0 %v827
  %890 = vmatprep.subr.mxu0 %v824
  %891 = vmatpush1.msra.mxu0 %v823
  %892 = vmatprep.subr.mxu0 %v820
  %893 = vmatpush1.msra.mxu0 %v819
  %894 = vmatprep.subr.mxu0 0.0
  %895 = vmatpush2.msra.mxu0 0.0
  %896 = vmatprep.subr.mxu0 0.0
  %897 = vmatpush2.msra.mxu0 0.0
  %898 = vmatprep.subr.mxu0 0.0
  %899 = vmatpush2.msra.mxu0 0.0
  %900 = vmatprep.subr.mxu0 0.0
  %901 = vmatpush2.msra.mxu0 0.0
  %902 = vmatprep.subr.mxu0 0.0
  %903 = vmatpush2.msra.mxu0 0.0
  %904 = vmatprep.subr.mxu0 0.0
  %905 = vmatpush2.msra.mxu0 0.0
  %906 = vmatprep.subr.mxu0 0.0
  %907 = vmatpush2.msra.mxu0 0.0
  %908 = vmatprep.subr.mxu0 0.0
  %909 = vmatpush2.msra.mxu0 0.0
  %910 = vmatprep.subr.mxu0 0.0
  %911 = vmatpush2.msra.mxu0 0.0
  %912 = vmatprep.subr.mxu0 0.0
  %913 = vmatpush2.msra.mxu0 0.0
  %914 = vmatprep.subr.mxu0 0.0
  %915 = vmatpush2.msra.mxu0 0.0
  %916 = vmatprep.subr.mxu0 0.0
  %917 = vmatpush2.msra.mxu0 0.0
  %918 = vmatprep.subr.mxu0 0.0
  %919 = vmatpush2.msra.mxu0 0.0
  %920 = vmatprep.subr.mxu0 0.0
  %921 = vmatpush2.msra.mxu0 0.0
  %922 = vmatprep.subr.mxu0 0.0
  %923 = vmatpush2.msra.mxu0 0.0
  %924 = vmatprep.subr.mxu0 0.0
  %925 = vmatpush2.msra.mxu0 0.0
  %926 = vmatprep.mubr.f32.mxu0 0.0
  %927 = vmatmul.mubr.f32.gmra.mxu0 %v860
  %v928 = vpop.f32.mrf.mxu0
  %v929 = vadd.f32 %v857, %v928
  %v930 = vpop.f32.mrf.mxu0
  %v931 = vadd.f32 %v857, %v930
  %932 = vdwg.mxu0
  %933 = vmatprep.subr.mxu0 0.0
  %934 = vmatpush1.msra.mxu0 0.0
  %935 = vmatprep.subr.mxu0 0.0
  %936 = vmatpush1.msra.mxu0 0.0
  %937 = vmatprep.subr.mxu0 0.0
  %938 = vmatpush1.msra.mxu0 0.0
  %939 = vmatprep.subr.mxu0 0.0
  %940 = vmatpush1.msra.mxu0 0.0
  %941 = vmatprep.subr.mxu0 0.0
  %942 = vmatpush1.msra.mxu0 0.0
  %943 = vmatprep.subr.mxu0 0.0
  %944 = vmatpush1.msra.mxu0 0.0
  %945 = vmatprep.subr.mxu0 0.0
  %946 = vmatpush1.msra.mxu0 0.0
  %947 = vmatprep.subr.mxu0 %v854
  %948 = vmatpush1.msra.mxu0 %v853
  %949 = vmatprep.subr.mxu0 %v850
  %950 = vmatpush1.msra.mxu0 %v849
  %951 = vmatprep.subr.mxu0 %v846
  %952 = vmatpush1.msra.mxu0 %v845
  %953 = vmatprep.subr.mxu0 %v842
  %954 = vmatpush1.msra.mxu0 %v841
  %955 = vmatprep.subr.mxu0 %v838
  %956 = vmatpush1.msra.mxu0 %v837
  %957 = vmatprep.subr.mxu0 %v834
  %958 = vmatpush1.msra.mxu0 %v833
  %959 = vmatprep.subr.mxu0 %v830
  %960 = vmatpush1.msra.mxu0 %v829
  %961 = vmatprep.subr.mxu0 %v826
  %962 = vmatpush1.msra.mxu0 %v825
  %963 = vmatprep.subr.mxu0 %v822
  %964 = vmatpush1.msra.mxu0 %v821
  %965 = vmatprep.subr.mxu0 0.0
  %966 = vmatpush2.msra.mxu0 0.0
  %967 = vmatprep.subr.mxu0 0.0
  %968 = vmatpush2.msra.mxu0 0.0
  %969 = vmatprep.subr.mxu0 0.0
  %970 = vmatpush2.msra.mxu0 0.0
  %971 = vmatprep.subr.mxu0 0.0
  %972 = vmatpush2.msra.mxu0 0.0
  %973 = vmatprep.subr.mxu0 0.0
  %974 = vmatpush2.msra.mxu0 0.0
  %975 = vmatprep.subr.mxu0 0.0
  %976 = vmatpush2.msra.mxu0 0.0
  %977 = vmatprep.subr.mxu0 0.0
  %978 = vmatpush2.msra.mxu0 0.0
  %979 = vmatprep.subr.mxu0 0.0
  %980 = vmatpush2.msra.mxu0 0.0
  %981 = vmatprep.subr.mxu0 0.0
  %982 = vmatpush2.msra.mxu0 0.0
  %983 = vmatprep.subr.mxu0 0.0
  %984 = vmatpush2.msra.mxu0 0.0
  %985 = vmatprep.subr.mxu0 0.0
  %986 = vmatpush2.msra.mxu0 0.0
  %987 = vmatprep.subr.mxu0 0.0
  %988 = vmatpush2.msra.mxu0 0.0
  %989 = vmatprep.subr.mxu0 0.0
  %990 = vmatpush2.msra.mxu0 0.0
  %991 = vmatprep.subr.mxu0 0.0
  %992 = vmatpush2.msra.mxu0 0.0
  %993 = vmatprep.subr.mxu0 0.0
  %994 = vmatpush2.msra.mxu0 0.0
  %995 = vmatprep.subr.mxu0 0.0
  %996 = vmatpush2.msra.mxu0 0.0
  %997 = vmatprep.mubr.f32.mxu0 0.0
  %998 = vmatmul.mubr.f32.gmra.mxu0 %v860
  %v999 = vpop.f32.mrf.mxu0
  %v1000 = vadd.f32 %v857, %v999
  %v1001 = vpop.f32.mrf.mxu0
  %v1002 = vadd.f32 %v857, %v1001
  %1003 = vdwg.mxu0
  %1008 = vrot.lane.b32.xlu0 %v929, 127
  %v1009 = vpop.permute.xlu0 %1008
  %1010 = vrot.lane.b32.xlu0 %v931, 127
  %v1011 = vpop.permute.xlu0 %1010
  %1012 = vrot.lane.b32.xlu0 %v1000, 127
  %v1013 = vpop.permute.xlu0 %1012
  %1014 = vrot.lane.b32.xlu0 %v1002, 127
  %v1015 = vpop.permute.xlu0 %1014
  %v1016 = vsel %vm324, %v1009, %v1011
  %v1017 = vsel %vm324, %v1011, %v1013
  %v1018 = vsel %vm324, %v1013, %v1015
  %v1024 = vsel %vm324, %v1015, %v1009
  %v1025 = vmax.f32 %v929, %v1016
  %v1026 = vmax.f32 %v931, %v1017
  %v1027 = vmax.f32 %v1000, %v1018
  %v1028 = vmax.f32 %v1002, %v1024
  %1033 = vrot.lane.b32.xlu0 %v1025, 126
  %v1034 = vpop.permute.xlu0 %1033
  %1035 = vrot.lane.b32.xlu0 %v1026, 126
  %v1036 = vpop.permute.xlu0 %1035
  %1037 = vrot.lane.b32.xlu0 %v1027, 126
  %v1038 = vpop.permute.xlu0 %1037
  %1039 = vrot.lane.b32.xlu0 %v1028, 126
  %v1040 = vpop.permute.xlu0 %1039
  %vm1041 = vcmask 1031168
  %v1042 = vsel %vm1041, %v1034, %v1036
  %v1043 = vsel %vm1041, %v1036, %v1038
  %v1044 = vsel %vm1041, %v1038, %v1040
  %v1050 = vsel %vm1041, %v1040, %v1034
  %v1051 = vmax.f32 %v1025, %v1042
  %v1052 = vmax.f32 %v1026, %v1043
  %v1053 = vmax.f32 %v1027, %v1044
  %v1054 = vmax.f32 %v1028, %v1050
  %1059 = vrot.lane.b32.xlu0 %v1051, 112
  %v1060 = vpop.permute.xlu0 %1059
  %1061 = vrot.lane.b32.xlu0 %v1052, 112
  %v1062 = vpop.permute.xlu0 %1061
  %1063 = vrot.lane.b32.xlu0 %v1053, 112
  %v1064 = vpop.permute.xlu0 %1063
  %1065 = vrot.lane.b32.xlu0 %v1054, 112
  %v1066 = vpop.permute.xlu0 %1065
  %v1067 = vsel %vm376, %v1060, %v1062
  %v1068 = vsel %vm376, %v1062, %v1064
  %v1069 = vsel %vm376, %v1064, %v1066
  %v1075 = vsel %vm376, %v1066, %v1060
  %v1076 = vmax.f32 %v1051, %v1067
  %v1077 = vmax.f32 %v1052, %v1068
  %v1078 = vmax.f32 %v1053, %v1069
  %v1079 = vmax.f32 %v1054, %v1075
  %1084 = vrot.lane.b32.xlu0 %v1076, 96
  %v1085 = vpop.permute.xlu0 %1084
  %1086 = vrot.lane.b32.xlu0 %v1077, 96
  %v1087 = vpop.permute.xlu0 %1086
  %1088 = vrot.lane.b32.xlu0 %v1078, 96
  %v1089 = vpop.permute.xlu0 %1088
  %1090 = vrot.lane.b32.xlu0 %v1079, 96
  %v1091 = vpop.permute.xlu0 %1090
  %vm1092 = vcmask 785408
  %v1093 = vsel %vm1092, %v1085, %v1087
  %v1094 = vsel %vm1092, %v1087, %v1089
  %v1095 = vsel %vm1092, %v1089, %v1091
  %v1101 = vsel %vm1092, %v1091, %v1085
  %v1102 = vmax.f32 %v1076, %v1093
  %v1103 = vmax.f32 %v1077, %v1094
  %v1104 = vmax.f32 %v1078, %v1095
  %v1105 = vmax.f32 %v1079, %v1101
  %v1106 = vld [vmem:[%s6] sm:$0xff]
  %v1107 = vld [vmem:[%s6 + $0x8] sm:$0xff]
  %v1108 = vld [vmem:[%s6 + $0x10] sm:$0xff]
  %v1109 = vld [vmem:[%s6 + $0x18] sm:$0xff]
  %v1110 = vld [vmem:[%s6 + $0x20] sm:$0xff]
  %v1111 = vld [vmem:[%s6 + $0x28] sm:$0xff]
  %v1112 = vld [vmem:[%s6 + $0x30] sm:$0xff]
  %v1113 = vld [vmem:[%s6 + $0x38] sm:$0xff]
  %v1114 = vld [vmem:[%s6 + $0x40] sm:$0xff]
  %v1115 = vld [vmem:[%s6 + $0x48] sm:$0xff]
  %v1116 = vld [vmem:[%s6 + $0x50] sm:$0xff]
  %v1117 = vld [vmem:[%s6 + $0x58] sm:$0xff]
  %v1118 = vld [vmem:[%s6 + $0x60] sm:$0xff]
  %v1119 = vld [vmem:[%s6 + $0x68] sm:$0xff]
  %v1120 = vld [vmem:[%s6 + $0x70] sm:$0xff]
  %v1121 = vld [vmem:[%s6 + $0x78] sm:$0xff]
  %v1122 = vld [vmem:[%s6 + $0x80] sm:$0xff]
  %v1123 = vld [vmem:[%s6 + $0x88] sm:$0xff]
  %v1124 = vld [vmem:[%s6 + $0x90] sm:$0xff]
  %v1125 = vld [vmem:[%s6 + $0x98] sm:$0xff]
  %v1126 = vld [vmem:[%s6 + $0xa0] sm:$0xff]
  %v1127 = vld [vmem:[%s6 + $0xa8] sm:$0xff]
  %v1128 = vld [vmem:[%s6 + $0xb0] sm:$0xff]
  %v1129 = vld [vmem:[%s6 + $0xb8] sm:$0xff]
  %v1130 = vld [vmem:[%s6 + $0xc0] sm:$0xff]
  %v1131 = vld [vmem:[%s6 + $0xc8] sm:$0xff]
  %v1132 = vld [vmem:[%s6 + $0xd0] sm:$0xff]
  %v1133 = vld [vmem:[%s6 + $0xd8] sm:$0xff]
  %v1134 = vld [vmem:[%s6 + $0xe0] sm:$0xff]
  %v1135 = vld [vmem:[%s6 + $0xe8] sm:$0xff]
  %v1136 = vld [vmem:[%s6 + $0xf0] sm:$0xff]
  %v1137 = vld [vmem:[%s6 + $0xf8] sm:$0xff]
  %v1138 = vld [vmem:[%s6 + $0x100] sm:$0xff]
  %v1139 = vld [vmem:[%s6 + $0x108] sm:$0xff]
  %v1140 = vld [vmem:[%s6 + $0x110] sm:$0xff]
  %v1141 = vld [vmem:[%s6 + $0x118] sm:$0xff]
  %v1142 = vld [vmem:[%s6 + $0x120] sm:$0xff]
  %v1143 = vld [vmem:[%s6 + $0x128] sm:$0xff]
  %v1144 = vld [vmem:[%s6 + $0x130] sm:$0xff]
  %v1145 = vld [vmem:[%s6 + $0x138] sm:$0xff]
  %v1146 = vld [vmem:[%s6 + $0x140] sm:$0xff]
  %v1147 = vld [vmem:[%s6 + $0x148] sm:$0xff]
  %v1148 = vld [vmem:[%s6 + $0x150] sm:$0xff]
  %v1149 = vld [vmem:[%s6 + $0x158] sm:$0xff]
  %v1150 = vld [vmem:[%s6 + $0x160] sm:$0xff]
  %v1151 = vld [vmem:[%s6 + $0x168] sm:$0xff]
  %v1152 = vld [vmem:[%s6 + $0x170] sm:$0xff]
  %v1153 = vld [vmem:[%s6 + $0x178] sm:$0xff]
  %v1154 = vld [vmem:[%s6 + $0x180] sm:$0xff]
  %v1155 = vld [vmem:[%s6 + $0x188] sm:$0xff]
  %v1156 = vld [vmem:[%s6 + $0x190] sm:$0xff]
  %v1157 = vld [vmem:[%s6 + $0x198] sm:$0xff]
  %v1158 = vld [vmem:[%s6 + $0x1a0] sm:$0xff]
  %v1159 = vld [vmem:[%s6 + $0x1a8] sm:$0xff]
  %v1160 = vld [vmem:[%s6 + $0x1b0] sm:$0xff]
  %v1161 = vld [vmem:[%s6 + $0x1b8] sm:$0xff]
  %v1162 = vld [vmem:[%s6 + $0x1c0] sm:$0xff]
  %v1163 = vld [vmem:[%s6 + $0x1c8] sm:$0xff]
  %v1164 = vld [vmem:[%s6 + $0x1d0] sm:$0xff]
  %v1165 = vld [vmem:[%s6 + $0x1d8] sm:$0xff]
  %v1166 = vld [vmem:[%s6 + $0x1e0] sm:$0xff]
  %v1167 = vld [vmem:[%s6 + $0x1e8] sm:$0xff]
  %v1168 = vld [vmem:[%s6 + $0x1f0] sm:$0xff]
  %v1169 = vld [vmem:[%s6 + $0x1f8] sm:$0xff]
  %1170 = vmatprep.subr.mxu0 0.0
  %1171 = vmatpush1.msra.mxu0 %v1121
  %1172 = vmatprep.subr.mxu0 0.0
  %1173 = vmatpush1.msra.mxu0 %v1120
  %1174 = vmatprep.subr.mxu0 0.0
  %1175 = vmatpush1.msra.mxu0 %v1119
  %1176 = vmatprep.subr.mxu0 0.0
  %1177 = vmatpush1.msra.mxu0 %v1118
  %1178 = vmatprep.subr.mxu0 0.0
  %1179 = vmatpush1.msra.mxu0 %v1117
  %1180 = vmatprep.subr.mxu0 0.0
  %1181 = vmatpush1.msra.mxu0 %v1116
  %1182 = vmatprep.subr.mxu0 0.0
  %1183 = vmatpush1.msra.mxu0 %v1115
  %1184 = vmatprep.subr.mxu0 0.0
  %1185 = vmatpush1.msra.mxu0 %v1114
  %1186 = vmatprep.subr.mxu0 0.0
  %1187 = vmatpush1.msra.mxu0 %v1113
  %1188 = vmatprep.subr.mxu0 0.0
  %1189 = vmatpush1.msra.mxu0 %v1112
  %1190 = vmatprep.subr.mxu0 0.0
  %1191 = vmatpush1.msra.mxu0 %v1111
  %1192 = vmatprep.subr.mxu0 0.0
  %1193 = vmatpush1.msra.mxu0 %v1110
  %1194 = vmatprep.subr.mxu0 0.0
  %1195 = vmatpush1.msra.mxu0 %v1109
  %1196 = vmatprep.subr.mxu0 0.0
  %1197 = vmatpush1.msra.mxu0 %v1108
  %1198 = vmatprep.subr.mxu0 0.0
  %1199 = vmatpush1.msra.mxu0 %v1107
  %1200 = vmatprep.subr.mxu0 0.0
  %1201 = vmatpush1.msra.mxu0 %v1106
  %1202 = vmatprep.subr.mxu0 0.0
  %1203 = vmatpush2.msra.mxu0 %v1137
  %1204 = vmatprep.subr.mxu0 0.0
  %1205 = vmatpush2.msra.mxu0 %v1136
  %1206 = vmatprep.subr.mxu0 0.0
  %1207 = vmatpush2.msra.mxu0 %v1135
  %1208 = vmatprep.subr.mxu0 0.0
  %1209 = vmatpush2.msra.mxu0 %v1134
  %1210 = vmatprep.subr.mxu0 0.0
  %1211 = vmatpush2.msra.mxu0 %v1133
  %1212 = vmatprep.subr.mxu0 0.0
  %1213 = vmatpush2.msra.mxu0 %v1132
  %1214 = vmatprep.subr.mxu0 0.0
  %1215 = vmatpush2.msra.mxu0 %v1131
  %1216 = vmatprep.subr.mxu0 0.0
  %1217 = vmatpush2.msra.mxu0 %v1130
  %1218 = vmatprep.subr.mxu0 0.0
  %1219 = vmatpush2.msra.mxu0 %v1129
  %1220 = vmatprep.subr.mxu0 0.0
  %1221 = vmatpush2.msra.mxu0 %v1128
  %1222 = vmatprep.subr.mxu0 0.0
  %1223 = vmatpush2.msra.mxu0 %v1127
  %1224 = vmatprep.subr.mxu0 0.0
  %1225 = vmatpush2.msra.mxu0 %v1126
  %1226 = vmatprep.subr.mxu0 0.0
  %1227 = vmatpush2.msra.mxu0 %v1125
  %1228 = vmatprep.subr.mxu0 0.0
  %1229 = vmatpush2.msra.mxu0 %v1124
  %1230 = vmatprep.subr.mxu0 0.0
  %1231 = vmatpush2.msra.mxu0 %v1123
  %1232 = vmatprep.subr.mxu0 0.0
  %1233 = vmatpush2.msra.mxu0 %v1122
  %1234 = vmatprep.mubr.f32.mxu0 %v1103
  %1235 = vmatmul.mubr.f32.gmra.mxu0 %v1102
  %v1236 = vpop.f32.mrf.mxu0
  %v1237 = vadd.f32 0.0, %v1236
  %v1238 = vpop.f32.mrf.mxu0
  %1239 = vdwg.mxu0
  %1240 = vmatprep.subr.mxu0 0.0
  %1241 = vmatpush1.msra.mxu0 %v1153
  %1242 = vmatprep.subr.mxu0 0.0
  %1243 = vmatpush1.msra.mxu0 %v1152
  %1244 = vmatprep.subr.mxu0 0.0
  %1245 = vmatpush1.msra.mxu0 %v1151
  %1246 = vmatprep.subr.mxu0 0.0
  %1247 = vmatpush1.msra.mxu0 %v1150
  %1248 = vmatprep.subr.mxu0 0.0
  %1249 = vmatpush1.msra.mxu0 %v1149
  %1250 = vmatprep.subr.mxu0 0.0
  %1251 = vmatpush1.msra.mxu0 %v1148
  %1252 = vmatprep.subr.mxu0 0.0
  %1253 = vmatpush1.msra.mxu0 %v1147
  %1254 = vmatprep.subr.mxu0 0.0
  %1255 = vmatpush1.msra.mxu0 %v1146
  %1256 = vmatprep.subr.mxu0 0.0
  %1257 = vmatpush1.msra.mxu0 %v1145
  %1258 = vmatprep.subr.mxu0 0.0
  %1259 = vmatpush1.msra.mxu0 %v1144
  %1260 = vmatprep.subr.mxu0 0.0
  %1261 = vmatpush1.msra.mxu0 %v1143
  %1262 = vmatprep.subr.mxu0 0.0
  %1263 = vmatpush1.msra.mxu0 %v1142
  %1264 = vmatprep.subr.mxu0 0.0
  %1265 = vmatpush1.msra.mxu0 %v1141
  %1266 = vmatprep.subr.mxu0 0.0
  %1267 = vmatpush1.msra.mxu0 %v1140
  %1268 = vmatprep.subr.mxu0 0.0
  %1269 = vmatpush1.msra.mxu0 %v1139
  %1270 = vmatprep.subr.mxu0 0.0
  %1271 = vmatpush1.msra.mxu0 %v1138
  %1272 = vmatprep.subr.mxu0 0.0
  %1273 = vmatpush2.msra.mxu0 %v1169
  %1274 = vmatprep.subr.mxu0 0.0
  %1275 = vmatpush2.msra.mxu0 %v1168
  %1276 = vmatprep.subr.mxu0 0.0
  %1277 = vmatpush2.msra.mxu0 %v1167
  %1278 = vmatprep.subr.mxu0 0.0
  %1279 = vmatpush2.msra.mxu0 %v1166
  %1280 = vmatprep.subr.mxu0 0.0
  %1281 = vmatpush2.msra.mxu0 %v1165
  %1282 = vmatprep.subr.mxu0 0.0
  %1283 = vmatpush2.msra.mxu0 %v1164
  %1284 = vmatprep.subr.mxu0 0.0
  %1285 = vmatpush2.msra.mxu0 %v1163
  %1286 = vmatprep.subr.mxu0 0.0
  %1287 = vmatpush2.msra.mxu0 %v1162
  %1288 = vmatprep.subr.mxu0 0.0
  %1289 = vmatpush2.msra.mxu0 %v1161
  %1290 = vmatprep.subr.mxu0 0.0
  %1291 = vmatpush2.msra.mxu0 %v1160
  %1292 = vmatprep.subr.mxu0 0.0
  %1293 = vmatpush2.msra.mxu0 %v1159
  %1294 = vmatprep.subr.mxu0 0.0
  %1295 = vmatpush2.msra.mxu0 %v1158
  %1296 = vmatprep.subr.mxu0 0.0
  %1297 = vmatpush2.msra.mxu0 %v1157
  %1298 = vmatprep.subr.mxu0 0.0
  %1299 = vmatpush2.msra.mxu0 %v1156
  %1300 = vmatprep.subr.mxu0 0.0
  %1301 = vmatpush2.msra.mxu0 %v1155
  %1302 = vmatprep.subr.mxu0 0.0
  %1303 = vmatpush2.msra.mxu0 %v1154
  %1304 = vmatprep.mubr.f32.mxu0 %v1105
  %1305 = vmatmul.mubr.f32.gmra.mxu0 %v1104
  %v1306 = vpop.f32.mrf.mxu0
  %v1307 = vadd.f32 %v1237, %v1306
  %v1308 = vpop.f32.mrf.mxu0
  %1309 = vdwg.mxu0
  %v1310 = vmax.f32 %v1307, 0.0
  %v1311 = vld [vmem:[%s7] sm:$0xff]
  %v1312 = vld [vmem:[%s7 + $0x8] sm:$0xff]
  %v1314 = vsel %vm243, %v1310, 0
  %1316 = vmatprep.subr.mxu0 0.0
  %1317 = vmatpush1.msra.mxu0 0.0
  %1318 = vmatprep.subr.mxu0 0.0
  %1319 = vmatpush1.msra.mxu0 0.0
  %1320 = vmatprep.subr.mxu0 0.0
  %1321 = vmatpush1.msra.mxu0 0.0
  %1322 = vmatprep.subr.mxu0 0.0
  %1323 = vmatpush1.msra.mxu0 0.0
  %1324 = vmatprep.subr.mxu0 0.0
  %1325 = vmatpush1.msra.mxu0 0.0
  %1326 = vmatprep.subr.mxu0 0.0
  %1327 = vmatpush1.msra.mxu0 0.0
  %1328 = vmatprep.subr.mxu0 0.0
  %1329 = vmatpush1.msra.mxu0 0.0
  %1330 = vmatprep.subr.mxu0 0.0
  %1331 = vmatpush1.msra.mxu0 0.0
  %1332 = vmatprep.subr.mxu0 0.0
  %1333 = vmatpush1.msra.mxu0 0.0
  %1334 = vmatprep.subr.mxu0 0.0
  %1335 = vmatpush1.msra.mxu0 0.0
  %1336 = vmatprep.subr.mxu0 0.0
  %1337 = vmatpush1.msra.mxu0 0.0
  %1338 = vmatprep.subr.mxu0 0.0
  %1339 = vmatpush1.msra.mxu0 0.0
  %1340 = vmatprep.subr.mxu0 0.0
  %1341 = vmatpush1.msra.mxu0 0.0
  %1342 = vmatprep.subr.mxu0 0.0
  %1343 = vmatpush1.msra.mxu0 0.0
  %1344 = vmatprep.subr.mxu0 0.0
  %1345 = vmatpush1.msra.mxu0 %v1312
  %1346 = vmatprep.subr.mxu0 0.0
  %1347 = vmatpush1.msra.mxu0 %v1311
  %1348 = vmatprep.subr.mxu0 0.0
  %1349 = vmatpush2.msra.mxu0 0.0
  %1350 = vmatprep.subr.mxu0 0.0
  %1351 = vmatpush2.msra.mxu0 0.0
  %1352 = vmatprep.subr.mxu0 0.0
  %1353 = vmatpush2.msra.mxu0 0.0
  %1354 = vmatprep.subr.mxu0 0.0
  %1355 = vmatpush2.msra.mxu0 0.0
  %1356 = vmatprep.subr.mxu0 0.0
  %1357 = vmatpush2.msra.mxu0 0.0
  %1358 = vmatprep.subr.mxu0 0.0
  %1359 = vmatpush2.msra.mxu0 0.0
  %1360 = vmatprep.subr.mxu0 0.0
  %1361 = vmatpush2.msra.mxu0 0.0
  %1362 = vmatprep.subr.mxu0 0.0
  %1363 = vmatpush2.msra.mxu0 0.0
  %1364 = vmatprep.subr.mxu0 0.0
  %1365 = vmatpush2.msra.mxu0 0.0
  %1366 = vmatprep.subr.mxu0 0.0
  %1367 = vmatpush2.msra.mxu0 0.0
  %1368 = vmatprep.subr.mxu0 0.0
  %1369 = vmatpush2.msra.mxu0 0.0
  %1370 = vmatprep.subr.mxu0 0.0
  %1371 = vmatpush2.msra.mxu0 0.0
  %1372 = vmatprep.subr.mxu0 0.0
  %1373 = vmatpush2.msra.mxu0 0.0
  %1374 = vmatprep.subr.mxu0 0.0
  %1375 = vmatpush2.msra.mxu0 0.0
  %1376 = vmatprep.subr.mxu0 0.0
  %1377 = vmatpush2.msra.mxu0 0.0
  %1378 = vmatprep.subr.mxu0 0.0
  %1379 = vmatpush2.msra.mxu0 0.0
  %1380 = vmatprep.mubr.f32.mxu0 0.0
  %1381 = vmatmul.mubr.f32.gmra.mxu0 %v1314
  %v1382 = vpop.f32.mrf.mxu0
  %v1383 = vadd.f32 0.0, %v1382
  %v1384 = vpop.f32.mrf.mxu0
  %1385 = vdwg.mxu0
  %v1386 = vxor.u32 %v1383, 2147483648
  %v1387 = vmul.f32 %v1386, 1.442695
  %v1388 = vpow.pop %v1387
  %v1389 = vadd.f32 %v1388, 1.0
  %v1390 = vrcp.pop %v1389
  %v1391 = vmul.f32 1.0, %v1390
  %vm1392 = vcmask 261120
  %v1394 = vsel %vm1392, %v1391, 0
  %1396 = vmatprep.subr.mxu0 0.0
  %1397 = vmatpush1.msra.mxu0 0.0
  %1398 = vmatprep.subr.mxu0 0.0
  %1399 = vmatpush1.msra.mxu0 0.0
  %1400 = vmatprep.subr.mxu0 0.0
  %1401 = vmatpush1.msra.mxu0 0.0
  %1402 = vmatprep.subr.mxu0 0.0
  %1403 = vmatpush1.msra.mxu0 0.0
  %1404 = vmatprep.subr.mxu0 0.0
  %1405 = vmatpush1.msra.mxu0 0.0
  %1406 = vmatprep.subr.mxu0 0.0
  %1407 = vmatpush1.msra.mxu0 0.0
  %1408 = vmatprep.subr.mxu0 0.0
  %1409 = vmatpush1.msra.mxu0 0.0
  %1410 = vmatprep.subr.mxu0 0.0
  %1411 = vmatpush1.msra.mxu0 0.0
  %1412 = vmatprep.subr.mxu0 0.0
  %1413 = vmatpush1.msra.mxu0 0.0
  %1414 = vmatprep.subr.mxu0 0.0
  %1415 = vmatpush1.msra.mxu0 0.0
  %1416 = vmatprep.subr.mxu0 0.0
  %1417 = vmatpush1.msra.mxu0 0.0
  %1418 = vmatprep.subr.mxu0 0.0
  %1419 = vmatpush1.msra.mxu0 0.0
  %1420 = vmatprep.subr.mxu0 0.0
  %1421 = vmatpush1.msra.mxu0 %v180
  %1422 = vmatprep.subr.mxu0 0.0
  %1423 = vmatpush1.msra.mxu0 %v179
  %1424 = vmatprep.subr.mxu0 0.0
  %1425 = vmatpush1.msra.mxu0 %v178
  %1426 = vmatprep.subr.mxu0 0.0
  %1427 = vmatpush1.msra.mxu0 %v177
  %1428 = vmatprep.subr.mxu0 0.0
  %1429 = vmatpush2.msra.mxu0 0.0
  %1430 = vmatprep.subr.mxu0 0.0
  %1431 = vmatpush2.msra.mxu0 0.0
  %1432 = vmatprep.subr.mxu0 0.0
  %1433 = vmatpush2.msra.mxu0 0.0
  %1434 = vmatprep.subr.mxu0 0.0
  %1435 = vmatpush2.msra.mxu0 0.0
  %1436 = vmatprep.subr.mxu0 0.0
  %1437 = vmatpush2.msra.mxu0 0.0
  %1438 = vmatprep.subr.mxu0 0.0
  %1439 = vmatpush2.msra.mxu0 0.0
  %1440 = vmatprep.subr.mxu0 0.0
  %1441 = vmatpush2.msra.mxu0 0.0
  %1442 = vmatprep.subr.mxu0 0.0
  %1443 = vmatpush2.msra.mxu0 0.0
  %1444 = vmatprep.subr.mxu0 0.0
  %1445 = vmatpush2.msra.mxu0 0.0
  %1446 = vmatprep.subr.mxu0 0.0
  %1447 = vmatpush2.msra.mxu0 0.0
  %1448 = vmatprep.subr.mxu0 0.0
  %1449 = vmatpush2.msra.mxu0 0.0
  %1450 = vmatprep.subr.mxu0 0.0
  %1451 = vmatpush2.msra.mxu0 0.0
  %1452 = vmatprep.subr.mxu0 0.0
  %1453 = vmatpush2.msra.mxu0 0.0
  %1454 = vmatprep.subr.mxu0 0.0
  %1455 = vmatpush2.msra.mxu0 0.0
  %1456 = vmatprep.subr.mxu0 0.0
  %1457 = vmatpush2.msra.mxu0 0.0
  %1458 = vmatprep.subr.mxu0 0.0
  %1459 = vmatpush2.msra.mxu0 0.0
  %1460 = vmatprep.mubr.f32.mxu0 0.0
  %1461 = vmatmul.mubr.f32.gmra.mxu0 %v1394
  %v1462 = vpop.f32.mrf.mxu0
  %v1463 = vadd.f32 0.0, %v1462
  %v1464 = vpop.f32.mrf.mxu0
  %1465 = vdwg.mxu0
  %v1466 = vld [vmem:[%s8] sm:$0x3]
  %vm1467 = vcmask 64512
  %v1469 = vsel %vm1467, %v1466, 0
  %1471 = vmatprep.subr.mxu0 0.0
  %1472 = vmatpush1.msra.mxu0 0.0
  %1473 = vmatprep.subr.mxu0 0.0
  %1474 = vmatpush1.msra.mxu0 0.0
  %1475 = vmatprep.subr.mxu0 0.0
  %1476 = vmatpush1.msra.mxu0 0.0
  %1477 = vmatprep.subr.mxu0 0.0
  %1478 = vmatpush1.msra.mxu0 0.0
  %1479 = vmatprep.subr.mxu0 0.0
  %1480 = vmatpush1.msra.mxu0 0.0
  %1481 = vmatprep.subr.mxu0 0.0
  %1482 = vmatpush1.msra.mxu0 0.0
  %1483 = vmatprep.subr.mxu0 0.0
  %1484 = vmatpush1.msra.mxu0 0.0
  %1485 = vmatprep.subr.mxu0 0.0
  %1486 = vmatpush1.msra.mxu0 0.0
  %1487 = vmatprep.subr.mxu0 0.0
  %1488 = vmatpush1.msra.mxu0 0.0
  %1489 = vmatprep.subr.mxu0 0.0
  %1490 = vmatpush1.msra.mxu0 0.0
  %1491 = vmatprep.subr.mxu0 0.0
  %1492 = vmatpush1.msra.mxu0 0.0
  %1493 = vmatprep.subr.mxu0 0.0
  %1494 = vmatpush1.msra.mxu0 0.0
  %1495 = vmatprep.subr.mxu0 0.0
  %1496 = vmatpush1.msra.mxu0 0.0
  %1497 = vmatprep.subr.mxu0 0.0
  %1498 = vmatpush1.msra.mxu0 0.0
  %1499 = vmatprep.subr.mxu0 0.0
  %1500 = vmatpush1.msra.mxu0 0.0
  %1501 = vmatprep.subr.mxu0 0.0
  %1502 = vmatpush1.msra.mxu0 %v1463
  %1503 = vmatprep.subr.mxu0 0.0
  %1504 = vmatpush2.msra.mxu0 0.0
  %1505 = vmatprep.subr.mxu0 0.0
  %1506 = vmatpush2.msra.mxu0 0.0
  %1507 = vmatprep.subr.mxu0 0.0
  %1508 = vmatpush2.msra.mxu0 0.0
  %1509 = vmatprep.subr.mxu0 0.0
  %1510 = vmatpush2.msra.mxu0 0.0
  %1511 = vmatprep.subr.mxu0 0.0
  %1512 = vmatpush2.msra.mxu0 0.0
  %1513 = vmatprep.subr.mxu0 0.0
  %1514 = vmatpush2.msra.mxu0 0.0
  %1515 = vmatprep.subr.mxu0 0.0
  %1516 = vmatpush2.msra.mxu0 0.0
  %1517 = vmatprep.subr.mxu0 0.0
  %1518 = vmatpush2.msra.mxu0 0.0
  %1519 = vmatprep.subr.mxu0 0.0
  %1520 = vmatpush2.msra.mxu0 0.0
  %1521 = vmatprep.subr.mxu0 0.0
  %1522 = vmatpush2.msra.mxu0 0.0
  %1523 = vmatprep.subr.mxu0 0.0
  %1524 = vmatpush2.msra.mxu0 0.0
  %1525 = vmatprep.subr.mxu0 0.0
  %1526 = vmatpush2.msra.mxu0 0.0
  %1527 = vmatprep.subr.mxu0 0.0
  %1528 = vmatpush2.msra.mxu0 0.0
  %1529 = vmatprep.subr.mxu0 0.0
  %1530 = vmatpush2.msra.mxu0 0.0
  %1531 = vmatprep.subr.mxu0 0.0
  %1532 = vmatpush2.msra.mxu0 0.0
  %1533 = vmatprep.subr.mxu0 0.0
  %1534 = vmatpush2.msra.mxu0 0.0
  %1535 = vmatprep.mubr.f32.mxu0 0.0
  %1536 = vmatmul.mubr.f32.gmra.mxu0 %v1469
  %v1537 = vpop.f32.mrf.mxu0
  %v1538 = vadd.f32 0.0, %v1537
  %v1539 = vpop.f32.mrf.mxu0
  %1540 = vdwg.mxu0
  %v1541 = vmax.f32 %v1538, 0.0
  %v1542 = vld [vmem:[%s9] sm:$0xff]
  %vm1543 = vcmask 15360
  %v1545 = vsel %vm1543, %v1542, 0
  %vm1547 = vcmask 1041408
  %v1549 = vsel %vm1547, %v1541, 0
  %1551 = vmatprep.subr.mxu0 0.0
  %1552 = vmatpush1.msra.mxu0 0.0
  %1553 = vmatprep.subr.mxu0 0.0
  %1554 = vmatpush1.msra.mxu0 0.0
  %1555 = vmatprep.subr.mxu0 0.0
  %1556 = vmatpush1.msra.mxu0 0.0
  %1557 = vmatprep.subr.mxu0 0.0
  %1558 = vmatpush1.msra.mxu0 0.0
  %1559 = vmatprep.subr.mxu0 0.0
  %1560 = vmatpush1.msra.mxu0 0.0
  %1561 = vmatprep.subr.mxu0 0.0
  %1562 = vmatpush1.msra.mxu0 0.0
  %1563 = vmatprep.subr.mxu0 0.0
  %1564 = vmatpush1.msra.mxu0 0.0
  %1565 = vmatprep.subr.mxu0 0.0
  %1566 = vmatpush1.msra.mxu0 0.0
  %1567 = vmatprep.subr.mxu0 0.0
  %1568 = vmatpush1.msra.mxu0 0.0
  %1569 = vmatprep.subr.mxu0 0.0
  %1570 = vmatpush1.msra.mxu0 0.0
  %1571 = vmatprep.subr.mxu0 0.0
  %1572 = vmatpush1.msra.mxu0 0.0
  %1573 = vmatprep.subr.mxu0 0.0
  %1574 = vmatpush1.msra.mxu0 0.0
  %1575 = vmatprep.subr.mxu0 0.0
  %1576 = vmatpush1.msra.mxu0 0.0
  %1577 = vmatprep.subr.mxu0 0.0
  %1578 = vmatpush1.msra.mxu0 0.0
  %1579 = vmatprep.subr.mxu0 0.0
  %1580 = vmatpush1.msra.mxu0 0.0
  %1581 = vmatprep.subr.mxu0 0.0
  %1582 = vmatpush1.msra.mxu0 %v1549
  %1583 = vmatprep.subr.mxu0 0.0
  %1584 = vmatpush2.msra.mxu0 0.0
  %1585 = vmatprep.subr.mxu0 0.0
  %1586 = vmatpush2.msra.mxu0 0.0
  %1587 = vmatprep.subr.mxu0 0.0
  %1588 = vmatpush2.msra.mxu0 0.0
  %1589 = vmatprep.subr.mxu0 0.0
  %1590 = vmatpush2.msra.mxu0 0.0
  %1591 = vmatprep.subr.mxu0 0.0
  %1592 = vmatpush2.msra.mxu0 0.0
  %1593 = vmatprep.subr.mxu0 0.0
  %1594 = vmatpush2.msra.mxu0 0.0
  %1595 = vmatprep.subr.mxu0 0.0
  %1596 = vmatpush2.msra.mxu0 0.0
  %1597 = vmatprep.subr.mxu0 0.0
  %1598 = vmatpush2.msra.mxu0 0.0
  %1599 = vmatprep.subr.mxu0 0.0
  %1600 = vmatpush2.msra.mxu0 0.0
  %1601 = vmatprep.subr.mxu0 0.0
  %1602 = vmatpush2.msra.mxu0 0.0
  %1603 = vmatprep.subr.mxu0 0.0
  %1604 = vmatpush2.msra.mxu0 0.0
  %1605 = vmatprep.subr.mxu0 0.0
  %1606 = vmatpush2.msra.mxu0 0.0
  %1607 = vmatprep.subr.mxu0 0.0
  %1608 = vmatpush2.msra.mxu0 0.0
  %1609 = vmatprep.subr.mxu0 0.0
  %1610 = vmatpush2.msra.mxu0 0.0
  %1611 = vmatprep.subr.mxu0 0.0
  %1612 = vmatpush2.msra.mxu0 0.0
  %1613 = vmatprep.subr.mxu0 0.0
  %1614 = vmatpush2.msra.mxu0 0.0
  %1615 = vmatprep.mubr.f32.mxu0 0.0
  %1616 = vmatmul.mubr.f32.gmra.mxu0 %v1545
  %v1617 = vpop.f32.mrf.mxu0
  %v1618 = vadd.f32 0.0, %v1617
  %v1619 = vpop.f32.mrf.mxu0
  %1620 = vdwg.mxu0
  %v1621 = vxor.u32 %v1618, 2147483648
  %v1622 = vmul.f32 %v1621, 1.442695
  %v1623 = vpow.pop %v1622
  %v1624 = vadd.f32 %v1623, 1.0
  %v1625 = vrcp.pop %v1624
  %v1626 = vmul.f32 1.0, %v1625
  %1628 = vset.pattern.permute.xlu0 0
  %1629 = vperm.xlu0 %1628, %v1626
  %v1630 = vpop.permute.xlu0 %1629
  %v1632 = vmul.f32 %v929, %v1630
  %v1633 = vmul.f32 %v931, %v1630
  %v1634 = vtanh.pop %v1632
  %v1635 = vtanh.pop %v1633
  %v1636 = vmul.f32 %v1632, %v1634
  %v1637 = vmul.f32 %v1633, %v1635
  %v1638 = vadd.f32 %v181, %v1636
  %v1639 = vadd.f32 %v182, %v1637
  %1640 = vset.pattern.permute.xlu0 1
  %1641 = vperm.xlu0 %1640, %v1626
  %v1642 = vpop.permute.xlu0 %1641
  %v1644 = vmul.f32 %v1000, %v1642
  %v1645 = vmul.f32 %v1002, %v1642
  %v1646 = vtanh.pop %v1644
  %v1647 = vtanh.pop %v1645
  %v1648 = vmul.f32 %v1644, %v1646
  %v1649 = vmul.f32 %v1645, %v1647
  %v1650 = vadd.f32 %v183, %v1648
  %v1651 = vadd.f32 %v184, %v1649
  %s1652 = scalar_lea.vmem %s5, 8
  %v1653 = vld [vmem:[%s1652] sm:$0xff]
  %1655 = vset.pattern.permute.xlu0 0
  %1656 = vperm.xlu0 %1655, %v1653
  %v1657 = vpop.permute.xlu0 %1656
  %v1659 = vmul.f32 %v1638, %v1657
  %v1660 = vmul.f32 %v1639, %v1657
  %v1661 = vmul.f32 %v1650, %v1657
  %v1662 = vmul.f32 %v1651, %v1657
  %1663 = vset.pattern.permute.xlu0 1
  %1664 = vperm.xlu0 %1663, %v1653
  %v1665 = vpop.permute.xlu0 %1664
  %v1667 = vadd.f32 %v1659, %v1665
  %v1668 = vadd.f32 %v1660, %v1665
  %v1669 = vadd.f32 %v1661, %v1665
  %v1670 = vadd.f32 %v1662, %v1665
  %s1671 = scalar_lea.vmem %s3, 8
  %v1672 = vld [vmem:[%s1671] sm:$0xff]
  %1674 = vrot.lane.b32.xlu0 %v1670, 17
  %v1675 = vpop.permute.xlu0 %1674
  %1680 = vrot.lane.b32.xlu0 %v1667, 17
  %v1681 = vpop.permute.xlu0 %1680
  %1682 = vrot.lane.b32.xlu0 %v1668, 17
  %v1683 = vpop.permute.xlu0 %1682
  %1684 = vrot.lane.b32.xlu0 %v1669, 17
  %v1685 = vpop.permute.xlu0 %1684
  %v1686 = vsel %vm217, %v1681, %v1683
  %v1687 = vsel %vm217, %v1683, %v1685
  %v1688 = vsel %vm217, %v1685, %v1675
  %v1693 = vsel %vm217, %v1675, %v1681
  %v1694 = vmul.f32 %v1693, %v52
  %v1695 = vmul.f32 %v1686, %v56
  %v1696 = vmul.f32 %v1687, %v60
  %v1697 = vmul.f32 %v1688, %v64
  %1698 = vst [vmem:[#allocation2] sm:$0xff] %v1694
  %1699 = vst [vmem:[#allocation2 + $0x8] sm:$0xff] %v1695
  %1700 = vst [vmem:[#allocation2 + $0x10] sm:$0xff] %v1696
  %1701 = vst [vmem:[#allocation2 + $0x18] sm:$0xff] %v1697
  %1702 = vrot.lane.b32.xlu0 %v1670, 16
  %v1703 = vpop.permute.xlu0 %1702
  %1705 = vrot.lane.b32.xlu0 %v1667, 16
  %v1706 = vpop.permute.xlu0 %1705
  %1707 = vrot.lane.b32.xlu0 %v1668, 16
  %v1708 = vpop.permute.xlu0 %1707
  %1709 = vrot.lane.b32.xlu0 %v1669, 16
  %v1710 = vpop.permute.xlu0 %1709
  %v1711 = vsel %vm243, %v1706, %v1708
  %v1712 = vsel %vm243, %v1708, %v1710
  %v1713 = vsel %vm243, %v1710, %v1703
  %v1718 = vsel %vm243, %v1703, %v1706
  %v1719 = vmul.f32 %v1718, %v68
  %v1720 = vmul.f32 %v1711, %v72
  %v1721 = vmul.f32 %v1712, %v76
  %v1722 = vmul.f32 %v1713, %v80
  %1723 = vst [vmem:[#allocation2 + $0x20] sm:$0xff] %v1719
  %1724 = vst [vmem:[#allocation2 + $0x28] sm:$0xff] %v1720
  %1725 = vst [vmem:[#allocation2 + $0x30] sm:$0xff] %v1721
  %1726 = vst [vmem:[#allocation2 + $0x38] sm:$0xff] %v1722
  %1727 = vrot.lane.b32.xlu0 %v1670, 15
  %v1728 = vpop.permute.xlu0 %1727
  %1730 = vrot.lane.b32.xlu0 %v1667, 15
  %v1731 = vpop.permute.xlu0 %1730
  %1732 = vrot.lane.b32.xlu0 %v1668, 15
  %v1733 = vpop.permute.xlu0 %1732
  %1734 = vrot.lane.b32.xlu0 %v1669, 15
  %v1735 = vpop.permute.xlu0 %1734
  %v1736 = vsel %vm269, %v1731, %v1733
  %v1737 = vsel %vm269, %v1733, %v1735
  %v1738 = vsel %vm269, %v1735, %v1728
  %v1743 = vsel %vm269, %v1728, %v1731
  %v1744 = vmul.f32 %v1743, %v84
  %v1745 = vmul.f32 %v1736, %v88
  %v1746 = vmul.f32 %v1737, %v92
  %v1747 = vmul.f32 %v1738, %v96
  %1748 = vst [vmem:[#allocation2 + $0x40] sm:$0xff] %v1744
  %1749 = vst [vmem:[#allocation2 + $0x48] sm:$0xff] %v1745
  %1750 = vst [vmem:[#allocation2 + $0x50] sm:$0xff] %v1746
  %1751 = vst [vmem:[#allocation2 + $0x58] sm:$0xff] %v1747
  %1752 = vrot.lane.b32.xlu0 %v1670, 1
  %v1753 = vpop.permute.xlu0 %1752
  %1755 = vrot.lane.b32.xlu0 %v1667, 1
  %v1756 = vpop.permute.xlu0 %1755
  %1757 = vrot.lane.b32.xlu0 %v1668, 1
  %v1758 = vpop.permute.xlu0 %1757
  %1759 = vrot.lane.b32.xlu0 %v1669, 1
  %v1760 = vpop.permute.xlu0 %1759
  %v1761 = vsel %vm295, %v1756, %v1758
  %v1762 = vsel %vm295, %v1758, %v1760
  %v1763 = vsel %vm295, %v1760, %v1753
  %v1768 = vsel %vm295, %v1753, %v1756
  %v1769 = vmul.f32 %v1768, %v100
  %v1770 = vmul.f32 %v1761, %v104
  %v1771 = vmul.f32 %v1762, %v108
  %v1772 = vmul.f32 %v1763, %v112
  %1773 = vst [vmem:[#allocation2 + $0x60] sm:$0xff] %v1769
  %1774 = vst [vmem:[#allocation2 + $0x68] sm:$0xff] %v1770
  %1775 = vst [vmem:[#allocation2 + $0x70] sm:$0xff] %v1771
  %1776 = vst [vmem:[#allocation2 + $0x78] sm:$0xff] %v1772
  %1777 = vst [vmem:[#allocation2 + $0x80] sm:$0xff] %v1667
  %1778 = vst [vmem:[#allocation2 + $0x88] sm:$0xff] %v1668
  %1779 = vst [vmem:[#allocation2 + $0x90] sm:$0xff] %v1669
  %1780 = vst [vmem:[#allocation2 + $0x98] sm:$0xff] %v1670
  %1781 = vrot.lane.b32.xlu0 %v1667, 127
  %v1782 = vpop.permute.xlu0 %1781
  %1783 = vrot.lane.b32.xlu0 %v1668, 127
  %v1784 = vpop.permute.xlu0 %1783
  %1785 = vrot.lane.b32.xlu0 %v1669, 127
  %v1786 = vpop.permute.xlu0 %1785
  %1787 = vrot.lane.b32.xlu0 %v1670, 127
  %v1788 = vpop.permute.xlu0 %1787
  %v1789 = vsel %vm324, %v1782, %v1784
  %v1790 = vsel %vm324, %v1784, %v1786
  %v1791 = vsel %vm324, %v1786, %v1788
  %v1797 = vsel %vm324, %v1788, %v1782
  %v1798 = vmul.f32 %v1789, %v116
  %v1799 = vmul.f32 %v1790, %v120
  %v1800 = vmul.f32 %v1791, %v124
  %v1801 = vmul.f32 %v1797, %v128
  %1802 = vst [vmem:[#allocation2 + $0xa0] sm:$0xff] %v1798
  %1803 = vst [vmem:[#allocation2 + $0xa8] sm:$0xff] %v1799
  %1804 = vst [vmem:[#allocation2 + $0xb0] sm:$0xff] %v1800
  %1805 = vst [vmem:[#allocation2 + $0xb8] sm:$0xff] %v1801
  %1806 = vrot.lane.b32.xlu0 %v1667, 113
  %v1807 = vpop.permute.xlu0 %1806
  %1808 = vrot.lane.b32.xlu0 %v1668, 113
  %v1809 = vpop.permute.xlu0 %1808
  %1810 = vrot.lane.b32.xlu0 %v1669, 113
  %v1811 = vpop.permute.xlu0 %1810
  %1812 = vrot.lane.b32.xlu0 %v1670, 113
  %v1813 = vpop.permute.xlu0 %1812
  %v1814 = vsel %vm350, %v1807, %v1809
  %v1815 = vsel %vm350, %v1809, %v1811
  %v1816 = vsel %vm350, %v1811, %v1813
  %v1822 = vsel %vm350, %v1813, %v1807
  %v1823 = vmul.f32 %v1814, %v132
  %v1824 = vmul.f32 %v1815, %v136
  %v1825 = vmul.f32 %v1816, %v140
  %v1826 = vmul.f32 %v1822, %v144
  %1827 = vst [vmem:[#allocation2 + $0xc0] sm:$0xff] %v1823
  %1828 = vst [vmem:[#allocation2 + $0xc8] sm:$0xff] %v1824
  %1829 = vst [vmem:[#allocation2 + $0xd0] sm:$0xff] %v1825
  %1830 = vst [vmem:[#allocation2 + $0xd8] sm:$0xff] %v1826
  %1831 = vrot.lane.b32.xlu0 %v1667, 112
  %v1832 = vpop.permute.xlu0 %1831
  %1833 = vrot.lane.b32.xlu0 %v1668, 112
  %v1834 = vpop.permute.xlu0 %1833
  %1835 = vrot.lane.b32.xlu0 %v1669, 112
  %v1836 = vpop.permute.xlu0 %1835
  %1837 = vrot.lane.b32.xlu0 %v1670, 112
  %v1838 = vpop.permute.xlu0 %1837
  %v1839 = vsel %vm376, %v1832, %v1834
  %v1840 = vsel %vm376, %v1834, %v1836
  %v1841 = vsel %vm376, %v1836, %v1838
  %v1847 = vsel %vm376, %v1838, %v1832
  %v1848 = vmul.f32 %v1839, %v148
  %v1849 = vmul.f32 %v1840, %v152
  %v1850 = vmul.f32 %v1841, %v156
  %v1851 = vmul.f32 %v1847, %v160
  %1852 = vst [vmem:[#allocation2 + $0xe0] sm:$0xff] %v1848
  %1853 = vst [vmem:[#allocation2 + $0xe8] sm:$0xff] %v1849
  %1854 = vst [vmem:[#allocation2 + $0xf0] sm:$0xff] %v1850
  %1855 = vst [vmem:[#allocation2 + $0xf8] sm:$0xff] %v1851
  %1856 = vrot.lane.b32.xlu0 %v1667, 111
  %v1857 = vpop.permute.xlu0 %1856
  %1858 = vrot.lane.b32.xlu0 %v1668, 111
  %v1859 = vpop.permute.xlu0 %1858
  %1860 = vrot.lane.b32.xlu0 %v1669, 111
  %v1861 = vpop.permute.xlu0 %1860
  %1862 = vrot.lane.b32.xlu0 %v1670, 111
  %v1863 = vpop.permute.xlu0 %1862
  %v1864 = vsel %vm402, %v1857, %v1859
  %v1865 = vsel %vm402, %v1859, %v1861
  %v1866 = vsel %vm402, %v1861, %v1863
  %v1872 = vsel %vm402, %v1863, %v1857
  %v1873 = vmul.f32 %v1864, %v164
  %v1874 = vmul.f32 %v1865, %v168
  %v1875 = vmul.f32 %v1866, %v172
  %v1876 = vmul.f32 %v1872, %v176
  %1877 = vst [vmem:[#allocation2 + $0x100] sm:$0xff] %v1873
  %1878 = vst [vmem:[#allocation2 + $0x108] sm:$0xff] %v1874
  %1879 = vst [vmem:[#allocation2 + $0x110] sm:$0xff] %v1875
  %1880 = vst [vmem:[#allocation2 + $0x118] sm:$0xff] %v1876
  %v1881 = vld [vmem:[#allocation2] sm:$0xff]
  %v1882 = vld [vmem:[#allocation2 + $0x8] sm:$0xff]
  %v1883 = vld [vmem:[#allocation2 + $0x10] sm:$0xff]
  %v1884 = vld [vmem:[#allocation2 + $0x18] sm:$0xff]
  %v1885 = vld [vmem:[#allocation2 + $0x20] sm:$0xff]
  %v1886 = vld [vmem:[#allocation2 + $0x28] sm:$0xff]
  %v1887 = vld [vmem:[#allocation2 + $0x30] sm:$0xff]
  %v1888 = vld [vmem:[#allocation2 + $0x38] sm:$0xff]
  %v1889 = vld [vmem:[#allocation2 + $0x40] sm:$0xff]
  %v1890 = vld [vmem:[#allocation2 + $0x48] sm:$0xff]
  %v1891 = vld [vmem:[#allocation2 + $0x50] sm:$0xff]
  %v1892 = vld [vmem:[#allocation2 + $0x58] sm:$0xff]
  %v1893 = vld [vmem:[#allocation2 + $0x60] sm:$0xff]
  %v1894 = vld [vmem:[#allocation2 + $0x68] sm:$0xff]
  %v1895 = vld [vmem:[#allocation2 + $0x70] sm:$0xff]
  %v1896 = vld [vmem:[#allocation2 + $0x78] sm:$0xff]
  %v1897 = vld [vmem:[#allocation2 + $0x80] sm:$0xff]
  %v1898 = vld [vmem:[#allocation2 + $0x88] sm:$0xff]
  %v1899 = vld [vmem:[#allocation2 + $0x90] sm:$0xff]
  %v1900 = vld [vmem:[#allocation2 + $0x98] sm:$0xff]
  %v1901 = vld [vmem:[#allocation2 + $0xa0] sm:$0xff]
  %v1902 = vld [vmem:[#allocation2 + $0xa8] sm:$0xff]
  %v1903 = vld [vmem:[#allocation2 + $0xb0] sm:$0xff]
  %v1904 = vld [vmem:[#allocation2 + $0xb8] sm:$0xff]
  %v1905 = vld [vmem:[#allocation2 + $0xc0] sm:$0xff]
  %v1906 = vld [vmem:[#allocation2 + $0xc8] sm:$0xff]
  %v1907 = vld [vmem:[#allocation2 + $0xd0] sm:$0xff]
  %v1908 = vld [vmem:[#allocation2 + $0xd8] sm:$0xff]
  %v1909 = vld [vmem:[#allocation2 + $0xe0] sm:$0xff]
  %v1910 = vld [vmem:[#allocation2 + $0xe8] sm:$0xff]
  %v1911 = vld [vmem:[#allocation2 + $0xf0] sm:$0xff]
  %v1912 = vld [vmem:[#allocation2 + $0xf8] sm:$0xff]
  %v1913 = vld [vmem:[#allocation2 + $0x100] sm:$0xff]
  %v1914 = vld [vmem:[#allocation2 + $0x108] sm:$0xff]
  %v1915 = vld [vmem:[#allocation2 + $0x110] sm:$0xff]
  %v1916 = vld [vmem:[#allocation2 + $0x118] sm:$0xff]
  %1917 = vset.pattern.permute.xlu0 2
  %1918 = vperm.xlu0 %1917, %v1653
  %v1919 = vpop.permute.xlu0 %1918
  %v1922 = vsel %vm460, %v1672, 0
  %1924 = vmatprep.subr.mxu0 0.0
  %1925 = vmatpush1.msra.mxu0 0.0
  %1926 = vmatprep.subr.mxu0 0.0
  %1927 = vmatpush1.msra.mxu0 0.0
  %1928 = vmatprep.subr.mxu0 0.0
  %1929 = vmatpush1.msra.mxu0 0.0
  %1930 = vmatprep.subr.mxu0 0.0
  %1931 = vmatpush1.msra.mxu0 0.0
  %1932 = vmatprep.subr.mxu0 0.0
  %1933 = vmatpush1.msra.mxu0 0.0
  %1934 = vmatprep.subr.mxu0 0.0
  %1935 = vmatpush1.msra.mxu0 0.0
  %1936 = vmatprep.subr.mxu0 0.0
  %1937 = vmatpush1.msra.mxu0 0.0
  %1938 = vmatprep.subr.mxu0 %v1914
  %1939 = vmatpush1.msra.mxu0 %v1913
  %1940 = vmatprep.subr.mxu0 %v1910
  %1941 = vmatpush1.msra.mxu0 %v1909
  %1942 = vmatprep.subr.mxu0 %v1906
  %1943 = vmatpush1.msra.mxu0 %v1905
  %1944 = vmatprep.subr.mxu0 %v1902
  %1945 = vmatpush1.msra.mxu0 %v1901
  %1946 = vmatprep.subr.mxu0 %v1898
  %1947 = vmatpush1.msra.mxu0 %v1897
  %1948 = vmatprep.subr.mxu0 %v1894
  %1949 = vmatpush1.msra.mxu0 %v1893
  %1950 = vmatprep.subr.mxu0 %v1890
  %1951 = vmatpush1.msra.mxu0 %v1889
  %1952 = vmatprep.subr.mxu0 %v1886
  %1953 = vmatpush1.msra.mxu0 %v1885
  %1954 = vmatprep.subr.mxu0 %v1882
  %1955 = vmatpush1.msra.mxu0 %v1881
  %1956 = vmatprep.subr.mxu0 0.0
  %1957 = vmatpush2.msra.mxu0 0.0
  %1958 = vmatprep.subr.mxu0 0.0
  %1959 = vmatpush2.msra.mxu0 0.0
  %1960 = vmatprep.subr.mxu0 0.0
  %1961 = vmatpush2.msra.mxu0 0.0
  %1962 = vmatprep.subr.mxu0 0.0
  %1963 = vmatpush2.msra.mxu0 0.0
  %1964 = vmatprep.subr.mxu0 0.0
  %1965 = vmatpush2.msra.mxu0 0.0
  %1966 = vmatprep.subr.mxu0 0.0
  %1967 = vmatpush2.msra.mxu0 0.0
  %1968 = vmatprep.subr.mxu0 0.0
  %1969 = vmatpush2.msra.mxu0 0.0
  %1970 = vmatprep.subr.mxu0 0.0
  %1971 = vmatpush2.msra.mxu0 0.0
  %1972 = vmatprep.subr.mxu0 0.0
  %1973 = vmatpush2.msra.mxu0 0.0
  %1974 = vmatprep.subr.mxu0 0.0
  %1975 = vmatpush2.msra.mxu0 0.0
  %1976 = vmatprep.subr.mxu0 0.0
  %1977 = vmatpush2.msra.mxu0 0.0
  %1978 = vmatprep.subr.mxu0 0.0
  %1979 = vmatpush2.msra.mxu0 0.0
  %1980 = vmatprep.subr.mxu0 0.0
  %1981 = vmatpush2.msra.mxu0 0.0
  %1982 = vmatprep.subr.mxu0 0.0
  %1983 = vmatpush2.msra.mxu0 0.0
  %1984 = vmatprep.subr.mxu0 0.0
  %1985 = vmatpush2.msra.mxu0 0.0
  %1986 = vmatprep.subr.mxu0 0.0
  %1987 = vmatpush2.msra.mxu0 0.0
  %1988 = vmatprep.mubr.f32.mxu0 0.0
  %1989 = vmatmul.mubr.f32.gmra.mxu0 %v1922
  %v1990 = vpop.f32.mrf.mxu0
  %v1991 = vadd.f32 %v1919, %v1990
  %v1992 = vpop.f32.mrf.mxu0
  %v1993 = vadd.f32 %v1919, %v1992
  %1994 = vdwg.mxu0
  %1995 = vmatprep.subr.mxu0 0.0
  %1996 = vmatpush1.msra.mxu0 0.0
  %1997 = vmatprep.subr.mxu0 0.0
  %1998 = vmatpush1.msra.mxu0 0.0
  %1999 = vmatprep.subr.mxu0 0.0
  %2000 = vmatpush1.msra.mxu0 0.0
  %2001 = vmatprep.subr.mxu0 0.0
  %2002 = vmatpush1.msra.mxu0 0.0
  %2003 = vmatprep.subr.mxu0 0.0
  %2004 = vmatpush1.msra.mxu0 0.0
  %2005 = vmatprep.subr.mxu0 0.0
  %2006 = vmatpush1.msra.mxu0 0.0
  %2007 = vmatprep.subr.mxu0 0.0
  %2008 = vmatpush1.msra.mxu0 0.0
  %2009 = vmatprep.subr.mxu0 %v1916
  %2010 = vmatpush1.msra.mxu0 %v1915
  %2011 = vmatprep.subr.mxu0 %v1912
  %2012 = vmatpush1.msra.mxu0 %v1911
  %2013 = vmatprep.subr.mxu0 %v1908
  %2014 = vmatpush1.msra.mxu0 %v1907
  %2015 = vmatprep.subr.mxu0 %v1904
  %2016 = vmatpush1.msra.mxu0 %v1903
  %2017 = vmatprep.subr.mxu0 %v1900
  %2018 = vmatpush1.msra.mxu0 %v1899
  %2019 = vmatprep.subr.mxu0 %v1896
  %2020 = vmatpush1.msra.mxu0 %v1895
  %2021 = vmatprep.subr.mxu0 %v1892
  %2022 = vmatpush1.msra.mxu0 %v1891
  %2023 = vmatprep.subr.mxu0 %v1888
  %2024 = vmatpush1.msra.mxu0 %v1887
  %2025 = vmatprep.subr.mxu0 %v1884
  %2026 = vmatpush1.msra.mxu0 %v1883
  %2027 = vmatprep.subr.mxu0 0.0
  %2028 = vmatpush2.msra.mxu0 0.0
  %2029 = vmatprep.subr.mxu0 0.0
  %2030 = vmatpush2.msra.mxu0 0.0
  %2031 = vmatprep.subr.mxu0 0.0
  %2032 = vmatpush2.msra.mxu0 0.0
  %2033 = vmatprep.subr.mxu0 0.0
  %2034 = vmatpush2.msra.mxu0 0.0
  %2035 = vmatprep.subr.mxu0 0.0
  %2036 = vmatpush2.msra.mxu0 0.0
  %2037 = vmatprep.subr.mxu0 0.0
  %2038 = vmatpush2.msra.mxu0 0.0
  %2039 = vmatprep.subr.mxu0 0.0
  %2040 = vmatpush2.msra.mxu0 0.0
  %2041 = vmatprep.subr.mxu0 0.0
  %2042 = vmatpush2.msra.mxu0 0.0
  %2043 = vmatprep.subr.mxu0 0.0
  %2044 = vmatpush2.msra.mxu0 0.0
  %2045 = vmatprep.subr.mxu0 0.0
  %2046 = vmatpush2.msra.mxu0 0.0
  %2047 = vmatprep.subr.mxu0 0.0
  %2048 = vmatpush2.msra.mxu0 0.0
  %2049 = vmatprep.subr.mxu0 0.0
  %2050 = vmatpush2.msra.mxu0 0.0
  %2051 = vmatprep.subr.mxu0 0.0
  %2052 = vmatpush2.msra.mxu0 0.0
  %2053 = vmatprep.subr.mxu0 0.0
  %2054 = vmatpush2.msra.mxu0 0.0
  %2055 = vmatprep.subr.mxu0 0.0
  %2056 = vmatpush2.msra.mxu0 0.0
  %2057 = vmatprep.subr.mxu0 0.0
  %2058 = vmatpush2.msra.mxu0 0.0
  %2059 = vmatprep.mubr.f32.mxu0 0.0
  %2060 = vmatmul.mubr.f32.gmra.mxu0 %v1922
  %v2061 = vpop.f32.mrf.mxu0
  %v2062 = vadd.f32 %v1919, %v2061
  %v2063 = vpop.f32.mrf.mxu0
  %v2064 = vadd.f32 %v1919, %v2063
  %2065 = vdwg.mxu0
  %v2066 = vmax.f32 %v1991, 0.0
  %v2067 = vmax.f32 %v1993, 0.0
  %v2068 = vmax.f32 %v2062, 0.0
  %v2069 = vmax.f32 %v2064, 0.0
  %s2070 = scalar_lea.vmem %s4, 8
  %v2071 = vld [vmem:[%s2070] sm:$0xff]
  %2073 = vrot.lane.b32.xlu0 %v2069, 17
  %v2074 = vpop.permute.xlu0 %2073
  %2079 = vrot.lane.b32.xlu0 %v2066, 17
  %v2080 = vpop.permute.xlu0 %2079
  %2081 = vrot.lane.b32.xlu0 %v2067, 17
  %v2082 = vpop.permute.xlu0 %2081
  %2083 = vrot.lane.b32.xlu0 %v2068, 17
  %v2084 = vpop.permute.xlu0 %2083
  %v2085 = vsel %vm217, %v2080, %v2082
  %v2086 = vsel %vm217, %v2082, %v2084
  %v2087 = vsel %vm217, %v2084, %v2074
  %v2092 = vsel %vm217, %v2074, %v2080
  %v2093 = vmul.f32 %v2092, %v52
  %v2094 = vmul.f32 %v2085, %v56
  %v2095 = vmul.f32 %v2086, %v60
  %v2096 = vmul.f32 %v2087, %v64
  %2097 = vst [vmem:[#allocation2] sm:$0xff] %v2093
  %2098 = vst [vmem:[#allocation2 + $0x8] sm:$0xff] %v2094
  %2099 = vst [vmem:[#allocation2 + $0x10] sm:$0xff] %v2095
  %2100 = vst [vmem:[#allocation2 + $0x18] sm:$0xff] %v2096
  %2101 = vrot.lane.b32.xlu0 %v2069, 16
  %v2102 = vpop.permute.xlu0 %2101
  %2104 = vrot.lane.b32.xlu0 %v2066, 16
  %v2105 = vpop.permute.xlu0 %2104
  %2106 = vrot.lane.b32.xlu0 %v2067, 16
  %v2107 = vpop.permute.xlu0 %2106
  %2108 = vrot.lane.b32.xlu0 %v2068, 16
  %v2109 = vpop.permute.xlu0 %2108
  %v2110 = vsel %vm243, %v2105, %v2107
  %v2111 = vsel %vm243, %v2107, %v2109
  %v2112 = vsel %vm243, %v2109, %v2102
  %v2117 = vsel %vm243, %v2102, %v2105
  %v2118 = vmul.f32 %v2117, %v68
  %v2119 = vmul.f32 %v2110, %v72
  %v2120 = vmul.f32 %v2111, %v76
  %v2121 = vmul.f32 %v2112, %v80
  %2122 = vst [vmem:[#allocation2 + $0x20] sm:$0xff] %v2118
  %2123 = vst [vmem:[#allocation2 + $0x28] sm:$0xff] %v2119
  %2124 = vst [vmem:[#allocation2 + $0x30] sm:$0xff] %v2120
  %2125 = vst [vmem:[#allocation2 + $0x38] sm:$0xff] %v2121
  %2126 = vrot.lane.b32.xlu0 %v2069, 15
  %v2127 = vpop.permute.xlu0 %2126
  %2129 = vrot.lane.b32.xlu0 %v2066, 15
  %v2130 = vpop.permute.xlu0 %2129
  %2131 = vrot.lane.b32.xlu0 %v2067, 15
  %v2132 = vpop.permute.xlu0 %2131
  %2133 = vrot.lane.b32.xlu0 %v2068, 15
  %v2134 = vpop.permute.xlu0 %2133
  %v2135 = vsel %vm269, %v2130, %v2132
  %v2136 = vsel %vm269, %v2132, %v2134
  %v2137 = vsel %vm269, %v2134, %v2127
  %v2142 = vsel %vm269, %v2127, %v2130
  %v2143 = vmul.f32 %v2142, %v84
  %v2144 = vmul.f32 %v2135, %v88
  %v2145 = vmul.f32 %v2136, %v92
  %v2146 = vmul.f32 %v2137, %v96
  %2147 = vst [vmem:[#allocation2 + $0x40] sm:$0xff] %v2143
  %2148 = vst [vmem:[#allocation2 + $0x48] sm:$0xff] %v2144
  %2149 = vst [vmem:[#allocation2 + $0x50] sm:$0xff] %v2145
  %2150 = vst [vmem:[#allocation2 + $0x58] sm:$0xff] %v2146
  %2151 = vrot.lane.b32.xlu0 %v2069, 1
  %v2152 = vpop.permute.xlu0 %2151
  %2154 = vrot.lane.b32.xlu0 %v2066, 1
  %v2155 = vpop.permute.xlu0 %2154
  %2156 = vrot.lane.b32.xlu0 %v2067, 1
  %v2157 = vpop.permute.xlu0 %2156
  %2158 = vrot.lane.b32.xlu0 %v2068, 1
  %v2159 = vpop.permute.xlu0 %2158
  %v2160 = vsel %vm295, %v2155, %v2157
  %v2161 = vsel %vm295, %v2157, %v2159
  %v2162 = vsel %vm295, %v2159, %v2152
  %v2167 = vsel %vm295, %v2152, %v2155
  %v2168 = vmul.f32 %v2167, %v100
  %v2169 = vmul.f32 %v2160, %v104
  %v2170 = vmul.f32 %v2161, %v108
  %v2171 = vmul.f32 %v2162, %v112
  %2172 = vst [vmem:[#allocation2 + $0x60] sm:$0xff] %v2168
  %2173 = vst [vmem:[#allocation2 + $0x68] sm:$0xff] %v2169
  %2174 = vst [vmem:[#allocation2 + $0x70] sm:$0xff] %v2170
  %2175 = vst [vmem:[#allocation2 + $0x78] sm:$0xff] %v2171
  %2176 = vst [vmem:[#allocation2 + $0x80] sm:$0xff] %v2066
  %2177 = vst [vmem:[#allocation2 + $0x88] sm:$0xff] %v2067
  %2178 = vst [vmem:[#allocation2 + $0x90] sm:$0xff] %v2068
  %2179 = vst [vmem:[#allocation2 + $0x98] sm:$0xff] %v2069
  %2180 = vrot.lane.b32.xlu0 %v2066, 127
  %v2181 = vpop.permute.xlu0 %2180
  %2182 = vrot.lane.b32.xlu0 %v2067, 127
  %v2183 = vpop.permute.xlu0 %2182
  %2184 = vrot.lane.b32.xlu0 %v2068, 127
  %v2185 = vpop.permute.xlu0 %2184
  %2186 = vrot.lane.b32.xlu0 %v2069, 127
  %v2187 = vpop.permute.xlu0 %2186
  %v2188 = vsel %vm324, %v2181, %v2183
  %v2189 = vsel %vm324, %v2183, %v2185
  %v2190 = vsel %vm324, %v2185, %v2187
  %v2196 = vsel %vm324, %v2187, %v2181
  %v2197 = vmul.f32 %v2188, %v116
  %v2198 = vmul.f32 %v2189, %v120
  %v2199 = vmul.f32 %v2190, %v124
  %v2200 = vmul.f32 %v2196, %v128
  %2201 = vst [vmem:[#allocation2 + $0xa0] sm:$0xff] %v2197
  %2202 = vst [vmem:[#allocation2 + $0xa8] sm:$0xff] %v2198
  %2203 = vst [vmem:[#allocation2 + $0xb0] sm:$0xff] %v2199
  %2204 = vst [vmem:[#allocation2 + $0xb8] sm:$0xff] %v2200
  %2205 = vrot.lane.b32.xlu0 %v2066, 113
  %v2206 = vpop.permute.xlu0 %2205
  %2207 = vrot.lane.b32.xlu0 %v2067, 113
  %v2208 = vpop.permute.xlu0 %2207
  %2209 = vrot.lane.b32.xlu0 %v2068, 113
  %v2210 = vpop.permute.xlu0 %2209
  %2211 = vrot.lane.b32.xlu0 %v2069, 113
  %v2212 = vpop.permute.xlu0 %2211
  %v2213 = vsel %vm350, %v2206, %v2208
  %v2214 = vsel %vm350, %v2208, %v2210
  %v2215 = vsel %vm350, %v2210, %v2212
  %v2221 = vsel %vm350, %v2212, %v2206
  %v2222 = vmul.f32 %v2213, %v132
  %v2223 = vmul.f32 %v2214, %v136
  %v2224 = vmul.f32 %v2215, %v140
  %v2225 = vmul.f32 %v2221, %v144
  %2226 = vst [vmem:[#allocation2 + $0xc0] sm:$0xff] %v2222
  %2227 = vst [vmem:[#allocation2 + $0xc8] sm:$0xff] %v2223
  %2228 = vst [vmem:[#allocation2 + $0xd0] sm:$0xff] %v2224
  %2229 = vst [vmem:[#allocation2 + $0xd8] sm:$0xff] %v2225
  %2230 = vrot.lane.b32.xlu0 %v2066, 112
  %v2231 = vpop.permute.xlu0 %2230
  %2232 = vrot.lane.b32.xlu0 %v2067, 112
  %v2233 = vpop.permute.xlu0 %2232
  %2234 = vrot.lane.b32.xlu0 %v2068, 112
  %v2235 = vpop.permute.xlu0 %2234
  %2236 = vrot.lane.b32.xlu0 %v2069, 112
  %v2237 = vpop.permute.xlu0 %2236
  %v2238 = vsel %vm376, %v2231, %v2233
  %v2239 = vsel %vm376, %v2233, %v2235
  %v2240 = vsel %vm376, %v2235, %v2237
  %v2246 = vsel %vm376, %v2237, %v2231
  %v2247 = vmul.f32 %v2238, %v148
  %v2248 = vmul.f32 %v2239, %v152
  %v2249 = vmul.f32 %v2240, %v156
  %v2250 = vmul.f32 %v2246, %v160
  %2251 = vst [vmem:[#allocation2 + $0xe0] sm:$0xff] %v2247
  %2252 = vst [vmem:[#allocation2 + $0xe8] sm:$0xff] %v2248
  %2253 = vst [vmem:[#allocation2 + $0xf0] sm:$0xff] %v2249
  %2254 = vst [vmem:[#allocation2 + $0xf8] sm:$0xff] %v2250
  %2255 = vrot.lane.b32.xlu0 %v2066, 111
  %v2256 = vpop.permute.xlu0 %2255
  %2257 = vrot.lane.b32.xlu0 %v2067, 111
  %v2258 = vpop.permute.xlu0 %2257
  %2259 = vrot.lane.b32.xlu0 %v2068, 111
  %v2260 = vpop.permute.xlu0 %2259
  %2261 = vrot.lane.b32.xlu0 %v2069, 111
  %v2262 = vpop.permute.xlu0 %2261
  %v2263 = vsel %vm402, %v2256, %v2258
  %v2264 = vsel %vm402, %v2258, %v2260
  %v2265 = vsel %vm402, %v2260, %v2262
  %v2271 = vsel %vm402, %v2262, %v2256
  %v2272 = vmul.f32 %v2263, %v164
  %v2273 = vmul.f32 %v2264, %v168
  %v2274 = vmul.f32 %v2265, %v172
  %v2275 = vmul.f32 %v2271, %v176
  %2276 = vst [vmem:[#allocation2 + $0x100] sm:$0xff] %v2272
  %2277 = vst [vmem:[#allocation2 + $0x108] sm:$0xff] %v2273
  %2278 = vst [vmem:[#allocation2 + $0x110] sm:$0xff] %v2274
  %2279 = vst [vmem:[#allocation2 + $0x118] sm:$0xff] %v2275
  %v2280 = vld [vmem:[#allocation2] sm:$0xff]
  %v2281 = vld [vmem:[#allocation2 + $0x8] sm:$0xff]
  %v2282 = vld [vmem:[#allocation2 + $0x10] sm:$0xff]
  %v2283 = vld [vmem:[#allocation2 + $0x18] sm:$0xff]
  %v2284 = vld [vmem:[#allocation2 + $0x20] sm:$0xff]
  %v2285 = vld [vmem:[#allocation2 + $0x28] sm:$0xff]
  %v2286 = vld [vmem:[#allocation2 + $0x30] sm:$0xff]
  %v2287 = vld [vmem:[#allocation2 + $0x38] sm:$0xff]
  %v2288 = vld [vmem:[#allocation2 + $0x40] sm:$0xff]
  %v2289 = vld [vmem:[#allocation2 + $0x48] sm:$0xff]
  %v2290 = vld [vmem:[#allocation2 + $0x50] sm:$0xff]
  %v2291 = vld [vmem:[#allocation2 + $0x58] sm:$0xff]
  %v2292 = vld [vmem:[#allocation2 + $0x60] sm:$0xff]
  %v2293 = vld [vmem:[#allocation2 + $0x68] sm:$0xff]
  %v2294 = vld [vmem:[#allocation2 + $0x70] sm:$0xff]
  %v2295 = vld [vmem:[#allocation2 + $0x78] sm:$0xff]
  %v2296 = vld [vmem:[#allocation2 + $0x80] sm:$0xff]
  %v2297 = vld [vmem:[#allocation2 + $0x88] sm:$0xff]
  %v2298 = vld [vmem:[#allocation2 + $0x90] sm:$0xff]
  %v2299 = vld [vmem:[#allocation2 + $0x98] sm:$0xff]
  %v2300 = vld [vmem:[#allocation2 + $0xa0] sm:$0xff]
  %v2301 = vld [vmem:[#allocation2 + $0xa8] sm:$0xff]
  %v2302 = vld [vmem:[#allocation2 + $0xb0] sm:$0xff]
  %v2303 = vld [vmem:[#allocation2 + $0xb8] sm:$0xff]
  %v2304 = vld [vmem:[#allocation2 + $0xc0] sm:$0xff]
  %v2305 = vld [vmem:[#allocation2 + $0xc8] sm:$0xff]
  %v2306 = vld [vmem:[#allocation2 + $0xd0] sm:$0xff]
  %v2307 = vld [vmem:[#allocation2 + $0xd8] sm:$0xff]
  %v2308 = vld [vmem:[#allocation2 + $0xe0] sm:$0xff]
  %v2309 = vld [vmem:[#allocation2 + $0xe8] sm:$0xff]
  %v2310 = vld [vmem:[#allocation2 + $0xf0] sm:$0xff]
  %v2311 = vld [vmem:[#allocation2 + $0xf8] sm:$0xff]
  %v2312 = vld [vmem:[#allocation2 + $0x100] sm:$0xff]
  %v2313 = vld [vmem:[#allocation2 + $0x108] sm:$0xff]
  %v2314 = vld [vmem:[#allocation2 + $0x110] sm:$0xff]
  %v2315 = vld [vmem:[#allocation2 + $0x118] sm:$0xff]
  %2316 = vset.pattern.permute.xlu0 3
  %2317 = vperm.xlu0 %2316, %v1653
  %v2318 = vpop.permute.xlu0 %2317
  %v2321 = vsel %vm460, %v2071, 0
  %2323 = vmatprep.subr.mxu0 0.0
  %2324 = vmatpush1.msra.mxu0 0.0
  %2325 = vmatprep.subr.mxu0 0.0
  %2326 = vmatpush1.msra.mxu0 0.0
  %2327 = vmatprep.subr.mxu0 0.0
  %2328 = vmatpush1.msra.mxu0 0.0
  %2329 = vmatprep.subr.mxu0 0.0
  %2330 = vmatpush1.msra.mxu0 0.0
  %2331 = vmatprep.subr.mxu0 0.0
  %2332 = vmatpush1.msra.mxu0 0.0
  %2333 = vmatprep.subr.mxu0 0.0
  %2334 = vmatpush1.msra.mxu0 0.0
  %2335 = vmatprep.subr.mxu0 0.0
  %2336 = vmatpush1.msra.mxu0 0.0
  %2337 = vmatprep.subr.mxu0 %v2313
  %2338 = vmatpush1.msra.mxu0 %v2312
  %2339 = vmatprep.subr.mxu0 %v2309
  %2340 = vmatpush1.msra.mxu0 %v2308
  %2341 = vmatprep.subr.mxu0 %v2305
  %2342 = vmatpush1.msra.mxu0 %v2304
  %2343 = vmatprep.subr.mxu0 %v2301
  %2344 = vmatpush1.msra.mxu0 %v2300
  %2345 = vmatprep.subr.mxu0 %v2297
  %2346 = vmatpush1.msra.mxu0 %v2296
  %2347 = vmatprep.subr.mxu0 %v2293
  %2348 = vmatpush1.msra.mxu0 %v2292
  %2349 = vmatprep.subr.mxu0 %v2289
  %2350 = vmatpush1.msra.mxu0 %v2288
  %2351 = vmatprep.subr.mxu0 %v2285
  %2352 = vmatpush1.msra.mxu0 %v2284
  %2353 = vmatprep.subr.mxu0 %v2281
  %2354 = vmatpush1.msra.mxu0 %v2280
  %2355 = vmatprep.subr.mxu0 0.0
  %2356 = vmatpush2.msra.mxu0 0.0
  %2357 = vmatprep.subr.mxu0 0.0
  %2358 = vmatpush2.msra.mxu0 0.0
  %2359 = vmatprep.subr.mxu0 0.0
  %2360 = vmatpush2.msra.mxu0 0.0
  %2361 = vmatprep.subr.mxu0 0.0
  %2362 = vmatpush2.msra.mxu0 0.0
  %2363 = vmatprep.subr.mxu0 0.0
  %2364 = vmatpush2.msra.mxu0 0.0
  %2365 = vmatprep.subr.mxu0 0.0
  %2366 = vmatpush2.msra.mxu0 0.0
  %2367 = vmatprep.subr.mxu0 0.0
  %2368 = vmatpush2.msra.mxu0 0.0
  %2369 = vmatprep.subr.mxu0 0.0
  %2370 = vmatpush2.msra.mxu0 0.0
  %2371 = vmatprep.subr.mxu0 0.0
  %2372 = vmatpush2.msra.mxu0 0.0
  %2373 = vmatprep.subr.mxu0 0.0
  %2374 = vmatpush2.msra.mxu0 0.0
  %2375 = vmatprep.subr.mxu0 0.0
  %2376 = vmatpush2.msra.mxu0 0.0
  %2377 = vmatprep.subr.mxu0 0.0
  %2378 = vmatpush2.msra.mxu0 0.0
  %2379 = vmatprep.subr.mxu0 0.0
  %2380 = vmatpush2.msra.mxu0 0.0
  %2381 = vmatprep.subr.mxu0 0.0
  %2382 = vmatpush2.msra.mxu0 0.0
  %2383 = vmatprep.subr.mxu0 0.0
  %2384 = vmatpush2.msra.mxu0 0.0
  %2385 = vmatprep.subr.mxu0 0.0
  %2386 = vmatpush2.msra.mxu0 0.0
  %2387 = vmatprep.mubr.f32.mxu0 0.0
  %2388 = vmatmul.mubr.f32.gmra.mxu0 %v2321
  %v2389 = vpop.f32.mrf.mxu0
  %v2390 = vadd.f32 %v2318, %v2389
  %v2391 = vpop.f32.mrf.mxu0
  %v2392 = vadd.f32 %v2318, %v2391
  %2393 = vdwg.mxu0
  %2394 = vmatprep.subr.mxu0 0.0
  %2395 = vmatpush1.msra.mxu0 0.0
  %2396 = vmatprep.subr.mxu0 0.0
  %2397 = vmatpush1.msra.mxu0 0.0
  %2398 = vmatprep.subr.mxu0 0.0
  %2399 = vmatpush1.msra.mxu0 0.0
  %2400 = vmatprep.subr.mxu0 0.0
  %2401 = vmatpush1.msra.mxu0 0.0
  %2402 = vmatprep.subr.mxu0 0.0
  %2403 = vmatpush1.msra.mxu0 0.0
  %2404 = vmatprep.subr.mxu0 0.0
  %2405 = vmatpush1.msra.mxu0 0.0
  %2406 = vmatprep.subr.mxu0 0.0
  %2407 = vmatpush1.msra.mxu0 0.0
  %2408 = vmatprep.subr.mxu0 %v2315
  %2409 = vmatpush1.msra.mxu0 %v2314
  %2410 = vmatprep.subr.mxu0 %v2311
  %2411 = vmatpush1.msra.mxu0 %v2310
  %2412 = vmatprep.subr.mxu0 %v2307
  %2413 = vmatpush1.msra.mxu0 %v2306
  %2414 = vmatprep.subr.mxu0 %v2303
  %2415 = vmatpush1.msra.mxu0 %v2302
  %2416 = vmatprep.subr.mxu0 %v2299
  %2417 = vmatpush1.msra.mxu0 %v2298
  %2418 = vmatprep.subr.mxu0 %v2295
  %2419 = vmatpush1.msra.mxu0 %v2294
  %2420 = vmatprep.subr.mxu0 %v2291
  %2421 = vmatpush1.msra.mxu0 %v2290
  %2422 = vmatprep.subr.mxu0 %v2287
  %2423 = vmatpush1.msra.mxu0 %v2286
  %2424 = vmatprep.subr.mxu0 %v2283
  %2425 = vmatpush1.msra.mxu0 %v2282
  %2426 = vmatprep.subr.mxu0 0.0
  %2427 = vmatpush2.msra.mxu0 0.0
  %2428 = vmatprep.subr.mxu0 0.0
  %2429 = vmatpush2.msra.mxu0 0.0
  %2430 = vmatprep.subr.mxu0 0.0
  %2431 = vmatpush2.msra.mxu0 0.0
  %2432 = vmatprep.subr.mxu0 0.0
  %2433 = vmatpush2.msra.mxu0 0.0
  %2434 = vmatprep.subr.mxu0 0.0
  %2435 = vmatpush2.msra.mxu0 0.0
  %2436 = vmatprep.subr.mxu0 0.0
  %2437 = vmatpush2.msra.mxu0 0.0
  %2438 = vmatprep.subr.mxu0 0.0
  %2439 = vmatpush2.msra.mxu0 0.0
  %2440 = vmatprep.subr.mxu0 0.0
  %2441 = vmatpush2.msra.mxu0 0.0
  %2442 = vmatprep.subr.mxu0 0.0
  %2443 = vmatpush2.msra.mxu0 0.0
  %2444 = vmatprep.subr.mxu0 0.0
  %2445 = vmatpush2.msra.mxu0 0.0
  %2446 = vmatprep.subr.mxu0 0.0
  %2447 = vmatpush2.msra.mxu0 0.0
  %2448 = vmatprep.subr.mxu0 0.0
  %2449 = vmatpush2.msra.mxu0 0.0
  %2450 = vmatprep.subr.mxu0 0.0
  %2451 = vmatpush2.msra.mxu0 0.0
  %2452 = vmatprep.subr.mxu0 0.0
  %2453 = vmatpush2.msra.mxu0 0.0
  %2454 = vmatprep.subr.mxu0 0.0
  %2455 = vmatpush2.msra.mxu0 0.0
  %2456 = vmatprep.subr.mxu0 0.0
  %2457 = vmatpush2.msra.mxu0 0.0
  %2458 = vmatprep.mubr.f32.mxu0 0.0
  %2459 = vmatmul.mubr.f32.gmra.mxu0 %v2321
  %v2460 = vpop.f32.mrf.mxu0
  %v2461 = vadd.f32 %v2318, %v2460
  %v2462 = vpop.f32.mrf.mxu0
  %v2463 = vadd.f32 %v2318, %v2462
  %2464 = vdwg.mxu0
  %2469 = vrot.lane.b32.xlu0 %v2390, 127
  %v2470 = vpop.permute.xlu0 %2469
  %2471 = vrot.lane.b32.xlu0 %v2392, 127
  %v2472 = vpop.permute.xlu0 %2471
  %2473 = vrot.lane.b32.xlu0 %v2461, 127
  %v2474 = vpop.permute.xlu0 %2473
  %2475 = vrot.lane.b32.xlu0 %v2463, 127
  %v2476 = vpop.permute.xlu0 %2475
  %v2477 = vsel %vm324, %v2470, %v2472
  %v2478 = vsel %vm324, %v2472, %v2474
  %v2479 = vsel %vm324, %v2474, %v2476
  %v2485 = vsel %vm324, %v2476, %v2470
  %v2486 = vmax.f32 %v2390, %v2477
  %v2487 = vmax.f32 %v2392, %v2478
  %v2488 = vmax.f32 %v2461, %v2479
  %v2489 = vmax.f32 %v2463, %v2485
  %2494 = vrot.lane.b32.xlu0 %v2486, 126
  %v2495 = vpop.permute.xlu0 %2494
  %2496 = vrot.lane.b32.xlu0 %v2487, 126
  %v2497 = vpop.permute.xlu0 %2496
  %2498 = vrot.lane.b32.xlu0 %v2488, 126
  %v2499 = vpop.permute.xlu0 %2498
  %2500 = vrot.lane.b32.xlu0 %v2489, 126
  %v2501 = vpop.permute.xlu0 %2500
  %v2502 = vsel %vm1041, %v2495, %v2497
  %v2503 = vsel %vm1041, %v2497, %v2499
  %v2504 = vsel %vm1041, %v2499, %v2501
  %v2510 = vsel %vm1041, %v2501, %v2495
  %v2511 = vmax.f32 %v2486, %v2502
  %v2512 = vmax.f32 %v2487, %v2503
  %v2513 = vmax.f32 %v2488, %v2504
  %v2514 = vmax.f32 %v2489, %v2510
  %2519 = vrot.lane.b32.xlu0 %v2511, 112
  %v2520 = vpop.permute.xlu0 %2519
  %2521 = vrot.lane.b32.xlu0 %v2512, 112
  %v2522 = vpop.permute.xlu0 %2521
  %2523 = vrot.lane.b32.xlu0 %v2513, 112
  %v2524 = vpop.permute.xlu0 %2523
  %2525 = vrot.lane.b32.xlu0 %v2514, 112
  %v2526 = vpop.permute.xlu0 %2525
  %v2527 = vsel %vm376, %v2520, %v2522
  %v2528 = vsel %vm376, %v2522, %v2524
  %v2529 = vsel %vm376, %v2524, %v2526
  %v2535 = vsel %vm376, %v2526, %v2520
  %v2536 = vmax.f32 %v2511, %v2527
  %v2537 = vmax.f32 %v2512, %v2528
  %v2538 = vmax.f32 %v2513, %v2529
  %v2539 = vmax.f32 %v2514, %v2535
  %2544 = vrot.lane.b32.xlu0 %v2536, 96
  %v2545 = vpop.permute.xlu0 %2544
  %2546 = vrot.lane.b32.xlu0 %v2537, 96
  %v2547 = vpop.permute.xlu0 %2546
  %2548 = vrot.lane.b32.xlu0 %v2538, 96
  %v2549 = vpop.permute.xlu0 %2548
  %2550 = vrot.lane.b32.xlu0 %v2539, 96
  %v2551 = vpop.permute.xlu0 %2550
  %v2552 = vsel %vm1092, %v2545, %v2547
  %v2553 = vsel %vm1092, %v2547, %v2549
  %v2554 = vsel %vm1092, %v2549, %v2551
  %v2560 = vsel %vm1092, %v2551, %v2545
  %v2561 = vmax.f32 %v2536, %v2552
  %v2562 = vmax.f32 %v2537, %v2553
  %v2563 = vmax.f32 %v2538, %v2554
  %v2564 = vmax.f32 %v2539, %v2560
  %s2565 = scalar_lea.vmem %s6, 512
  %v2566 = vld [vmem:[%s2565] sm:$0xff]
  %v2567 = vld [vmem:[%s2565 + $0x8] sm:$0xff]
  %v2568 = vld [vmem:[%s2565 + $0x10] sm:$0xff]
  %v2569 = vld [vmem:[%s2565 + $0x18] sm:$0xff]
  %v2570 = vld [vmem:[%s2565 + $0x20] sm:$0xff]
  %v2571 = vld [vmem:[%s2565 + $0x28] sm:$0xff]
  %v2572 = vld [vmem:[%s2565 + $0x30] sm:$0xff]
  %v2573 = vld [vmem:[%s2565 + $0x38] sm:$0xff]
  %v2574 = vld [vmem:[%s2565 + $0x40] sm:$0xff]
  %v2575 = vld [vmem:[%s2565 + $0x48] sm:$0xff]
  %v2576 = vld [vmem:[%s2565 + $0x50] sm:$0xff]
  %v2577 = vld [vmem:[%s2565 + $0x58] sm:$0xff]
  %v2578 = vld [vmem:[%s2565 + $0x60] sm:$0xff]
  %v2579 = vld [vmem:[%s2565 + $0x68] sm:$0xff]
  %v2580 = vld [vmem:[%s2565 + $0x70] sm:$0xff]
  %v2581 = vld [vmem:[%s2565 + $0x78] sm:$0xff]
  %v2582 = vld [vmem:[%s2565 + $0x80] sm:$0xff]
  %v2583 = vld [vmem:[%s2565 + $0x88] sm:$0xff]
  %v2584 = vld [vmem:[%s2565 + $0x90] sm:$0xff]
  %v2585 = vld [vmem:[%s2565 + $0x98] sm:$0xff]
  %v2586 = vld [vmem:[%s2565 + $0xa0] sm:$0xff]
  %v2587 = vld [vmem:[%s2565 + $0xa8] sm:$0xff]
  %v2588 = vld [vmem:[%s2565 + $0xb0] sm:$0xff]
  %v2589 = vld [vmem:[%s2565 + $0xb8] sm:$0xff]
  %v2590 = vld [vmem:[%s2565 + $0xc0] sm:$0xff]
  %v2591 = vld [vmem:[%s2565 + $0xc8] sm:$0xff]
  %v2592 = vld [vmem:[%s2565 + $0xd0] sm:$0xff]
  %v2593 = vld [vmem:[%s2565 + $0xd8] sm:$0xff]
  %v2594 = vld [vmem:[%s2565 + $0xe0] sm:$0xff]
  %v2595 = vld [vmem:[%s2565 + $0xe8] sm:$0xff]
  %v2596 = vld [vmem:[%s2565 + $0xf0] sm:$0xff]
  %v2597 = vld [vmem:[%s2565 + $0xf8] sm:$0xff]
  %v2598 = vld [vmem:[%s2565 + $0x100] sm:$0xff]
  %v2599 = vld [vmem:[%s2565 + $0x108] sm:$0xff]
  %v2600 = vld [vmem:[%s2565 + $0x110] sm:$0xff]
  %v2601 = vld [vmem:[%s2565 + $0x118] sm:$0xff]
  %v2602 = vld [vmem:[%s2565 + $0x120] sm:$0xff]
  %v2603 = vld [vmem:[%s2565 + $0x128] sm:$0xff]
  %v2604 = vld [vmem:[%s2565 + $0x130] sm:$0xff]
  %v2605 = vld [vmem:[%s2565 + $0x138] sm:$0xff]
  %v2606 = vld [vmem:[%s2565 + $0x140] sm:$0xff]
  %v2607 = vld [vmem:[%s2565 + $0x148] sm:$0xff]
  %v2608 = vld [vmem:[%s2565 + $0x150] sm:$0xff]
  %v2609 = vld [vmem:[%s2565 + $0x158] sm:$0xff]
  %v2610 = vld [vmem:[%s2565 + $0x160] sm:$0xff]
  %v2611 = vld [vmem:[%s2565 + $0x168] sm:$0xff]
  %v2612 = vld [vmem:[%s2565 + $0x170] sm:$0xff]
  %v2613 = vld [vmem:[%s2565 + $0x178] sm:$0xff]
  %v2614 = vld [vmem:[%s2565 + $0x180] sm:$0xff]
  %v2615 = vld [vmem:[%s2565 + $0x188] sm:$0xff]
  %v2616 = vld [vmem:[%s2565 + $0x190] sm:$0xff]
  %v2617 = vld [vmem:[%s2565 + $0x198] sm:$0xff]
  %v2618 = vld [vmem:[%s2565 + $0x1a0] sm:$0xff]
  %v2619 = vld [vmem:[%s2565 + $0x1a8] sm:$0xff]
  %v2620 = vld [vmem:[%s2565 + $0x1b0] sm:$0xff]
  %v2621 = vld [vmem:[%s2565 + $0x1b8] sm:$0xff]
  %v2622 = vld [vmem:[%s2565 + $0x1c0] sm:$0xff]
  %v2623 = vld [vmem:[%s2565 + $0x1c8] sm:$0xff]
  %v2624 = vld [vmem:[%s2565 + $0x1d0] sm:$0xff]
  %v2625 = vld [vmem:[%s2565 + $0x1d8] sm:$0xff]
  %v2626 = vld [vmem:[%s2565 + $0x1e0] sm:$0xff]
  %v2627 = vld [vmem:[%s2565 + $0x1e8] sm:$0xff]
  %v2628 = vld [vmem:[%s2565 + $0x1f0] sm:$0xff]
  %v2629 = vld [vmem:[%s2565 + $0x1f8] sm:$0xff]
  %2630 = vmatprep.subr.mxu0 0.0
  %2631 = vmatpush1.msra.mxu0 %v2581
  %2632 = vmatprep.subr.mxu0 0.0
  %2633 = vmatpush1.msra.mxu0 %v2580
  %2634 = vmatprep.subr.mxu0 0.0
  %2635 = vmatpush1.msra.mxu0 %v2579
  %2636 = vmatprep.subr.mxu0 0.0
  %2637 = vmatpush1.msra.mxu0 %v2578
  %2638 = vmatprep.subr.mxu0 0.0
  %2639 = vmatpush1.msra.mxu0 %v2577
  %2640 = vmatprep.subr.mxu0 0.0
  %2641 = vmatpush1.msra.mxu0 %v2576
  %2642 = vmatprep.subr.mxu0 0.0
  %2643 = vmatpush1.msra.mxu0 %v2575
  %2644 = vmatprep.subr.mxu0 0.0
  %2645 = vmatpush1.msra.mxu0 %v2574
  %2646 = vmatprep.subr.mxu0 0.0
  %2647 = vmatpush1.msra.mxu0 %v2573
  %2648 = vmatprep.subr.mxu0 0.0
  %2649 = vmatpush1.msra.mxu0 %v2572
  %2650 = vmatprep.subr.mxu0 0.0
  %2651 = vmatpush1.msra.mxu0 %v2571
  %2652 = vmatprep.subr.mxu0 0.0
  %2653 = vmatpush1.msra.mxu0 %v2570
  %2654 = vmatprep.subr.mxu0 0.0
  %2655 = vmatpush1.msra.mxu0 %v2569
  %2656 = vmatprep.subr.mxu0 0.0
  %2657 = vmatpush1.msra.mxu0 %v2568
  %2658 = vmatprep.subr.mxu0 0.0
  %2659 = vmatpush1.msra.mxu0 %v2567
  %2660 = vmatprep.subr.mxu0 0.0
  %2661 = vmatpush1.msra.mxu0 %v2566
  %2662 = vmatprep.subr.mxu0 0.0
  %2663 = vmatpush2.msra.mxu0 %v2597
  %2664 = vmatprep.subr.mxu0 0.0
  %2665 = vmatpush2.msra.mxu0 %v2596
  %2666 = vmatprep.subr.mxu0 0.0
  %2667 = vmatpush2.msra.mxu0 %v2595
  %2668 = vmatprep.subr.mxu0 0.0
  %2669 = vmatpush2.msra.mxu0 %v2594
  %2670 = vmatprep.subr.mxu0 0.0
  %2671 = vmatpush2.msra.mxu0 %v2593
  %2672 = vmatprep.subr.mxu0 0.0
  %2673 = vmatpush2.msra.mxu0 %v2592
  %2674 = vmatprep.subr.mxu0 0.0
  %2675 = vmatpush2.msra.mxu0 %v2591
  %2676 = vmatprep.subr.mxu0 0.0
  %2677 = vmatpush2.msra.mxu0 %v2590
  %2678 = vmatprep.subr.mxu0 0.0
  %2679 = vmatpush2.msra.mxu0 %v2589
  %2680 = vmatprep.subr.mxu0 0.0
  %2681 = vmatpush2.msra.mxu0 %v2588
  %2682 = vmatprep.subr.mxu0 0.0
  %2683 = vmatpush2.msra.mxu0 %v2587
  %2684 = vmatprep.subr.mxu0 0.0
  %2685 = vmatpush2.msra.mxu0 %v2586
  %2686 = vmatprep.subr.mxu0 0.0
  %2687 = vmatpush2.msra.mxu0 %v2585
  %2688 = vmatprep.subr.mxu0 0.0
  %2689 = vmatpush2.msra.mxu0 %v2584
  %2690 = vmatprep.subr.mxu0 0.0
  %2691 = vmatpush2.msra.mxu0 %v2583
  %2692 = vmatprep.subr.mxu0 0.0
  %2693 = vmatpush2.msra.mxu0 %v2582
  %2694 = vmatprep.mubr.f32.mxu0 %v2562
  %2695 = vmatmul.mubr.f32.gmra.mxu0 %v2561
  %v2696 = vpop.f32.mrf.mxu0
  %v2697 = vadd.f32 0.0, %v2696
  %v2698 = vpop.f32.mrf.mxu0
  %2699 = vdwg.mxu0
  %2700 = vmatprep.subr.mxu0 0.0
  %2701 = vmatpush1.msra.mxu0 %v2613
  %2702 = vmatprep.subr.mxu0 0.0
  %2703 = vmatpush1.msra.mxu0 %v2612
  %2704 = vmatprep.subr.mxu0 0.0
  %2705 = vmatpush1.msra.mxu0 %v2611
  %2706 = vmatprep.subr.mxu0 0.0
  %2707 = vmatpush1.msra.mxu0 %v2610
  %2708 = vmatprep.subr.mxu0 0.0
  %2709 = vmatpush1.msra.mxu0 %v2609
  %2710 = vmatprep.subr.mxu0 0.0
  %2711 = vmatpush1.msra.mxu0 %v2608
  %2712 = vmatprep.subr.mxu0 0.0
  %2713 = vmatpush1.msra.mxu0 %v2607
  %2714 = vmatprep.subr.mxu0 0.0
  %2715 = vmatpush1.msra.mxu0 %v2606
  %2716 = vmatprep.subr.mxu0 0.0
  %2717 = vmatpush1.msra.mxu0 %v2605
  %2718 = vmatprep.subr.mxu0 0.0
  %2719 = vmatpush1.msra.mxu0 %v2604
  %2720 = vmatprep.subr.mxu0 0.0
  %2721 = vmatpush1.msra.mxu0 %v2603
  %2722 = vmatprep.subr.mxu0 0.0
  %2723 = vmatpush1.msra.mxu0 %v2602
  %2724 = vmatprep.subr.mxu0 0.0
  %2725 = vmatpush1.msra.mxu0 %v2601
  %2726 = vmatprep.subr.mxu0 0.0
  %2727 = vmatpush1.msra.mxu0 %v2600
  %2728 = vmatprep.subr.mxu0 0.0
  %2729 = vmatpush1.msra.mxu0 %v2599
  %2730 = vmatprep.subr.mxu0 0.0
  %2731 = vmatpush1.msra.mxu0 %v2598
  %2732 = vmatprep.subr.mxu0 0.0
  %2733 = vmatpush2.msra.mxu0 %v2629
  %2734 = vmatprep.subr.mxu0 0.0
  %2735 = vmatpush2.msra.mxu0 %v2628
  %2736 = vmatprep.subr.mxu0 0.0
  %2737 = vmatpush2.msra.mxu0 %v2627
  %2738 = vmatprep.subr.mxu0 0.0
  %2739 = vmatpush2.msra.mxu0 %v2626
  %2740 = vmatprep.subr.mxu0 0.0
  %2741 = vmatpush2.msra.mxu0 %v2625
  %2742 = vmatprep.subr.mxu0 0.0
  %2743 = vmatpush2.msra.mxu0 %v2624
  %2744 = vmatprep.subr.mxu0 0.0
  %2745 = vmatpush2.msra.mxu0 %v2623
  %2746 = vmatprep.subr.mxu0 0.0
  %2747 = vmatpush2.msra.mxu0 %v2622
  %2748 = vmatprep.subr.mxu0 0.0
  %2749 = vmatpush2.msra.mxu0 %v2621
  %2750 = vmatprep.subr.mxu0 0.0
  %2751 = vmatpush2.msra.mxu0 %v2620
  %2752 = vmatprep.subr.mxu0 0.0
  %2753 = vmatpush2.msra.mxu0 %v2619
  %2754 = vmatprep.subr.mxu0 0.0
  %2755 = vmatpush2.msra.mxu0 %v2618
  %2756 = vmatprep.subr.mxu0 0.0
  %2757 = vmatpush2.msra.mxu0 %v2617
  %2758 = vmatprep.subr.mxu0 0.0
  %2759 = vmatpush2.msra.mxu0 %v2616
  %2760 = vmatprep.subr.mxu0 0.0
  %2761 = vmatpush2.msra.mxu0 %v2615
  %2762 = vmatprep.subr.mxu0 0.0
  %2763 = vmatpush2.msra.mxu0 %v2614
  %2764 = vmatprep.mubr.f32.mxu0 %v2564
  %2765 = vmatmul.mubr.f32.gmra.mxu0 %v2563
  %v2766 = vpop.f32.mrf.mxu0
  %v2767 = vadd.f32 %v2697, %v2766
  %v2768 = vpop.f32.mrf.mxu0
  %2769 = vdwg.mxu0
  %v2770 = vmax.f32 %v2767, 0.0
  %s2771 = scalar_lea.vmem %s7, 16
  %v2772 = vld [vmem:[%s2771] sm:$0xff]
  %v2773 = vld [vmem:[%s2771 + $0x8] sm:$0xff]
  %v2775 = vsel %vm243, %v2770, 0
  %2777 = vmatprep.subr.mxu0 0.0
  %2778 = vmatpush1.msra.mxu0 0.0
  %2779 = vmatprep.subr.mxu0 0.0
  %2780 = vmatpush1.msra.mxu0 0.0
  %2781 = vmatprep.subr.mxu0 0.0
  %2782 = vmatpush1.msra.mxu0 0.0
  %2783 = vmatprep.subr.mxu0 0.0
  %2784 = vmatpush1.msra.mxu0 0.0
  %2785 = vmatprep.subr.mxu0 0.0
  %2786 = vmatpush1.msra.mxu0 0.0
  %2787 = vmatprep.subr.mxu0 0.0
  %2788 = vmatpush1.msra.mxu0 0.0
  %2789 = vmatprep.subr.mxu0 0.0
  %2790 = vmatpush1.msra.mxu0 0.0
  %2791 = vmatprep.subr.mxu0 0.0
  %2792 = vmatpush1.msra.mxu0 0.0
  %2793 = vmatprep.subr.mxu0 0.0
  %2794 = vmatpush1.msra.mxu0 0.0
  %2795 = vmatprep.subr.mxu0 0.0
  %2796 = vmatpush1.msra.mxu0 0.0
  %2797 = vmatprep.subr.mxu0 0.0
  %2798 = vmatpush1.msra.mxu0 0.0
  %2799 = vmatprep.subr.mxu0 0.0
  %2800 = vmatpush1.msra.mxu0 0.0
  %2801 = vmatprep.subr.mxu0 0.0
  %2802 = vmatpush1.msra.mxu0 0.0
  %2803 = vmatprep.subr.mxu0 0.0
  %2804 = vmatpush1.msra.mxu0 0.0
  %2805 = vmatprep.subr.mxu0 0.0
  %2806 = vmatpush1.msra.mxu0 %v2773
  %2807 = vmatprep.subr.mxu0 0.0
  %2808 = vmatpush1.msra.mxu0 %v2772
  %2809 = vmatprep.subr.mxu0 0.0
  %2810 = vmatpush2.msra.mxu0 0.0
  %2811 = vmatprep.subr.mxu0 0.0
  %2812 = vmatpush2.msra.mxu0 0.0
  %2813 = vmatprep.subr.mxu0 0.0
  %2814 = vmatpush2.msra.mxu0 0.0
  %2815 = vmatprep.subr.mxu0 0.0
  %2816 = vmatpush2.msra.mxu0 0.0
  %2817 = vmatprep.subr.mxu0 0.0
  %2818 = vmatpush2.msra.mxu0 0.0
  %2819 = vmatprep.subr.mxu0 0.0
  %2820 = vmatpush2.msra.mxu0 0.0
  %2821 = vmatprep.subr.mxu0 0.0
  %2822 = vmatpush2.msra.mxu0 0.0
  %2823 = vmatprep.subr.mxu0 0.0
  %2824 = vmatpush2.msra.mxu0 0.0
  %2825 = vmatprep.subr.mxu0 0.0
  %2826 = vmatpush2.msra.mxu0 0.0
  %2827 = vmatprep.subr.mxu0 0.0
  %2828 = vmatpush2.msra.mxu0 0.0
  %2829 = vmatprep.subr.mxu0 0.0
  %2830 = vmatpush2.msra.mxu0 0.0
  %2831 = vmatprep.subr.mxu0 0.0
  %2832 = vmatpush2.msra.mxu0 0.0
  %2833 = vmatprep.subr.mxu0 0.0
  %2834 = vmatpush2.msra.mxu0 0.0
  %2835 = vmatprep.subr.mxu0 0.0
  %2836 = vmatpush2.msra.mxu0 0.0
  %2837 = vmatprep.subr.mxu0 0.0
  %2838 = vmatpush2.msra.mxu0 0.0
  %2839 = vmatprep.subr.mxu0 0.0
  %2840 = vmatpush2.msra.mxu0 0.0
  %2841 = vmatprep.mubr.f32.mxu0 0.0
  %2842 = vmatmul.mubr.f32.gmra.mxu0 %v2775
  %v2843 = vpop.f32.mrf.mxu0
  %v2844 = vadd.f32 0.0, %v2843
  %v2845 = vpop.f32.mrf.mxu0
  %2846 = vdwg.mxu0
  %v2847 = vxor.u32 %v2844, 2147483648
  %v2848 = vmul.f32 %v2847, 1.442695
  %v2849 = vpow.pop %v2848
  %v2850 = vadd.f32 %v2849, 1.0
  %v2851 = vrcp.pop %v2850
  %v2852 = vmul.f32 1.0, %v2851
  %v2854 = vsel %vm1392, %v2852, 0
  %2856 = vmatprep.subr.mxu0 0.0
  %2857 = vmatpush1.msra.mxu0 0.0
  %2858 = vmatprep.subr.mxu0 0.0
  %2859 = vmatpush1.msra.mxu0 0.0
  %2860 = vmatprep.subr.mxu0 0.0
  %2861 = vmatpush1.msra.mxu0 0.0
  %2862 = vmatprep.subr.mxu0 0.0
  %2863 = vmatpush1.msra.mxu0 0.0
  %2864 = vmatprep.subr.mxu0 0.0
  %2865 = vmatpush1.msra.mxu0 0.0
  %2866 = vmatprep.subr.mxu0 0.0
  %2867 = vmatpush1.msra.mxu0 0.0
  %2868 = vmatprep.subr.mxu0 0.0
  %2869 = vmatpush1.msra.mxu0 0.0
  %2870 = vmatprep.subr.mxu0 0.0
  %2871 = vmatpush1.msra.mxu0 0.0
  %2872 = vmatprep.subr.mxu0 0.0
  %2873 = vmatpush1.msra.mxu0 0.0
  %2874 = vmatprep.subr.mxu0 0.0
  %2875 = vmatpush1.msra.mxu0 0.0
  %2876 = vmatprep.subr.mxu0 0.0
  %2877 = vmatpush1.msra.mxu0 0.0
  %2878 = vmatprep.subr.mxu0 0.0
  %2879 = vmatpush1.msra.mxu0 0.0
  %2880 = vmatprep.subr.mxu0 0.0
  %2881 = vmatpush1.msra.mxu0 %v180
  %2882 = vmatprep.subr.mxu0 0.0
  %2883 = vmatpush1.msra.mxu0 %v179
  %2884 = vmatprep.subr.mxu0 0.0
  %2885 = vmatpush1.msra.mxu0 %v178
  %2886 = vmatprep.subr.mxu0 0.0
  %2887 = vmatpush1.msra.mxu0 %v177
  %2888 = vmatprep.subr.mxu0 0.0
  %2889 = vmatpush2.msra.mxu0 0.0
  %2890 = vmatprep.subr.mxu0 0.0
  %2891 = vmatpush2.msra.mxu0 0.0
  %2892 = vmatprep.subr.mxu0 0.0
  %2893 = vmatpush2.msra.mxu0 0.0
  %2894 = vmatprep.subr.mxu0 0.0
  %2895 = vmatpush2.msra.mxu0 0.0
  %2896 = vmatprep.subr.mxu0 0.0
  %2897 = vmatpush2.msra.mxu0 0.0
  %2898 = vmatprep.subr.mxu0 0.0
  %2899 = vmatpush2.msra.mxu0 0.0
  %2900 = vmatprep.subr.mxu0 0.0
  %2901 = vmatpush2.msra.mxu0 0.0
  %2902 = vmatprep.subr.mxu0 0.0
  %2903 = vmatpush2.msra.mxu0 0.0
  %2904 = vmatprep.subr.mxu0 0.0
  %2905 = vmatpush2.msra.mxu0 0.0
  %2906 = vmatprep.subr.mxu0 0.0
  %2907 = vmatpush2.msra.mxu0 0.0
  %2908 = vmatprep.subr.mxu0 0.0
  %2909 = vmatpush2.msra.mxu0 0.0
  %2910 = vmatprep.subr.mxu0 0.0
  %2911 = vmatpush2.msra.mxu0 0.0
  %2912 = vmatprep.subr.mxu0 0.0
  %2913 = vmatpush2.msra.mxu0 0.0
  %2914 = vmatprep.subr.mxu0 0.0
  %2915 = vmatpush2.msra.mxu0 0.0
  %2916 = vmatprep.subr.mxu0 0.0
  %2917 = vmatpush2.msra.mxu0 0.0
  %2918 = vmatprep.subr.mxu0 0.0
  %2919 = vmatpush2.msra.mxu0 0.0
  %2920 = vmatprep.mubr.f32.mxu0 0.0
  %2921 = vmatmul.mubr.f32.gmra.mxu0 %v2854
  %v2922 = vpop.f32.mrf.mxu0
  %v2923 = vadd.f32 0.0, %v2922
  %v2924 = vpop.f32.mrf.mxu0
  %2925 = vdwg.mxu0
  %s2926 = scalar_lea.vmem %s8, 2
  %v2927 = vld [vmem:[%s2926] sm:$0x3]
  %v2929 = vsel %vm1467, %v2927, 0
  %2931 = vmatprep.subr.mxu0 0.0
  %2932 = vmatpush1.msra.mxu0 0.0
  %2933 = vmatprep.subr.mxu0 0.0
  %2934 = vmatpush1.msra.mxu0 0.0
  %2935 = vmatprep.subr.mxu0 0.0
  %2936 = vmatpush1.msra.mxu0 0.0
  %2937 = vmatprep.subr.mxu0 0.0
  %2938 = vmatpush1.msra.mxu0 0.0
  %2939 = vmatprep.subr.mxu0 0.0
  %2940 = vmatpush1.msra.mxu0 0.0
  %2941 = vmatprep.subr.mxu0 0.0
  %2942 = vmatpush1.msra.mxu0 0.0
  %2943 = vmatprep.subr.mxu0 0.0
  %2944 = vmatpush1.msra.mxu0 0.0
  %2945 = vmatprep.subr.mxu0 0.0
  %2946 = vmatpush1.msra.mxu0 0.0
  %2947 = vmatprep.subr.mxu0 0.0
  %2948 = vmatpush1.msra.mxu0 0.0
  %2949 = vmatprep.subr.mxu0 0.0
  %2950 = vmatpush1.msra.mxu0 0.0
  %2951 = vmatprep.subr.mxu0 0.0
  %2952 = vmatpush1.msra.mxu0 0.0
  %2953 = vmatprep.subr.mxu0 0.0
  %2954 = vmatpush1.msra.mxu0 0.0
  %2955 = vmatprep.subr.mxu0 0.0
  %2956 = vmatpush1.msra.mxu0 0.0
  %2957 = vmatprep.subr.mxu0 0.0
  %2958 = vmatpush1.msra.mxu0 0.0
  %2959 = vmatprep.subr.mxu0 0.0
  %2960 = vmatpush1.msra.mxu0 0.0
  %2961 = vmatprep.subr.mxu0 0.0
  %2962 = vmatpush1.msra.mxu0 %v2923
  %2963 = vmatprep.subr.mxu0 0.0
  %2964 = vmatpush2.msra.mxu0 0.0
  %2965 = vmatprep.subr.mxu0 0.0
  %2966 = vmatpush2.msra.mxu0 0.0
  %2967 = vmatprep.subr.mxu0 0.0
  %2968 = vmatpush2.msra.mxu0 0.0
  %2969 = vmatprep.subr.mxu0 0.0
  %2970 = vmatpush2.msra.mxu0 0.0
  %2971 = vmatprep.subr.mxu0 0.0
  %2972 = vmatpush2.msra.mxu0 0.0
  %2973 = vmatprep.subr.mxu0 0.0
  %2974 = vmatpush2.msra.mxu0 0.0
  %2975 = vmatprep.subr.mxu0 0.0
  %2976 = vmatpush2.msra.mxu0 0.0
  %2977 = vmatprep.subr.mxu0 0.0
  %2978 = vmatpush2.msra.mxu0 0.0
  %2979 = vmatprep.subr.mxu0 0.0
  %2980 = vmatpush2.msra.mxu0 0.0
  %2981 = vmatprep.subr.mxu0 0.0
  %2982 = vmatpush2.msra.mxu0 0.0
  %2983 = vmatprep.subr.mxu0 0.0
  %2984 = vmatpush2.msra.mxu0 0.0
  %2985 = vmatprep.subr.mxu0 0.0
  %2986 = vmatpush2.msra.mxu0 0.0
  %2987 = vmatprep.subr.mxu0 0.0
  %2988 = vmatpush2.msra.mxu0 0.0
  %2989 = vmatprep.subr.mxu0 0.0
  %2990 = vmatpush2.msra.mxu0 0.0
  %2991 = vmatprep.subr.mxu0 0.0
  %2992 = vmatpush2.msra.mxu0 0.0
  %2993 = vmatprep.subr.mxu0 0.0
  %2994 = vmatpush2.msra.mxu0 0.0
  %2995 = vmatprep.mubr.f32.mxu0 0.0
  %2996 = vmatmul.mubr.f32.gmra.mxu0 %v2929
  %v2997 = vpop.f32.mrf.mxu0
  %v2998 = vadd.f32 0.0, %v2997
  %v2999 = vpop.f32.mrf.mxu0
  %3000 = vdwg.mxu0
  %v3001 = vmax.f32 %v2998, 0.0
  %s3002 = scalar_lea.vmem %s9, 8
  %v3003 = vld [vmem:[%s3002] sm:$0xff]
  %v3005 = vsel %vm1543, %v3003, 0
  %v3008 = vsel %vm1547, %v3001, 0
  %3010 = vmatprep.subr.mxu0 0.0
  %3011 = vmatpush1.msra.mxu0 0.0
  %3012 = vmatprep.subr.mxu0 0.0
  %3013 = vmatpush1.msra.mxu0 0.0
  %3014 = vmatprep.subr.mxu0 0.0
  %3015 = vmatpush1.msra.mxu0 0.0
  %3016 = vmatprep.subr.mxu0 0.0
  %3017 = vmatpush1.msra.mxu0 0.0
  %3018 = vmatprep.subr.mxu0 0.0
  %3019 = vmatpush1.msra.mxu0 0.0
  %3020 = vmatprep.subr.mxu0 0.0
  %3021 = vmatpush1.msra.mxu0 0.0
  %3022 = vmatprep.subr.mxu0 0.0
  %3023 = vmatpush1.msra.mxu0 0.0
  %3024 = vmatprep.subr.mxu0 0.0
  %3025 = vmatpush1.msra.mxu0 0.0
  %3026 = vmatprep.subr.mxu0 0.0
  %3027 = vmatpush1.msra.mxu0 0.0
  %3028 = vmatprep.subr.mxu0 0.0
  %3029 = vmatpush1.msra.mxu0 0.0
  %3030 = vmatprep.subr.mxu0 0.0
  %3031 = vmatpush1.msra.mxu0 0.0
  %3032 = vmatprep.subr.mxu0 0.0
  %3033 = vmatpush1.msra.mxu0 0.0
  %3034 = vmatprep.subr.mxu0 0.0
  %3035 = vmatpush1.msra.mxu0 0.0
  %3036 = vmatprep.subr.mxu0 0.0
  %3037 = vmatpush1.msra.mxu0 0.0
  %3038 = vmatprep.subr.mxu0 0.0
  %3039 = vmatpush1.msra.mxu0 0.0
  %3040 = vmatprep.subr.mxu0 0.0
  %3041 = vmatpush1.msra.mxu0 %v3008
  %3042 = vmatprep.subr.mxu0 0.0
  %3043 = vmatpush2.msra.mxu0 0.0
  %3044 = vmatprep.subr.mxu0 0.0
  %3045 = vmatpush2.msra.mxu0 0.0
  %3046 = vmatprep.subr.mxu0 0.0
  %3047 = vmatpush2.msra.mxu0 0.0
  %3048 = vmatprep.subr.mxu0 0.0
  %3049 = vmatpush2.msra.mxu0 0.0
  %3050 = vmatprep.subr.mxu0 0.0
  %3051 = vmatpush2.msra.mxu0 0.0
  %3052 = vmatprep.subr.mxu0 0.0
  %3053 = vmatpush2.msra.mxu0 0.0
  %3054 = vmatprep.subr.mxu0 0.0
  %3055 = vmatpush2.msra.mxu0 0.0
  %3056 = vmatprep.subr.mxu0 0.0
  %3057 = vmatpush2.msra.mxu0 0.0
  %3058 = vmatprep.subr.mxu0 0.0
  %3059 = vmatpush2.msra.mxu0 0.0
  %3060 = vmatprep.subr.mxu0 0.0
  %3061 = vmatpush2.msra.mxu0 0.0
  %3062 = vmatprep.subr.mxu0 0.0
  %3063 = vmatpush2.msra.mxu0 0.0
  %3064 = vmatprep.subr.mxu0 0.0
  %3065 = vmatpush2.msra.mxu0 0.0
  %3066 = vmatprep.subr.mxu0 0.0
  %3067 = vmatpush2.msra.mxu0 0.0
  %3068 = vmatprep.subr.mxu0 0.0
  %3069 = vmatpush2.msra.mxu0 0.0
  %3070 = vmatprep.subr.mxu0 0.0
  %3071 = vmatpush2.msra.mxu0 0.0
  %3072 = vmatprep.subr.mxu0 0.0
  %3073 = vmatpush2.msra.mxu0 0.0
  %3074 = vmatprep.mubr.f32.mxu0 0.0
  %3075 = vmatmul.mubr.f32.gmra.mxu0 %v3005
  %v3076 = vpop.f32.mrf.mxu0
  %v3077 = vadd.f32 0.0, %v3076
  %v3078 = vpop.f32.mrf.mxu0
  %3079 = vdwg.mxu0
  %v3080 = vxor.u32 %v3077, 2147483648
  %v3081 = vmul.f32 %v3080, 1.442695
  %v3082 = vpow.pop %v3081
  %v3083 = vadd.f32 %v3082, 1.0
  %v3084 = vrcp.pop %v3083
  %v3085 = vmul.f32 1.0, %v3084
  %3087 = vset.pattern.permute.xlu0 0
  %3088 = vperm.xlu0 %3087, %v3085
  %v3089 = vpop.permute.xlu0 %3088
  %v3091 = vmul.f32 %v2390, %v3089
  %v3092 = vmul.f32 %v2392, %v3089
  %v3093 = vtanh.pop %v3091
  %v3094 = vtanh.pop %v3092
  %v3095 = vmul.f32 %v3091, %v3093
  %v3096 = vmul.f32 %v3092, %v3094
  %v3097 = vadd.f32 %v1638, %v3095
  %v3098 = vadd.f32 %v1639, %v3096
  %3099 = vset.pattern.permute.xlu0 1
  %3100 = vperm.xlu0 %3099, %v3085
  %v3101 = vpop.permute.xlu0 %3100
  %v3103 = vmul.f32 %v2461, %v3101
  %v3104 = vmul.f32 %v2463, %v3101
  %v3105 = vtanh.pop %v3103
  %v3106 = vtanh.pop %v3104
  %v3107 = vmul.f32 %v3103, %v3105
  %v3108 = vmul.f32 %v3104, %v3106
  %v3109 = vadd.f32 %v1650, %v3107
  %v3110 = vadd.f32 %v1651, %v3108
  %v3111 = vld [vmem:[%s10] sm:$0xff]
  %v3113 = vsel %vm1467, %v3111, 0
  %3115 = vmatprep.subr.mxu0 0.0
  %3116 = vmatpush1.msra.mxu0 0.0
  %3117 = vmatprep.subr.mxu0 0.0
  %3118 = vmatpush1.msra.mxu0 0.0
  %3119 = vmatprep.subr.mxu0 0.0
  %3120 = vmatpush1.msra.mxu0 0.0
  %3121 = vmatprep.subr.mxu0 0.0
  %3122 = vmatpush1.msra.mxu0 0.0
  %3123 = vmatprep.subr.mxu0 0.0
  %3124 = vmatpush1.msra.mxu0 0.0
  %3125 = vmatprep.subr.mxu0 0.0
  %3126 = vmatpush1.msra.mxu0 0.0
  %3127 = vmatprep.subr.mxu0 0.0
  %3128 = vmatpush1.msra.mxu0 0.0
  %3129 = vmatprep.subr.mxu0 0.0
  %3130 = vmatpush1.msra.mxu0 0.0
  %3131 = vmatprep.subr.mxu0 0.0
  %3132 = vmatpush1.msra.mxu0 0.0
  %3133 = vmatprep.subr.mxu0 0.0
  %3134 = vmatpush1.msra.mxu0 0.0
  %3135 = vmatprep.subr.mxu0 0.0
  %3136 = vmatpush1.msra.mxu0 0.0
  %3137 = vmatprep.subr.mxu0 0.0
  %3138 = vmatpush1.msra.mxu0 0.0
  %3139 = vmatprep.subr.mxu0 0.0
  %3140 = vmatpush1.msra.mxu0 0.0
  %3141 = vmatprep.subr.mxu0 0.0
  %3142 = vmatpush1.msra.mxu0 0.0
  %3143 = vmatprep.subr.mxu0 0.0
  %3144 = vmatpush1.msra.mxu0 0.0
  %3145 = vmatprep.subr.mxu0 %v3098
  %3146 = vmatpush1.msra.mxu0 %v3097
  %3147 = vmatprep.subr.mxu0 0.0
  %3148 = vmatpush2.msra.mxu0 0.0
  %3149 = vmatprep.subr.mxu0 0.0
  %3150 = vmatpush2.msra.mxu0 0.0
  %3151 = vmatprep.subr.mxu0 0.0
  %3152 = vmatpush2.msra.mxu0 0.0
  %3153 = vmatprep.subr.mxu0 0.0
  %3154 = vmatpush2.msra.mxu0 0.0
  %3155 = vmatprep.subr.mxu0 0.0
  %3156 = vmatpush2.msra.mxu0 0.0
  %3157 = vmatprep.subr.mxu0 0.0
  %3158 = vmatpush2.msra.mxu0 0.0
  %3159 = vmatprep.subr.mxu0 0.0
  %3160 = vmatpush2.msra.mxu0 0.0
  %3161 = vmatprep.subr.mxu0 0.0
  %3162 = vmatpush2.msra.mxu0 0.0
  %3163 = vmatprep.subr.mxu0 0.0
  %3164 = vmatpush2.msra.mxu0 0.0
  %3165 = vmatprep.subr.mxu0 0.0
  %3166 = vmatpush2.msra.mxu0 0.0
  %3167 = vmatprep.subr.mxu0 0.0
  %3168 = vmatpush2.msra.mxu0 0.0
  %3169 = vmatprep.subr.mxu0 0.0
  %3170 = vmatpush2.msra.mxu0 0.0
  %3171 = vmatprep.subr.mxu0 0.0
  %3172 = vmatpush2.msra.mxu0 0.0
  %3173 = vmatprep.subr.mxu0 0.0
  %3174 = vmatpush2.msra.mxu0 0.0
  %3175 = vmatprep.subr.mxu0 0.0
  %3176 = vmatpush2.msra.mxu0 0.0
  %3177 = vmatprep.subr.mxu0 0.0
  %3178 = vmatpush2.msra.mxu0 0.0
  %3179 = vmatprep.mubr.f32.mxu0 0.0
  %3180 = vmatmul.mubr.f32.gmra.mxu0 %v3113
  %v3181 = vpop.f32.mrf.mxu0
  %v3182 = vadd.f32 0.0, %v3181
  %v3183 = vpop.f32.mrf.mxu0
  %v3184 = vadd.f32 0.0, %v3183
  %3185 = vdwg.mxu0
  %3186 = vmatprep.subr.mxu0 0.0
  %3187 = vmatpush1.msra.mxu0 0.0
  %3188 = vmatprep.subr.mxu0 0.0
  %3189 = vmatpush1.msra.mxu0 0.0
  %3190 = vmatprep.subr.mxu0 0.0
  %3191 = vmatpush1.msra.mxu0 0.0
  %3192 = vmatprep.subr.mxu0 0.0
  %3193 = vmatpush1.msra.mxu0 0.0
  %3194 = vmatprep.subr.mxu0 0.0
  %3195 = vmatpush1.msra.mxu0 0.0
  %3196 = vmatprep.subr.mxu0 0.0
  %3197 = vmatpush1.msra.mxu0 0.0
  %3198 = vmatprep.subr.mxu0 0.0
  %3199 = vmatpush1.msra.mxu0 0.0
  %3200 = vmatprep.subr.mxu0 0.0
  %3201 = vmatpush1.msra.mxu0 0.0
  %3202 = vmatprep.subr.mxu0 0.0
  %3203 = vmatpush1.msra.mxu0 0.0
  %3204 = vmatprep.subr.mxu0 0.0
  %3205 = vmatpush1.msra.mxu0 0.0
  %3206 = vmatprep.subr.mxu0 0.0
  %3207 = vmatpush1.msra.mxu0 0.0
  %3208 = vmatprep.subr.mxu0 0.0
  %3209 = vmatpush1.msra.mxu0 0.0
  %3210 = vmatprep.subr.mxu0 0.0
  %3211 = vmatpush1.msra.mxu0 0.0
  %3212 = vmatprep.subr.mxu0 0.0
  %3213 = vmatpush1.msra.mxu0 0.0
  %3214 = vmatprep.subr.mxu0 0.0
  %3215 = vmatpush1.msra.mxu0 0.0
  %3216 = vmatprep.subr.mxu0 %v3110
  %3217 = vmatpush1.msra.mxu0 %v3109
  %3218 = vmatprep.subr.mxu0 0.0
  %3219 = vmatpush2.msra.mxu0 0.0
  %3220 = vmatprep.subr.mxu0 0.0
  %3221 = vmatpush2.msra.mxu0 0.0
  %3222 = vmatprep.subr.mxu0 0.0
  %3223 = vmatpush2.msra.mxu0 0.0
  %3224 = vmatprep.subr.mxu0 0.0
  %3225 = vmatpush2.msra.mxu0 0.0
  %3226 = vmatprep.subr.mxu0 0.0
  %3227 = vmatpush2.msra.mxu0 0.0
  %3228 = vmatprep.subr.mxu0 0.0
  %3229 = vmatpush2.msra.mxu0 0.0
  %3230 = vmatprep.subr.mxu0 0.0
  %3231 = vmatpush2.msra.mxu0 0.0
  %3232 = vmatprep.subr.mxu0 0.0
  %3233 = vmatpush2.msra.mxu0 0.0
  %3234 = vmatprep.subr.mxu0 0.0
  %3235 = vmatpush2.msra.mxu0 0.0
  %3236 = vmatprep.subr.mxu0 0.0
  %3237 = vmatpush2.msra.mxu0 0.0
  %3238 = vmatprep.subr.mxu0 0.0
  %3239 = vmatpush2.msra.mxu0 0.0
  %3240 = vmatprep.subr.mxu0 0.0
  %3241 = vmatpush2.msra.mxu0 0.0
  %3242 = vmatprep.subr.mxu0 0.0
  %3243 = vmatpush2.msra.mxu0 0.0
  %3244 = vmatprep.subr.mxu0 0.0
  %3245 = vmatpush2.msra.mxu0 0.0
  %3246 = vmatprep.subr.mxu0 0.0
  %3247 = vmatpush2.msra.mxu0 0.0
  %3248 = vmatprep.subr.mxu0 0.0
  %3249 = vmatpush2.msra.mxu0 0.0
  %3250 = vmatprep.mubr.f32.mxu0 0.0
  %3251 = vmatmul.mubr.f32.gmra.mxu0 %v3113
  %v3252 = vpop.f32.mrf.mxu0
  %v3253 = vadd.f32 0.0, %v3252
  %v3254 = vpop.f32.mrf.mxu0
  %v3255 = vadd.f32 0.0, %v3254
  %3256 = vdwg.mxu0
  %v3257 = vadd.f32 %v181, %v3182
  %v3258 = vadd.f32 %v182, %v3184
  %v3259 = vadd.f32 %v183, %v3253
  %v3260 = vadd.f32 %v184, %v3255
  %v3261 = vld [vmem:[%s11] sm:$0xff]
  %3263 = vset.pattern.permute.xlu0 0
  %3264 = vperm.xlu0 %3263, %v3261
  %v3265 = vpop.permute.xlu0 %3264
  %v3267 = vadd.f32 %v3257, %v3265
  %v3268 = vadd.f32 %v3258, %v3265
  %v3269 = vadd.f32 %v3259, %v3265
  %v3270 = vadd.f32 %v3260, %v3265
  %3271 = vst [vmem:[%s12] sm:$0xff] %v3267
  %3272 = vst [vmem:[%s12 + $0x8] sm:$0xff] %v3268
  %3273 = vst [vmem:[%s12 + $0x10] sm:$0xff] %v3269
  %3274 = vst [vmem:[%s12 + $0x18] sm:$0xff] %v3270
  // Predicated region
  $region50: #{sce_encoder_forward.1} parent=0 // pred_check
    _
  $region51: #{sce_encoder_forward.1} parent=0 // pred_check_branch
    %3276 = sbr.rel (0) target = $region53
  $region52: #{sce_encoder_forward.1} parent=0 // pred_region
    _
  $region53: #{sce_encoder_forward.1} parent=0 // pred_fallthru
    _
  // Predicated region
  $region54: #{sce_encoder_forward.1} parent=0 // pred_check
    _
  $region55: #{sce_encoder_forward.1} parent=0 // pred_check_branch
    %3278 = sbr.rel (0) target = $region57
  $region56: #{sce_encoder_forward.1} parent=0 // pred_region
    _
  $region57: #{sce_encoder_forward.1} parent=0 // pred_fallthru
    _

</llo_original>
